<compile_context>
chip_gen: v6e
topology: v6e:2x2x1
jax: 0.10.0
libtpu: 0.0.40
codegen_flags: <defaults>
</compile_context>

<pallas_src>
import math
from functools import partial

import jax
import jax.numpy as jnp
from jax.experimental import pallas as pl
from jax.experimental.pallas import tpu as pltpu


# Row indices into the packed [N_VEC, D] vector table (all D-wide vectors).
(_B_PE, _G_TOK, _B_TOK, _G_LNR, _B_LNR, _G_LNS, _B_LNS,
 _B_O, _LS_ATTN, _G_LNF, _B_LNF, _B_2, _LS_FFN, _N_VEC) = range(14)

_LN_EPS_TOK = 1e-6   # ConvNeXt-style tokenizer LayerNorm
_LN_EPS = 1e-5       # torch.nn.LayerNorm default (read-in attention / ModFFN)

_PACKED_ORDER = ["w_pe", "w_mod", "w_qT", "w_kvT", "w_o", "w_1", "w_2", "w_ps",
                 "vec_d", "b_qT", "b_kvT", "b_1", "b_ps"]


def _round_up(x, m):
    return ((x + m - 1) // m) * m


def _mod_offsets(D, HD, F):
    """128-aligned column offsets of the 4 segments inside the fused w_mod."""
    off_q = 0
    off_o = off_q + _round_up(D, 128)
    off_1 = off_o + _round_up(HD, 128)
    off_2 = off_1 + _round_up(D, 128)
    total = off_2 + _round_up(F, 128)
    return off_q, off_o, off_1, off_2, total


def _layer_norm(x, g, b, eps):
    mu = jnp.mean(x, axis=-1, keepdims=True)
    var = jnp.mean(jnp.square(x - mu), axis=-1, keepdims=True)
    return (x - mu) * jax.lax.rsqrt(var + eps) * g + b


def read_in_student_kernel(
    # per-batch-block tensors
    patches_ref, rstates_ref, rcodes_ref,
    # bf16 matmul weights (constant block index across the grid)
    w_pe_ref, w_mod_ref, w_qT_ref, w_kvT_ref, w_o_ref, w_1_ref, w_2_ref, w_ps_ref,
    # f32 packed vectors
    vec_d_ref, b_qT_ref, b_kvT_ref, b_1_ref, b_ps_ref,
    # output
    out_ref,
    *, num_heads, head_dim, include_residual_in_attn):
    f32, bf16 = jnp.float32, jnp.bfloat16
    nh, hd = num_heads, head_dim
    HD = nh * hd

    Bb, T, Cpp = patches_ref.shape
    _, R, D = rstates_ref.shape
    Cd = rcodes_ref.shape[-1]
    F = w_1_ref.shape[-1]
    Ms, Mr = Bb * T, Bb * R
    off_q, off_o, off_1, off_2, _ = _mod_offsets(D, HD, F)

    def row(i):                               # [1, D] slice of the vector table
        return vec_d_ref[i:i + 1, :]

    # Flatten the batch block into the M dimension of every matmul (leading-dim
    # merges; free since R and T are multiples of 8).
    patches = patches_ref[...].reshape(Ms, Cpp)     # bf16
    rstates = rstates_ref[...].reshape(Mr, D)       # f32
    rcodes = rcodes_ref[...].reshape(Mr, Cd)        # bf16

    # ---- tokenizer: patch-embed (Conv2d k=P s=P as matmul) + LayerNorm ----
    tok = jnp.dot(patches, w_pe_ref[...], preferred_element_type=f32) + row(_B_PE)
    tok = _layer_norm(tok, row(_G_TOK), row(_B_TOK), _LN_EPS_TOK)        # [Ms, D]

    # ---- ReadInAttention: code-modulated cross-attention ----
    rx = _layer_norm(rstates, row(_G_LNR), row(_B_LNR), _LN_EPS)         # [Mr, D]
    sx = _layer_norm(tok, row(_G_LNS), row(_B_LNS), _LN_EPS)             # [Ms, D]

    # All four code modulations in one matmul; segments are 128-aligned so the
    # slices below are lane-tile-aligned views.
    mods = jnp.dot(rcodes, w_mod_ref[...], preferred_element_type=f32)   # [Mr, Wm]
    mod_q = 1.0 + mods[:, off_q:off_q + D]
    mod_o = 1.0 + mods[:, off_o:off_o + HD]
    mod_1 = 1.0 + mods[:, off_1:off_1 + D]
    mod_2 = 1.0 + mods[:, off_2:off_2 + F]

    # q / kv are produced directly in transposed ([feature, M]) layout from the
    # pre-transposed weights (1/sqrt(hd) folded into w_qT/b_qT at pack time):
    # only the smaller [M, D] activations pay an XLU transpose and the per-head
    # split lands on the sublane axis (free leading-dim reshape).
    qx = rx * mod_q                                                      # [Mr, D]
    qT = (jnp.dot(w_qT_ref[...], qx.T.astype(bf16),
                  preferred_element_type=f32) + b_qT_ref[...]).astype(bf16)   # [HD, Mr]
    sxT = sx.T.astype(bf16)                                              # [D, Ms]
    kvT = (jnp.dot(w_kvT_ref[...], sxT,
                   preferred_element_type=f32) + b_kvT_ref[...]).astype(bf16)  # [2HD, Ms]
    kT, vT = kvT[:HD], kvT[HD:]                                          # [HD, Ms]

    # Per-image attention: receivers of image b attend only to image b's tokens.
    # Bb is small, so this is a short unrolled loop of head-batched dot_generals.
    attnT_parts = []
    for b in range(Bb):
        q3 = qT[:, b * R:(b + 1) * R].reshape(nh, hd, R)                 # [H, hd, R]
        k3 = kT[:, b * T:(b + 1) * T].reshape(nh, hd, T)                 # [H, hd, T]
        v3 = vT[:, b * T:(b + 1) * T].reshape(nh, hd, T)                 # [H, hd, T]
        s = jnp.einsum("hdr,hdt->hrt", q3, k3,
                       preferred_element_type=f32)                       # [H, R, T]
        s = s - jnp.max(s, axis=-1, keepdims=True)
        p = jnp.exp(s)
        p = p * pl.reciprocal(jnp.sum(p, axis=-1, keepdims=True), approx=True)
        o3 = jnp.einsum("hdt,hrt->hdr", v3, p.astype(bf16),
                        preferred_element_type=f32)                      # [H, hd, R]
        attnT_parts.append(o3.reshape(HD, R))
    attnT = attnT_parts[0] if Bb == 1 else jnp.concatenate(attnT_parts, axis=1)
    attn = attnT.T                                                       # [Mr, HD]

    attn_proj = jnp.dot((attn * mod_o).astype(bf16), w_o_ref[...],
                        preferred_element_type=f32) + row(_B_O)          # [Mr, D]
    y = row(_LS_ATTN) * attn_proj
    if include_residual_in_attn:   # include_residual_in_read_in_attention=False default
        y = y + rstates

    # ---- ModFFN (residual, code-modulated, layer-scaled) ----
    hx = _layer_norm(y, row(_G_LNF), row(_B_LNF), _LN_EPS)
    h1 = jnp.dot((hx * mod_1).astype(bf16), w_1_ref[...],
                 preferred_element_type=f32) + b_1_ref[...]              # [Mr, F]
    # TODO(synk): PyTorch nn.GELU default is exact erf; tanh-approx gelu is used
    # here (numerically very close, guaranteed Mosaic lowering).
    h1 = jax.nn.gelu(h1)
    h2 = jnp.dot((h1 * mod_2).astype(bf16), w_2_ref[...],
                 preferred_element_type=f32) + row(_B_2)                 # [Mr, D]
    y = y + row(_LS_FFN) * h2
    # TODO(synk): path_drop_prob (stochastic depth) is train-time only; identity at eval.

    # ---- post_stitch linear (columns zero-padded to 128x -> lane-dense store) ----
    out = jnp.dot(y.astype(bf16), w_ps_ref[...],
                  preferred_element_type=f32) + b_ps_ref[...]            # [Mr, S_pad]
    out_ref[...] = out.reshape(Bb, R, out.shape[-1]).astype(out_ref.dtype)


def pack_params(params, *, num_heads, head_dim, state_dim, ffn_dim, stitch_dim):
    """Fuse / pad / transpose / bf16-cast the logical params for the kernel."""
    bf16 = jnp.bfloat16
    D, HD, F, S = state_dim, num_heads * head_dim, ffn_dim, stitch_dim
    s_pad = _round_up(S, 128)
    off_q, off_o, off_1, off_2, wm_cols = _mod_offsets(D, HD, F)
    scale = 1.0 / math.sqrt(head_dim)

    vec_d = jnp.zeros((_N_VEC, D), jnp.float32)
    rows = {
        _B_PE: params["b_pe"], _G_TOK: params["g_tok"], _B_TOK: params["bt_tok"],
        _G_LNR: params["g_lnr"], _B_LNR: params["b_lnr"],
        _G_LNS: params["g_lns"], _B_LNS: params["b_lns"],
        _B_O: params["b_o"], _LS_ATTN: params["ls_attn"],
        _G_LNF: params["g_lnf"], _B_LNF: params["b_lnf"],
        _B_2: params["b_2"], _LS_FFN: params["ls_ffn"],
    }
    for i, v in rows.items():
        vec_d = vec_d.at[i].set(v.reshape(D).astype(jnp.float32))

    # fused modulation weight with 128-aligned column segments
    w_mod = jnp.zeros((params["w_modq"].shape[0], wm_cols), jnp.float32)
    w_mod = w_mod.at[:, off_q:off_q + D].set(params["w_modq"])
    w_mod = w_mod.at[:, off_o:off_o + HD].set(params["w_modo"])
    w_mod = w_mod.at[:, off_1:off_1 + D].set(params["w_mod1"])
    w_mod = w_mod.at[:, off_2:off_2 + F].set(params["w_mod2"])

    w_ps_pad = jnp.zeros((D, s_pad), jnp.float32).at[:, :S].set(params["w_ps"])
    b_ps_pad = jnp.zeros((1, s_pad), jnp.float32).at[:, :S].set(
        params["b_ps"].reshape(1, S))

    return {
        "w_pe": params["w_pe"].astype(bf16),
        "w_mod": w_mod.astype(bf16),                                 # [Cd, Wm]
        # pre-transposed q / kv projections; 1/sqrt(hd) folded into q
        "w_qT": (params["w_q"] * scale).T.astype(bf16),              # [HD, D]
        "w_kvT": jnp.concatenate([params["w_k"], params["w_v"]],
                                 axis=1).T.astype(bf16),             # [2HD, D]
        "w_o": params["w_o"].astype(bf16),
        "w_1": params["w_1"].astype(bf16),
        "w_2": params["w_2"].astype(bf16),
        "w_ps": w_ps_pad.astype(bf16),
        "vec_d": vec_d,
        "b_qT": (params["b_q"] * scale).reshape(HD, 1).astype(jnp.float32),
        "b_kvT": jnp.concatenate([params["b_k"].reshape(HD),
                                  params["b_v"].reshape(HD)]
                                 ).reshape(2 * HD, 1).astype(jnp.float32),
        "b_1": params["b_1"].reshape(1, F).astype(jnp.float32),
        "b_ps": b_ps_pad,
    }


def _pick_batch_block(B, R, target_rows=256, max_block=8):
    """Largest divisor of B (capped) so that Bb*R reaches ~MXU-row width."""
    cap = max(1, min(max_block, -(-target_rows // R)))
    best = 1
    for bb in range(1, min(B, cap) + 1):
        if B % bb == 0:
            best = bb
    return best


def read_in_student_forward(x, receiver_states, receiver_codes, packed, *,
                            patch_size, num_heads, head_dim, stitch_dim,
                            include_residual_in_attn=False, batch_block=None):
    B, C, Himg, Wimg = x.shape
    P = patch_size
    T = (Himg // P) * (Wimg // P)
    # NCHW -> [B, T, C*P*P] patchify (channel-major flattening matches a
    # Conv2d(kernel=P, stride=P) weight), done in bf16.
    xb = x.astype(jnp.bfloat16)
    patches = xb.reshape(B, C, Himg // P, P, Wimg // P, P)
    patches = patches.transpose(0, 2, 4, 1, 3, 5).reshape(B, T, C * P * P)

    R, D = receiver_states.shape[1], receiver_states.shape[2]
    Cd = receiver_codes.shape[2]
    HD = num_heads * head_dim
    F = packed["w_1"].shape[1]
    s_pad = packed["w_ps"].shape[1]
    Cpp = patches.shape[2]

    Bb = batch_block or _pick_batch_block(B, R)
    assert B % Bb == 0, "batch_block must divide the batch size"
    nblk = B // Bb

    kernel = partial(read_in_student_kernel,
                     num_heads=num_heads, head_dim=head_dim,
                     include_residual_in_attn=include_residual_in_attn)

    # Advisory cost estimate so XLA can schedule around the fused call.
    flops = 2 * B * (T * Cpp * D + R * Cd * packed["w_mod"].shape[1]
                     + T * D * 2 * HD + R * D * HD + 2 * R * T * HD
                     + R * HD * D + 2 * R * D * F + R * D * s_pad)
    transcendentals = B * (num_heads * R * T + R * F)
    in_arrays = ([patches, receiver_states, receiver_codes]
                 + [packed[n] for n in _PACKED_ORDER])
    bytes_accessed = (sum(int(a.size) * a.dtype.itemsize for a in in_arrays)
                      + B * R * s_pad * 4)
    cost = pl.CostEstimate(flops=int(flops), transcendentals=int(transcendentals),
                           bytes_accessed=int(bytes_accessed))

    def batched(shape):
        return pl.BlockSpec((Bb,) + tuple(shape[1:]), lambda g: (g, 0, 0))

    def run(single_buffer_weights):
        def weight_spec(arr):
            nd = arr.ndim
            imap = lambda g, _n=nd: (0,) * _n
            if single_buffer_weights:
                # Constant block index across the batch grid -> no re-DMA, so
                # double buffering the weights only wastes VMEM (key on v7x).
                return pl.BlockSpec(arr.shape, imap, pipeline_mode=pl.Buffered(1))
            return pl.BlockSpec(arr.shape, imap)

        in_specs = ([batched(patches.shape),
                     batched(receiver_states.shape),
                     batched(receiver_codes.shape)]
                    + [weight_spec(packed[n]) for n in _PACKED_ORDER])
        return pl.pallas_call(
            kernel,
            out_shape=jax.ShapeDtypeStruct((B, R, s_pad), jnp.float32),
            grid=(nblk,),
            in_specs=in_specs,
            out_specs=pl.BlockSpec((Bb, R, s_pad), lambda g: (g, 0, 0)),
            compiler_params=pltpu.CompilerParams(
                dimension_semantics=("parallel",),
                vmem_limit_bytes=64 * 1024 * 1024),
            cost_estimate=cost,
        )(patches, receiver_states.astype(jnp.float32),
          receiver_codes.astype(jnp.bfloat16),
          *[packed[n] for n in _PACKED_ORDER])

    try:
        out = run(single_buffer_weights=True)
    except Exception:
        # Fallback for JAX versions without BlockSpec(pipeline_mode=...) support.
        out = run(single_buffer_weights=False)
    return out[:, :, :stitch_dim]


def init_params(key, *, input_dim, patch_size, state_dim, code_dim,
                num_heads, head_dim, ffn_hidden, stitch_dim):
    Cpp = input_dim * patch_size * patch_size
    HD = num_heads * head_dim
    D, Cd, F, S = state_dim, code_dim, ffn_hidden, stitch_dim
    keys = iter(jax.random.split(key, 16))

    def w(shape, fan_in):
        return jax.random.normal(next(keys), shape, jnp.float32) / math.sqrt(fan_in)

    p = {
        # tokenizer (patch-embed conv as matmul + LN)
        "w_pe": w((Cpp, D), Cpp), "b_pe": jnp.zeros((1, D)),
        "g_tok": jnp.ones((1, D)), "bt_tok": jnp.zeros((1, D)),
        # read-in attention
        "g_lnr": jnp.ones((1, D)), "b_lnr": jnp.zeros((1, D)),
        "g_lns": jnp.ones((1, D)), "b_lns": jnp.zeros((1, D)),
        "w_modq": w((Cd, D), Cd) * 0.1,
        "w_q": w((D, HD), D), "b_q": jnp.zeros((1, HD)),
        "w_k": w((D, HD), D), "b_k": jnp.zeros((1, HD)),
        "w_v": w((D, HD), D), "b_v": jnp.zeros((1, HD)),
        "w_modo": w((Cd, HD), Cd) * 0.1,
        "w_o": w((HD, D), HD), "b_o": jnp.zeros((1, D)),
        "ls_attn": jnp.full((1, D), 1.0),    # read_in_layer_scale_initial_value
        # ModFFN
        "g_lnf": jnp.ones((1, D)), "b_lnf": jnp.zeros((1, D)),
        "w_mod1": w((Cd, D), Cd) * 0.1,
        "w_1": w((D, F), D), "b_1": jnp.zeros((1, F)),
        "w_mod2": w((Cd, F), Cd) * 0.1,
        "w_2": w((F, D), F), "b_2": jnp.zeros((1, D)),
        "ls_ffn": jnp.full((1, D), 1e-6),    # ffn_layer_scale_initial_value
        # post_stitch
        "w_ps": w((D, S), D), "b_ps": jnp.zeros((1, S)),
    }
    return {k: v.astype(jnp.float32) for k, v in p.items()}


if __name__ == "__main__":
    # small shapes consistent with the module
    B, C, Himg, Wimg = 2, 4, 16, 16      # batch=2, input_dim=4 channels, 16x16 image
    P = 4                                # patch size -> T = 16 sender tokens
    D, Cd, S = 32, 16, 24                # state_dim, code_dim, stitch_dim
    R = 8                                # receiver slots
    nH, hd = 2, 8                        # num_heads, head_dim (scaled down)
    F = 4 * D                            # ffn hidden (capacity_factor=1.0)

    key = jax.random.PRNGKey(0)
    kx, kr, kc, kp = jax.random.split(key, 4)
    x = jax.random.normal(kx, (B, C, Himg, Wimg), jnp.float32)
    receiver_states = jax.random.normal(kr, (B, R, D), jnp.float32)
    receiver_codes = jax.random.normal(kc, (B, R, Cd), jnp.float32)

    params = init_params(kp, input_dim=C, patch_size=P, state_dim=D,
                         code_dim=Cd, num_heads=nH, head_dim=hd,
                         ffn_hidden=F, stitch_dim=S)
    packed = pack_params(params, num_heads=nH, head_dim=hd, state_dim=D,
                         ffn_dim=F, stitch_dim=S)

    out = read_in_student_forward(x, receiver_states, receiver_codes, packed,
                                  patch_size=P, num_heads=nH, head_dim=hd,
                                  stitch_dim=S)
    out = jax.block_until_ready(out)
    assert out.shape == (B, R, S) and bool(jnp.all(jnp.isfinite(out)))
    print("KERNEL_OK")
</pallas_src>

<mosaic_0001>
module attributes {stable_mosaic.version = 11 : i64} {
  func.func @read_in_student_kernel(%arg0: i32, %arg1: memref<2x16x64xbf16, #tpu.memory_space<vmem>>, %arg2: memref<2x8x32xf32, #tpu.memory_space<vmem>>, %arg3: memref<2x8x16xbf16, #tpu.memory_space<vmem>>, %arg4: memref<64x32xbf16, #tpu.memory_space<vmem>>, %arg5: memref<16x512xbf16, #tpu.memory_space<vmem>>, %arg6: memref<16x32xbf16, #tpu.memory_space<vmem>>, %arg7: memref<32x32xbf16, #tpu.memory_space<vmem>>, %arg8: memref<16x32xbf16, #tpu.memory_space<vmem>>, %arg9: memref<32x128xbf16, #tpu.memory_space<vmem>>, %arg10: memref<128x32xbf16, #tpu.memory_space<vmem>>, %arg11: memref<32x128xbf16, #tpu.memory_space<vmem>>, %arg12: memref<13x32xf32, #tpu.memory_space<vmem>>, %arg13: memref<16x1xf32, #tpu.memory_space<vmem>>, %arg14: memref<32x1xf32, #tpu.memory_space<vmem>>, %arg15: memref<1x128xf32, #tpu.memory_space<vmem>>, %arg16: memref<1x128xf32, #tpu.memory_space<vmem>>, %arg17: memref<2x8x128xf32, #tpu.memory_space<vmem>>) attributes {dimension_semantics = [#tpu.dimension_semantics<parallel>], iteration_bounds = array<i64: 1>, scalar_prefetch = 0 : i64, scratch_operands = 0 : i64, tpu.core_type = #tpu.core_type<tc>, window_params = [{transform_indices = @transform_0, window_bounds = array<i64: 2, 16, 64>}, {transform_indices = @transform_1, window_bounds = array<i64: 2, 8, 32>}, {transform_indices = @transform_2, window_bounds = array<i64: 2, 8, 16>}, {pipeline_mode = #tpu.pipeline_mode<synchronous>, transform_indices = @transform_3, window_bounds = array<i64: 64, 32>}, {pipeline_mode = #tpu.pipeline_mode<synchronous>, transform_indices = @transform_4, window_bounds = array<i64: 16, 512>}, {pipeline_mode = #tpu.pipeline_mode<synchronous>, transform_indices = @transform_5, window_bounds = array<i64: 16, 32>}, {pipeline_mode = #tpu.pipeline_mode<synchronous>, transform_indices = @transform_6, window_bounds = array<i64: 32, 32>}, {pipeline_mode = #tpu.pipeline_mode<synchronous>, transform_indices = @transform_7, window_bounds = array<i64: 16, 32>}, {pipeline_mode = #tpu.pipeline_mode<synchronous>, transform_indices = @transform_8, window_bounds = array<i64: 32, 128>}, {pipeline_mode = #tpu.pipeline_mode<synchronous>, transform_indices = @transform_9, window_bounds = array<i64: 128, 32>}, {pipeline_mode = #tpu.pipeline_mode<synchronous>, transform_indices = @transform_10, window_bounds = array<i64: 32, 128>}, {pipeline_mode = #tpu.pipeline_mode<synchronous>, transform_indices = @transform_11, window_bounds = array<i64: 13, 32>}, {pipeline_mode = #tpu.pipeline_mode<synchronous>, transform_indices = @transform_12, window_bounds = array<i64: 16, 1>}, {pipeline_mode = #tpu.pipeline_mode<synchronous>, transform_indices = @transform_13, window_bounds = array<i64: 32, 1>}, {pipeline_mode = #tpu.pipeline_mode<synchronous>, transform_indices = @transform_14, window_bounds = array<i64: 1, 128>}, {pipeline_mode = #tpu.pipeline_mode<synchronous>, transform_indices = @transform_15, window_bounds = array<i64: 1, 128>}, {transform_indices = @transform_16, window_bounds = array<i64: 2, 8, 128>}]} {
    %c0 = arith.constant 0 : index
    %c0_0 = arith.constant 0 : index
    %c0_1 = arith.constant 0 : index
    %0 = vector.load %arg1[%c0, %c0_0, %c0_1] : memref<2x16x64xbf16, #tpu.memory_space<vmem>>, vector<2x16x64xbf16>
    %1 = vector.shape_cast %0 : vector<2x16x64xbf16> to vector<32x64xbf16>
    %c0_2 = arith.constant 0 : index
    %c0_3 = arith.constant 0 : index
    %c0_4 = arith.constant 0 : index
    %2 = vector.load %arg2[%c0_2, %c0_3, %c0_4] : memref<2x8x32xf32, #tpu.memory_space<vmem>>, vector<2x8x32xf32>
    %3 = vector.shape_cast %2 : vector<2x8x32xf32> to vector<16x32xf32>
    %c0_5 = arith.constant 0 : index
    %c0_6 = arith.constant 0 : index
    %c0_7 = arith.constant 0 : index
    %4 = vector.load %arg3[%c0_5, %c0_6, %c0_7] : memref<2x8x16xbf16, #tpu.memory_space<vmem>>, vector<2x8x16xbf16>
    %5 = vector.shape_cast %4 : vector<2x8x16xbf16> to vector<16x16xbf16>
    %c0_8 = arith.constant 0 : index
    %c0_9 = arith.constant 0 : index
    %6 = vector.load %arg4[%c0_8, %c0_9] : memref<64x32xbf16, #tpu.memory_space<vmem>>, vector<64x32xbf16>
    %cst = arith.constant dense<0.000000e+00> : vector<32x32xf32>
    %7 = tpu.matmul %1, %6, %cst {dimension_numbers = #tpu.dot_dimension_numbers<[1], [0], [0], [1], [0, 0, 1, 1], [], []>} : vector<32x64xbf16>, vector<64x32xbf16>, vector<32x32xf32> -> vector<32x32xf32>
    %c0_10 = arith.constant 0 : index
    %c0_11 = arith.constant 0 : index
    %8 = vector.load %arg12[%c0_10, %c0_11] : memref<13x32xf32, #tpu.memory_space<vmem>>, vector<1x32xf32>
    %9 = vector.broadcast %8 : vector<1x32xf32> to vector<32x32xf32>
    %10 = arith.addf %7, %9 : vector<32x32xf32>
    %c1 = arith.constant 1 : index
    %c0_12 = arith.constant 0 : index
    %11 = vector.load %arg12[%c1, %c0_12] : memref<13x32xf32, #tpu.memory_space<vmem>>, vector<1x32xf32>
    %c2 = arith.constant 2 : index
    %c0_13 = arith.constant 0 : index
    %12 = vector.load %arg12[%c2, %c0_13] : memref<13x32xf32, #tpu.memory_space<vmem>>, vector<1x32xf32>
    %cst_14 = arith.constant dense<0.000000e+00> : vector<32xf32>
    %13 = vector.multi_reduction <add>, %10, %cst_14 [1] : vector<32x32xf32> to vector<32xf32>
    %14 = vector.shape_cast %13 : vector<32xf32> to vector<32x1xf32>
    %cst_15 = arith.constant 3.200000e+01 : f32
    %15 = vector.broadcast %cst_15 : f32 to vector<32x1xf32>
    %16 = arith.divf %14, %15 : vector<32x1xf32>
    %17 = vector.broadcast %16 : vector<32x1xf32> to vector<32x32xf32>
    %18 = arith.subf %10, %17 : vector<32x32xf32>
    %19 = arith.mulf %18, %18 : vector<32x32xf32>
    %cst_16 = arith.constant dense<0.000000e+00> : vector<32xf32>
    %20 = vector.multi_reduction <add>, %19, %cst_16 [1] : vector<32x32xf32> to vector<32xf32>
    %21 = vector.shape_cast %20 : vector<32xf32> to vector<32x1xf32>
    %cst_17 = arith.constant 3.200000e+01 : f32
    %22 = vector.broadcast %cst_17 : f32 to vector<32x1xf32>
    %23 = arith.divf %21, %22 : vector<32x1xf32>
    %24 = vector.broadcast %16 : vector<32x1xf32> to vector<32x32xf32>
    %25 = arith.subf %10, %24 : vector<32x32xf32>
    %cst_18 = arith.constant 9.99999997E-7 : f32
    %26 = vector.broadcast %cst_18 : f32 to vector<32x1xf32>
    %27 = arith.addf %23, %26 : vector<32x1xf32>
    %28 = math.rsqrt %27 : vector<32x1xf32>
    %29 = vector.broadcast %28 : vector<32x1xf32> to vector<32x32xf32>
    %30 = arith.mulf %25, %29 : vector<32x32xf32>
    %31 = vector.broadcast %11 : vector<1x32xf32> to vector<32x32xf32>
    %32 = arith.mulf %30, %31 : vector<32x32xf32>
    %33 = vector.broadcast %12 : vector<1x32xf32> to vector<32x32xf32>
    %34 = arith.addf %32, %33 : vector<32x32xf32>
    %c3 = arith.constant 3 : index
    %c0_19 = arith.constant 0 : index
    %35 = vector.load %arg12[%c3, %c0_19] : memref<13x32xf32, #tpu.memory_space<vmem>>, vector<1x32xf32>
    %c4 = arith.constant 4 : index
    %c0_20 = arith.constant 0 : index
    %36 = vector.load %arg12[%c4, %c0_20] : memref<13x32xf32, #tpu.memory_space<vmem>>, vector<1x32xf32>
    %cst_21 = arith.constant dense<0.000000e+00> : vector<16xf32>
    %37 = vector.multi_reduction <add>, %3, %cst_21 [1] : vector<16x32xf32> to vector<16xf32>
    %38 = vector.shape_cast %37 : vector<16xf32> to vector<16x1xf32>
    %cst_22 = arith.constant 3.200000e+01 : f32
    %39 = vector.broadcast %cst_22 : f32 to vector<16x1xf32>
    %40 = arith.divf %38, %39 : vector<16x1xf32>
    %41 = vector.broadcast %40 : vector<16x1xf32> to vector<16x32xf32>
    %42 = arith.subf %3, %41 : vector<16x32xf32>
    %43 = arith.mulf %42, %42 : vector<16x32xf32>
    %cst_23 = arith.constant dense<0.000000e+00> : vector<16xf32>
    %44 = vector.multi_reduction <add>, %43, %cst_23 [1] : vector<16x32xf32> to vector<16xf32>
    %45 = vector.shape_cast %44 : vector<16xf32> to vector<16x1xf32>
    %cst_24 = arith.constant 3.200000e+01 : f32
    %46 = vector.broadcast %cst_24 : f32 to vector<16x1xf32>
    %47 = arith.divf %45, %46 : vector<16x1xf32>
    %48 = vector.broadcast %40 : vector<16x1xf32> to vector<16x32xf32>
    %49 = arith.subf %3, %48 : vector<16x32xf32>
    %cst_25 = arith.constant 9.99999974E-6 : f32
    %50 = vector.broadcast %cst_25 : f32 to vector<16x1xf32>
    %51 = arith.addf %47, %50 : vector<16x1xf32>
    %52 = math.rsqrt %51 : vector<16x1xf32>
    %53 = vector.broadcast %52 : vector<16x1xf32> to vector<16x32xf32>
    %54 = arith.mulf %49, %53 : vector<16x32xf32>
    %55 = vector.broadcast %35 : vector<1x32xf32> to vector<16x32xf32>
    %56 = arith.mulf %54, %55 : vector<16x32xf32>
    %57 = vector.broadcast %36 : vector<1x32xf32> to vector<16x32xf32>
    %58 = arith.addf %56, %57 : vector<16x32xf32>
    %c5 = arith.constant 5 : index
    %c0_26 = arith.constant 0 : index
    %59 = vector.load %arg12[%c5, %c0_26] : memref<13x32xf32, #tpu.memory_space<vmem>>, vector<1x32xf32>
    %c6 = arith.constant 6 : index
    %c0_27 = arith.constant 0 : index
    %60 = vector.load %arg12[%c6, %c0_27] : memref<13x32xf32, #tpu.memory_space<vmem>>, vector<1x32xf32>
    %cst_28 = arith.constant dense<0.000000e+00> : vector<32xf32>
    %61 = vector.multi_reduction <add>, %34, %cst_28 [1] : vector<32x32xf32> to vector<32xf32>
    %62 = vector.shape_cast %61 : vector<32xf32> to vector<32x1xf32>
    %cst_29 = arith.constant 3.200000e+01 : f32
    %63 = vector.broadcast %cst_29 : f32 to vector<32x1xf32>
    %64 = arith.divf %62, %63 : vector<32x1xf32>
    %65 = vector.broadcast %64 : vector<32x1xf32> to vector<32x32xf32>
    %66 = arith.subf %34, %65 : vector<32x32xf32>
    %67 = arith.mulf %66, %66 : vector<32x32xf32>
    %cst_30 = arith.constant dense<0.000000e+00> : vector<32xf32>
    %68 = vector.multi_reduction <add>, %67, %cst_30 [1] : vector<32x32xf32> to vector<32xf32>
    %69 = vector.shape_cast %68 : vector<32xf32> to vector<32x1xf32>
    %cst_31 = arith.constant 3.200000e+01 : f32
    %70 = vector.broadcast %cst_31 : f32 to vector<32x1xf32>
    %71 = arith.divf %69, %70 : vector<32x1xf32>
    %72 = vector.broadcast %64 : vector<32x1xf32> to vector<32x32xf32>
    %73 = arith.subf %34, %72 : vector<32x32xf32>
    %cst_32 = arith.constant 9.99999974E-6 : f32
    %74 = vector.broadcast %cst_32 : f32 to vector<32x1xf32>
    %75 = arith.addf %71, %74 : vector<32x1xf32>
    %76 = math.rsqrt %75 : vector<32x1xf32>
    %77 = vector.broadcast %76 : vector<32x1xf32> to vector<32x32xf32>
    %78 = arith.mulf %73, %77 : vector<32x32xf32>
    %79 = vector.broadcast %59 : vector<1x32xf32> to vector<32x32xf32>
    %80 = arith.mulf %78, %79 : vector<32x32xf32>
    %81 = vector.broadcast %60 : vector<1x32xf32> to vector<32x32xf32>
    %82 = arith.addf %80, %81 : vector<32x32xf32>
    %c0_33 = arith.constant 0 : index
    %c0_34 = arith.constant 0 : index
    %83 = vector.load %arg5[%c0_33, %c0_34] : memref<16x512xbf16, #tpu.memory_space<vmem>>, vector<16x512xbf16>
    %cst_35 = arith.constant dense<0.000000e+00> : vector<16x512xf32>
    %84 = tpu.matmul %5, %83, %cst_35 {dimension_numbers = #tpu.dot_dimension_numbers<[1], [0], [0], [1], [0, 0, 1, 1], [], []>} : vector<16x16xbf16>, vector<16x512xbf16>, vector<16x512xf32> -> vector<16x512xf32>
    %85 = vector.extract_strided_slice %84 {offsets = [0, 0], sizes = [16, 32], strides = [1, 1]} : vector<16x512xf32> to vector<16x32xf32>
    %cst_36 = arith.constant 1.000000e+00 : f32
    %86 = vector.broadcast %cst_36 : f32 to vector<16x32xf32>
    %87 = arith.addf %86, %85 : vector<16x32xf32>
    %88 = vector.extract_strided_slice %84 {offsets = [0, 128], sizes = [16, 16], strides = [1, 1]} : vector<16x512xf32> to vector<16x16xf32>
    %cst_37 = arith.constant 1.000000e+00 : f32
    %89 = vector.broadcast %cst_37 : f32 to vector<16x16xf32>
    %90 = arith.addf %89, %88 : vector<16x16xf32>
    %91 = vector.extract_strided_slice %84 {offsets = [0, 256], sizes = [16, 32], strides = [1, 1]} : vector<16x512xf32> to vector<16x32xf32>
    %cst_38 = arith.constant 1.000000e+00 : f32
    %92 = vector.broadcast %cst_38 : f32 to vector<16x32xf32>
    %93 = arith.addf %92, %91 : vector<16x32xf32>
    %94 = vector.extract_strided_slice %84 {offsets = [0, 384], sizes = [16, 128], strides = [1, 1]} : vector<16x512xf32> to vector<16x128xf32>
    %cst_39 = arith.constant 1.000000e+00 : f32
    %95 = vector.broadcast %cst_39 : f32 to vector<16x128xf32>
    %96 = arith.addf %95, %94 : vector<16x128xf32>
    %97 = arith.mulf %58, %87 : vector<16x32xf32>
    %c0_40 = arith.constant 0 : index
    %c0_41 = arith.constant 0 : index
    %98 = vector.load %arg6[%c0_40, %c0_41] : memref<16x32xbf16, #tpu.memory_space<vmem>>, vector<16x32xbf16>
    %99 = tpu.transpose %97, [1, 0] : vector<16x32xf32> -> vector<32x16xf32>
    %100 = arith.truncf %99 : vector<32x16xf32> to vector<32x16xbf16>
    %cst_42 = arith.constant dense<0.000000e+00> : vector<16x16xf32>
    %101 = tpu.matmul %98, %100, %cst_42 {dimension_numbers = #tpu.dot_dimension_numbers<[1], [0], [0], [1], [0, 0, 1, 1], [], []>} : vector<16x32xbf16>, vector<32x16xbf16>, vector<16x16xf32> -> vector<16x16xf32>
    %c0_43 = arith.constant 0 : index
    %c0_44 = arith.constant 0 : index
    %102 = vector.load %arg13[%c0_43, %c0_44] : memref<16x1xf32, #tpu.memory_space<vmem>>, vector<16x1xf32>
    %103 = vector.broadcast %102 : vector<16x1xf32> to vector<16x16xf32>
    %104 = arith.addf %101, %103 : vector<16x16xf32>
    %105 = arith.truncf %104 : vector<16x16xf32> to vector<16x16xbf16>
    %106 = tpu.transpose %82, [1, 0] : vector<32x32xf32> -> vector<32x32xf32>
    %107 = arith.truncf %106 : vector<32x32xf32> to vector<32x32xbf16>
    %c0_45 = arith.constant 0 : index
    %c0_46 = arith.constant 0 : index
    %108 = vector.load %arg7[%c0_45, %c0_46] : memref<32x32xbf16, #tpu.memory_space<vmem>>, vector<32x32xbf16>
    %cst_47 = arith.constant dense<0.000000e+00> : vector<32x32xf32>
    %109 = tpu.matmul %108, %107, %cst_47 {dimension_numbers = #tpu.dot_dimension_numbers<[1], [0], [0], [1], [0, 0, 1, 1], [], []>} : vector<32x32xbf16>, vector<32x32xbf16>, vector<32x32xf32> -> vector<32x32xf32>
    %c0_48 = arith.constant 0 : index
    %c0_49 = arith.constant 0 : index
    %110 = vector.load %arg14[%c0_48, %c0_49] : memref<32x1xf32, #tpu.memory_space<vmem>>, vector<32x1xf32>
    %111 = vector.broadcast %110 : vector<32x1xf32> to vector<32x32xf32>
    %112 = arith.addf %109, %111 : vector<32x32xf32>
    %113 = arith.truncf %112 : vector<32x32xf32> to vector<32x32xbf16>
    %114 = vector.extract_strided_slice %113 {offsets = [0, 0], sizes = [16, 32], strides = [1, 1]} : vector<32x32xbf16> to vector<16x32xbf16>
    %115 = vector.extract_strided_slice %113 {offsets = [16, 0], sizes = [16, 32], strides = [1, 1]} : vector<32x32xbf16> to vector<16x32xbf16>
    %116 = vector.extract_strided_slice %105 {offsets = [0, 0], sizes = [16, 8], strides = [1, 1]} : vector<16x16xbf16> to vector<16x8xbf16>
    %117 = vector.shape_cast %116 : vector<16x8xbf16> to vector<2x8x8xbf16>
    %118 = vector.extract_strided_slice %114 {offsets = [0, 0], sizes = [16, 16], strides = [1, 1]} : vector<16x32xbf16> to vector<16x16xbf16>
    %119 = vector.shape_cast %118 : vector<16x16xbf16> to vector<2x8x16xbf16>
    %120 = vector.extract_strided_slice %115 {offsets = [0, 0], sizes = [16, 16], strides = [1, 1]} : vector<16x32xbf16> to vector<16x16xbf16>
    %121 = vector.shape_cast %120 : vector<16x16xbf16> to vector<2x8x16xbf16>
    "tpu.trace_start"() <{level = 10 : i32, message = "hdr,hdt->hrt"}> : () -> ()
    %cst_50 = arith.constant dense<0.000000e+00> : vector<2x8x16xf32>
    %122 = tpu.matmul %117, %119, %cst_50 {dimension_numbers = #tpu.dot_dimension_numbers<[1], [1], [2], [2], [0, 0, 0, 2, 1, 2], [0], [0]>} : vector<2x8x8xbf16>, vector<2x8x16xbf16>, vector<2x8x16xf32> -> vector<2x8x16xf32>
    "tpu.trace_stop"() : () -> ()
    %cst_51 = arith.constant dense<0xFF800000> : vector<2x8xf32>
    %123 = vector.multi_reduction <maximumf>, %122, %cst_51 [2] : vector<2x8x16xf32> to vector<2x8xf32>
    %124 = vector.shape_cast %123 : vector<2x8xf32> to vector<2x8x1xf32>
    %125 = vector.broadcast %124 : vector<2x8x1xf32> to vector<2x8x16xf32>
    %126 = arith.subf %122, %125 : vector<2x8x16xf32>
    %127 = math.exp %126 : vector<2x8x16xf32>
    %cst_52 = arith.constant dense<0.000000e+00> : vector<2x8xf32>
    %128 = vector.multi_reduction <add>, %127, %cst_52 [2] : vector<2x8x16xf32> to vector<2x8xf32>
    %129 = vector.shape_cast %128 : vector<2x8xf32> to vector<2x8x1xf32>
    %130 = tpu.reciprocal %129 {approx = true} : vector<2x8x1xf32> -> vector<2x8x1xf32>
    %131 = vector.broadcast %130 : vector<2x8x1xf32> to vector<2x8x16xf32>
    %132 = arith.mulf %127, %131 : vector<2x8x16xf32>
    %133 = arith.truncf %132 : vector<2x8x16xf32> to vector<2x8x16xbf16>
    "tpu.trace_start"() <{level = 10 : i32, message = "hdt,hrt->hdr"}> : () -> ()
    %cst_53 = arith.constant dense<0.000000e+00> : vector<2x8x8xf32>
    %134 = tpu.matmul %121, %133, %cst_53 {dimension_numbers = #tpu.dot_dimension_numbers<[2], [2], [1], [1], [0, 0, 0, 1, 1, 1], [0], [0]>} : vector<2x8x16xbf16>, vector<2x8x16xbf16>, vector<2x8x8xf32> -> vector<2x8x8xf32>
    "tpu.trace_stop"() : () -> ()
    %135 = vector.shape_cast %134 : vector<2x8x8xf32> to vector<16x8xf32>
    %136 = vector.extract_strided_slice %105 {offsets = [0, 8], sizes = [16, 8], strides = [1, 1]} : vector<16x16xbf16> to vector<16x8xbf16>
    %137 = vector.shape_cast %136 : vector<16x8xbf16> to vector<2x8x8xbf16>
    %138 = vector.extract_strided_slice %114 {offsets = [0, 16], sizes = [16, 16], strides = [1, 1]} : vector<16x32xbf16> to vector<16x16xbf16>
    %139 = vector.shape_cast %138 : vector<16x16xbf16> to vector<2x8x16xbf16>
    %140 = vector.extract_strided_slice %115 {offsets = [0, 16], sizes = [16, 16], strides = [1, 1]} : vector<16x32xbf16> to vector<16x16xbf16>
    %141 = vector.shape_cast %140 : vector<16x16xbf16> to vector<2x8x16xbf16>
    "tpu.trace_start"() <{level = 10 : i32, message = "hdr,hdt->hrt"}> : () -> ()
    %cst_54 = arith.constant dense<0.000000e+00> : vector<2x8x16xf32>
    %142 = tpu.matmul %137, %139, %cst_54 {dimension_numbers = #tpu.dot_dimension_numbers<[1], [1], [2], [2], [0, 0, 0, 2, 1, 2], [0], [0]>} : vector<2x8x8xbf16>, vector<2x8x16xbf16>, vector<2x8x16xf32> -> vector<2x8x16xf32>
    "tpu.trace_stop"() : () -> ()
    %cst_55 = arith.constant dense<0xFF800000> : vector<2x8xf32>
    %143 = vector.multi_reduction <maximumf>, %142, %cst_55 [2] : vector<2x8x16xf32> to vector<2x8xf32>
    %144 = vector.shape_cast %143 : vector<2x8xf32> to vector<2x8x1xf32>
    %145 = vector.broadcast %144 : vector<2x8x1xf32> to vector<2x8x16xf32>
    %146 = arith.subf %142, %145 : vector<2x8x16xf32>
    %147 = math.exp %146 : vector<2x8x16xf32>
    %cst_56 = arith.constant dense<0.000000e+00> : vector<2x8xf32>
    %148 = vector.multi_reduction <add>, %147, %cst_56 [2] : vector<2x8x16xf32> to vector<2x8xf32>
    %149 = vector.shape_cast %148 : vector<2x8xf32> to vector<2x8x1xf32>
    %150 = tpu.reciprocal %149 {approx = true} : vector<2x8x1xf32> -> vector<2x8x1xf32>
    %151 = vector.broadcast %150 : vector<2x8x1xf32> to vector<2x8x16xf32>
    %152 = arith.mulf %147, %151 : vector<2x8x16xf32>
    %153 = arith.truncf %152 : vector<2x8x16xf32> to vector<2x8x16xbf16>
    "tpu.trace_start"() <{level = 10 : i32, message = "hdt,hrt->hdr"}> : () -> ()
    %cst_57 = arith.constant dense<0.000000e+00> : vector<2x8x8xf32>
    %154 = tpu.matmul %141, %153, %cst_57 {dimension_numbers = #tpu.dot_dimension_numbers<[2], [2], [1], [1], [0, 0, 0, 1, 1, 1], [0], [0]>} : vector<2x8x16xbf16>, vector<2x8x16xbf16>, vector<2x8x8xf32> -> vector<2x8x8xf32>
    "tpu.trace_stop"() : () -> ()
    %155 = vector.shape_cast %154 : vector<2x8x8xf32> to vector<16x8xf32>
    %156 = tpu.concatenate %135, %155 in 1 : vector<16x8xf32>, vector<16x8xf32> -> vector<16x16xf32>
    %157 = tpu.transpose %156, [1, 0] : vector<16x16xf32> -> vector<16x16xf32>
    %158 = arith.mulf %157, %90 : vector<16x16xf32>
    %159 = arith.truncf %158 : vector<16x16xf32> to vector<16x16xbf16>
    %c0_58 = arith.constant 0 : index
    %c0_59 = arith.constant 0 : index
    %160 = vector.load %arg8[%c0_58, %c0_59] : memref<16x32xbf16, #tpu.memory_space<vmem>>, vector<16x32xbf16>
    %cst_60 = arith.constant dense<0.000000e+00> : vector<16x32xf32>
    %161 = tpu.matmul %159, %160, %cst_60 {dimension_numbers = #tpu.dot_dimension_numbers<[1], [0], [0], [1], [0, 0, 1, 1], [], []>} : vector<16x16xbf16>, vector<16x32xbf16>, vector<16x32xf32> -> vector<16x32xf32>
    %c7 = arith.constant 7 : index
    %c0_61 = arith.constant 0 : index
    %162 = vector.load %arg12[%c7, %c0_61] : memref<13x32xf32, #tpu.memory_space<vmem>>, vector<1x32xf32>
    %163 = vector.broadcast %162 : vector<1x32xf32> to vector<16x32xf32>
    %164 = arith.addf %161, %163 : vector<16x32xf32>
    %c8 = arith.constant 8 : index
    %c0_62 = arith.constant 0 : index
    %165 = vector.load %arg12[%c8, %c0_62] : memref<13x32xf32, #tpu.memory_space<vmem>>, vector<1x32xf32>
    %166 = vector.broadcast %165 : vector<1x32xf32> to vector<16x32xf32>
    %167 = arith.mulf %166, %164 : vector<16x32xf32>
    %c9 = arith.constant 9 : index
    %c0_63 = arith.constant 0 : index
    %168 = vector.load %arg12[%c9, %c0_63] : memref<13x32xf32, #tpu.memory_space<vmem>>, vector<1x32xf32>
    %c10 = arith.constant 10 : index
    %c0_64 = arith.constant 0 : index
    %169 = vector.load %arg12[%c10, %c0_64] : memref<13x32xf32, #tpu.memory_space<vmem>>, vector<1x32xf32>
    %cst_65 = arith.constant dense<0.000000e+00> : vector<16xf32>
    %170 = vector.multi_reduction <add>, %167, %cst_65 [1] : vector<16x32xf32> to vector<16xf32>
    %171 = vector.shape_cast %170 : vector<16xf32> to vector<16x1xf32>
    %cst_66 = arith.constant 3.200000e+01 : f32
    %172 = vector.broadcast %cst_66 : f32 to vector<16x1xf32>
    %173 = arith.divf %171, %172 : vector<16x1xf32>
    %174 = vector.broadcast %173 : vector<16x1xf32> to vector<16x32xf32>
    %175 = arith.subf %167, %174 : vector<16x32xf32>
    %176 = arith.mulf %175, %175 : vector<16x32xf32>
    %cst_67 = arith.constant dense<0.000000e+00> : vector<16xf32>
    %177 = vector.multi_reduction <add>, %176, %cst_67 [1] : vector<16x32xf32> to vector<16xf32>
    %178 = vector.shape_cast %177 : vector<16xf32> to vector<16x1xf32>
    %cst_68 = arith.constant 3.200000e+01 : f32
    %179 = vector.broadcast %cst_68 : f32 to vector<16x1xf32>
    %180 = arith.divf %178, %179 : vector<16x1xf32>
    %181 = vector.broadcast %173 : vector<16x1xf32> to vector<16x32xf32>
    %182 = arith.subf %167, %181 : vector<16x32xf32>
    %cst_69 = arith.constant 9.99999974E-6 : f32
    %183 = vector.broadcast %cst_69 : f32 to vector<16x1xf32>
    %184 = arith.addf %180, %183 : vector<16x1xf32>
    %185 = math.rsqrt %184 : vector<16x1xf32>
    %186 = vector.broadcast %185 : vector<16x1xf32> to vector<16x32xf32>
    %187 = arith.mulf %182, %186 : vector<16x32xf32>
    %188 = vector.broadcast %168 : vector<1x32xf32> to vector<16x32xf32>
    %189 = arith.mulf %187, %188 : vector<16x32xf32>
    %190 = vector.broadcast %169 : vector<1x32xf32> to vector<16x32xf32>
    %191 = arith.addf %189, %190 : vector<16x32xf32>
    %192 = arith.mulf %191, %93 : vector<16x32xf32>
    %193 = arith.truncf %192 : vector<16x32xf32> to vector<16x32xbf16>
    %c0_70 = arith.constant 0 : index
    %c0_71 = arith.constant 0 : index
    %194 = vector.load %arg9[%c0_70, %c0_71] : memref<32x128xbf16, #tpu.memory_space<vmem>>, vector<32x128xbf16>
    %cst_72 = arith.constant dense<0.000000e+00> : vector<16x128xf32>
    %195 = tpu.matmul %193, %194, %cst_72 {dimension_numbers = #tpu.dot_dimension_numbers<[1], [0], [0], [1], [0, 0, 1, 1], [], []>} : vector<16x32xbf16>, vector<32x128xbf16>, vector<16x128xf32> -> vector<16x128xf32>
    %c0_73 = arith.constant 0 : index
    %c0_74 = arith.constant 0 : index
    %196 = vector.load %arg15[%c0_73, %c0_74] : memref<1x128xf32, #tpu.memory_space<vmem>>, vector<1x128xf32>
    %197 = vector.broadcast %196 : vector<1x128xf32> to vector<16x128xf32>
    %198 = arith.addf %195, %197 : vector<16x128xf32>
    %199 = arith.mulf %198, %198 : vector<16x128xf32>
    %200 = arith.mulf %198, %199 : vector<16x128xf32>
    %cst_75 = arith.constant 4.471500e-02 : f32
    %201 = vector.broadcast %cst_75 : f32 to vector<16x128xf32>
    %202 = arith.mulf %201, %200 : vector<16x128xf32>
    %203 = arith.addf %198, %202 : vector<16x128xf32>
    %cst_76 = arith.constant 0.797884583 : f32
    %204 = vector.broadcast %cst_76 : f32 to vector<16x128xf32>
    %205 = arith.mulf %204, %203 : vector<16x128xf32>
    %206 = math.tanh %205 : vector<16x128xf32>
    %cst_77 = arith.constant 1.000000e+00 : f32
    %207 = vector.broadcast %cst_77 : f32 to vector<16x128xf32>
    %208 = arith.addf %207, %206 : vector<16x128xf32>
    %cst_78 = arith.constant 5.000000e-01 : f32
    %209 = vector.broadcast %cst_78 : f32 to vector<16x128xf32>
    %210 = arith.mulf %209, %208 : vector<16x128xf32>
    %211 = arith.mulf %198, %210 : vector<16x128xf32>
    %212 = arith.mulf %211, %96 : vector<16x128xf32>
    %213 = arith.truncf %212 : vector<16x128xf32> to vector<16x128xbf16>
    %c0_79 = arith.constant 0 : index
    %c0_80 = arith.constant 0 : index
    %214 = vector.load %arg10[%c0_79, %c0_80] : memref<128x32xbf16, #tpu.memory_space<vmem>>, vector<128x32xbf16>
    %cst_81 = arith.constant dense<0.000000e+00> : vector<16x32xf32>
    %215 = tpu.matmul %213, %214, %cst_81 {dimension_numbers = #tpu.dot_dimension_numbers<[1], [0], [0], [1], [0, 0, 1, 1], [], []>} : vector<16x128xbf16>, vector<128x32xbf16>, vector<16x32xf32> -> vector<16x32xf32>
    %c11 = arith.constant 11 : index
    %c0_82 = arith.constant 0 : index
    %216 = vector.load %arg12[%c11, %c0_82] : memref<13x32xf32, #tpu.memory_space<vmem>>, vector<1x32xf32>
    %217 = vector.broadcast %216 : vector<1x32xf32> to vector<16x32xf32>
    %218 = arith.addf %215, %217 : vector<16x32xf32>
    %c12 = arith.constant 12 : index
    %c0_83 = arith.constant 0 : index
    %219 = vector.load %arg12[%c12, %c0_83] : memref<13x32xf32, #tpu.memory_space<vmem>>, vector<1x32xf32>
    %220 = vector.broadcast %219 : vector<1x32xf32> to vector<16x32xf32>
    %221 = arith.mulf %220, %218 : vector<16x32xf32>
    %222 = arith.addf %167, %221 : vector<16x32xf32>
    %223 = arith.truncf %222 : vector<16x32xf32> to vector<16x32xbf16>
    %c0_84 = arith.constant 0 : index
    %c0_85 = arith.constant 0 : index
    %224 = vector.load %arg11[%c0_84, %c0_85] : memref<32x128xbf16, #tpu.memory_space<vmem>>, vector<32x128xbf16>
    %cst_86 = arith.constant dense<0.000000e+00> : vector<16x128xf32>
    %225 = tpu.matmul %223, %224, %cst_86 {dimension_numbers = #tpu.dot_dimension_numbers<[1], [0], [0], [1], [0, 0, 1, 1], [], []>} : vector<16x32xbf16>, vector<32x128xbf16>, vector<16x128xf32> -> vector<16x128xf32>
    %c0_87 = arith.constant 0 : index
    %c0_88 = arith.constant 0 : index
    %226 = vector.load %arg16[%c0_87, %c0_88] : memref<1x128xf32, #tpu.memory_space<vmem>>, vector<1x128xf32>
    %227 = vector.broadcast %226 : vector<1x128xf32> to vector<16x128xf32>
    %228 = arith.addf %225, %227 : vector<16x128xf32>
    %229 = vector.shape_cast %228 : vector<16x128xf32> to vector<2x8x128xf32>
    %c0_89 = arith.constant 0 : index
    %c0_90 = arith.constant 0 : index
    %c0_91 = arith.constant 0 : index
    %230 = vector.load %arg17[%c0_89, %c0_90, %c0_91] : memref<2x8x128xf32, #tpu.memory_space<vmem>>, vector<2x8x128xf32>
    tpu.vector_store %arg17[%c0_89, %c0_90, %c0_91], %229 {strides = array<i32>} : memref<2x8x128xf32, #tpu.memory_space<vmem>>, vector<2x8x128xf32>,
    return
  }
  func.func @transform_0(%arg0: i32) -> (i32, i32, i32) {
    %c0_i32 = arith.constant 0 : i32
    %c0_i32_0 = arith.constant 0 : i32
    %c0_i32_1 = arith.constant 0 : i32
    return %arg0, %c0_i32, %c0_i32_0 : i32, i32, i32
  }
  func.func @transform_1(%arg0: i32) -> (i32, i32, i32) {
    %c0_i32 = arith.constant 0 : i32
    %c0_i32_0 = arith.constant 0 : i32
    %c0_i32_1 = arith.constant 0 : i32
    return %arg0, %c0_i32, %c0_i32_0 : i32, i32, i32
  }
  func.func @transform_2(%arg0: i32) -> (i32, i32, i32) {
    %c0_i32 = arith.constant 0 : i32
    %c0_i32_0 = arith.constant 0 : i32
    %c0_i32_1 = arith.constant 0 : i32
    return %arg0, %c0_i32, %c0_i32_0 : i32, i32, i32
  }
  func.func @transform_3(%arg0: i32) -> (i32, i32) {
    %c0_i32 = arith.constant 0 : i32
    %c0_i32_0 = arith.constant 0 : i32
    %c0_i32_1 = arith.constant 0 : i32
    return %c0_i32, %c0_i32_0 : i32, i32
  }
  func.func @transform_4(%arg0: i32) -> (i32, i32) {
    %c0_i32 = arith.constant 0 : i32
    %c0_i32_0 = arith.constant 0 : i32
    %c0_i32_1 = arith.constant 0 : i32
    return %c0_i32, %c0_i32_0 : i32, i32
  }
  func.func @transform_5(%arg0: i32) -> (i32, i32) {
    %c0_i32 = arith.constant 0 : i32
    %c0_i32_0 = arith.constant 0 : i32
    %c0_i32_1 = arith.constant 0 : i32
    return %c0_i32, %c0_i32_0 : i32, i32
  }
  func.func @transform_6(%arg0: i32) -> (i32, i32) {
    %c0_i32 = arith.constant 0 : i32
    %c0_i32_0 = arith.constant 0 : i32
    %c0_i32_1 = arith.constant 0 : i32
    return %c0_i32, %c0_i32_0 : i32, i32
  }
  func.func @transform_7(%arg0: i32) -> (i32, i32) {
    %c0_i32 = arith.constant 0 : i32
    %c0_i32_0 = arith.constant 0 : i32
    %c0_i32_1 = arith.constant 0 : i32
    return %c0_i32, %c0_i32_0 : i32, i32
  }
  func.func @transform_8(%arg0: i32) -> (i32, i32) {
    %c0_i32 = arith.constant 0 : i32
    %c0_i32_0 = arith.constant 0 : i32
    %c0_i32_1 = arith.constant 0 : i32
    return %c0_i32, %c0_i32_0 : i32, i32
  }
  func.func @transform_9(%arg0: i32) -> (i32, i32) {
    %c0_i32 = arith.constant 0 : i32
    %c0_i32_0 = arith.constant 0 : i32
    %c0_i32_1 = arith.constant 0 : i32
    return %c0_i32, %c0_i32_0 : i32, i32
  }
  func.func @transform_10(%arg0: i32) -> (i32, i32) {
    %c0_i32 = arith.constant 0 : i32
    %c0_i32_0 = arith.constant 0 : i32
    %c0_i32_1 = arith.constant 0 : i32
    return %c0_i32, %c0_i32_0 : i32, i32
  }
  func.func @transform_11(%arg0: i32) -> (i32, i32) {
    %c0_i32 = arith.constant 0 : i32
    %c0_i32_0 = arith.constant 0 : i32
    %c0_i32_1 = arith.constant 0 : i32
    return %c0_i32, %c0_i32_0 : i32, i32
  }
  func.func @transform_12(%arg0: i32) -> (i32, i32) {
    %c0_i32 = arith.constant 0 : i32
    %c0_i32_0 = arith.constant 0 : i32
    %c0_i32_1 = arith.constant 0 : i32
    return %c0_i32, %c0_i32_0 : i32, i32
  }
  func.func @transform_13(%arg0: i32) -> (i32, i32) {
    %c0_i32 = arith.constant 0 : i32
    %c0_i32_0 = arith.constant 0 : i32
    %c0_i32_1 = arith.constant 0 : i32
    return %c0_i32, %c0_i32_0 : i32, i32
  }
  func.func @transform_14(%arg0: i32) -> (i32, i32) {
    %c0_i32 = arith.constant 0 : i32
    %c0_i32_0 = arith.constant 0 : i32
    %c0_i32_1 = arith.constant 0 : i32
    return %c0_i32, %c0_i32_0 : i32, i32
  }
  func.func @transform_15(%arg0: i32) -> (i32, i32) {
    %c0_i32 = arith.constant 0 : i32
    %c0_i32_0 = arith.constant 0 : i32
    %c0_i32_1 = arith.constant 0 : i32
    return %c0_i32, %c0_i32_0 : i32, i32
  }
  func.func @transform_16(%arg0: i32) -> (i32, i32, i32) {
    %c0_i32 = arith.constant 0 : i32
    %c0_i32_0 = arith.constant 0 : i32
    %c0_i32_1 = arith.constant 0 : i32
    return %arg0, %c0_i32, %c0_i32_0 : i32, i32, i32
  }
}

module attributes {stable_mosaic.version = 11 : i64} {
  func.func @read_in_student_kernel(%arg0: i32, %arg1: memref<2x16x64xbf16, #tpu.memory_space<vmem>>, %arg2: memref<2x8x32xf32, #tpu.memory_space<vmem>>, %arg3: memref<2x8x16xbf16, #tpu.memory_space<vmem>>, %arg4: memref<64x32xbf16, #tpu.memory_space<vmem>>, %arg5: memref<16x512xbf16, #tpu.memory_space<vmem>>, %arg6: memref<16x32xbf16, #tpu.memory_space<vmem>>, %arg7: memref<32x32xbf16, #tpu.memory_space<vmem>>, %arg8: memref<16x32xbf16, #tpu.memory_space<vmem>>, %arg9: memref<32x128xbf16, #tpu.memory_space<vmem>>, %arg10: memref<128x32xbf16, #tpu.memory_space<vmem>>, %arg11: memref<32x128xbf16, #tpu.memory_space<vmem>>, %arg12: memref<13x32xf32, #tpu.memory_space<vmem>>, %arg13: memref<16x1xf32, #tpu.memory_space<vmem>>, %arg14: memref<32x1xf32, #tpu.memory_space<vmem>>, %arg15: memref<1x128xf32, #tpu.memory_space<vmem>>, %arg16: memref<1x128xf32, #tpu.memory_space<vmem>>, %arg17: memref<2x8x128xf32, #tpu.memory_space<vmem>>) attributes {dimension_semantics = [#tpu.dimension_semantics<parallel>], iteration_bounds = array<i64: 1>, scalar_prefetch = 0 : i64, scratch_operands = 0 : i64, tpu.core_type = #tpu.core_type<tc>, window_params = [{transform_indices = @transform_0, window_bounds = array<i64: 2, 16, 64>}, {transform_indices = @transform_1, window_bounds = array<i64: 2, 8, 32>}, {transform_indices = @transform_2, window_bounds = array<i64: 2, 8, 16>}, {pipeline_mode = #tpu.pipeline_mode<synchronous>, transform_indices = @transform_3, window_bounds = array<i64: 64, 32>}, {pipeline_mode = #tpu.pipeline_mode<synchronous>, transform_indices = @transform_4, window_bounds = array<i64: 16, 512>}, {pipeline_mode = #tpu.pipeline_mode<synchronous>, transform_indices = @transform_5, window_bounds = array<i64: 16, 32>}, {pipeline_mode = #tpu.pipeline_mode<synchronous>, transform_indices = @transform_6, window_bounds = array<i64: 32, 32>}, {pipeline_mode = #tpu.pipeline_mode<synchronous>, transform_indices = @transform_7, window_bounds = array<i64: 16, 32>}, {pipeline_mode = #tpu.pipeline_mode<synchronous>, transform_indices = @transform_8, window_bounds = array<i64: 32, 128>}, {pipeline_mode = #tpu.pipeline_mode<synchronous>, transform_indices = @transform_9, window_bounds = array<i64: 128, 32>}, {pipeline_mode = #tpu.pipeline_mode<synchronous>, transform_indices = @transform_10, window_bounds = array<i64: 32, 128>}, {pipeline_mode = #tpu.pipeline_mode<synchronous>, transform_indices = @transform_11, window_bounds = array<i64: 13, 32>}, {pipeline_mode = #tpu.pipeline_mode<synchronous>, transform_indices = @transform_12, window_bounds = array<i64: 16, 1>}, {pipeline_mode = #tpu.pipeline_mode<synchronous>, transform_indices = @transform_13, window_bounds = array<i64: 32, 1>}, {pipeline_mode = #tpu.pipeline_mode<synchronous>, transform_indices = @transform_14, window_bounds = array<i64: 1, 128>}, {pipeline_mode = #tpu.pipeline_mode<synchronous>, transform_indices = @transform_15, window_bounds = array<i64: 1, 128>}, {transform_indices = @transform_16, window_bounds = array<i64: 2, 8, 128>}]} {
    %c0 = arith.constant 0 : index
    %c0_0 = arith.constant 0 : index
    %c0_1 = arith.constant 0 : index
    %0 = vector.load %arg1[%c0, %c0_0, %c0_1] : memref<2x16x64xbf16, #tpu.memory_space<vmem>>, vector<2x16x64xbf16>
    %1 = vector.shape_cast %0 : vector<2x16x64xbf16> to vector<32x64xbf16>
    %c0_2 = arith.constant 0 : index
    %c0_3 = arith.constant 0 : index
    %c0_4 = arith.constant 0 : index
    %2 = vector.load %arg2[%c0_2, %c0_3, %c0_4] : memref<2x8x32xf32, #tpu.memory_space<vmem>>, vector<2x8x32xf32>
    %3 = vector.shape_cast %2 : vector<2x8x32xf32> to vector<16x32xf32>
    %c0_5 = arith.constant 0 : index
    %c0_6 = arith.constant 0 : index
    %c0_7 = arith.constant 0 : index
    %4 = vector.load %arg3[%c0_5, %c0_6, %c0_7] : memref<2x8x16xbf16, #tpu.memory_space<vmem>>, vector<2x8x16xbf16>
    %5 = vector.shape_cast %4 : vector<2x8x16xbf16> to vector<16x16xbf16>
    %c0_8 = arith.constant 0 : index
    %c0_9 = arith.constant 0 : index
    %6 = vector.load %arg4[%c0_8, %c0_9] : memref<64x32xbf16, #tpu.memory_space<vmem>>, vector<64x32xbf16>
    %cst = arith.constant dense<0.000000e+00> : vector<32x32xf32>
    %7 = tpu.matmul %1, %6, %cst {dimension_numbers = #tpu.dot_dimension_numbers<[1], [0], [0], [1], [0, 0, 1, 1], [], []>} : vector<32x64xbf16>, vector<64x32xbf16>, vector<32x32xf32> -> vector<32x32xf32>
    %c0_10 = arith.constant 0 : index
    %c0_11 = arith.constant 0 : index
    %8 = vector.load %arg12[%c0_10, %c0_11] : memref<13x32xf32, #tpu.memory_space<vmem>>, vector<1x32xf32>
    %9 = vector.broadcast %8 : vector<1x32xf32> to vector<32x32xf32>
    %10 = arith.addf %7, %9 : vector<32x32xf32>
    %c1 = arith.constant 1 : index
    %c0_12 = arith.constant 0 : index
    %11 = vector.load %arg12[%c1, %c0_12] : memref<13x32xf32, #tpu.memory_space<vmem>>, vector<1x32xf32>
    %c2 = arith.constant 2 : index
    %c0_13 = arith.constant 0 : index
    %12 = vector.load %arg12[%c2, %c0_13] : memref<13x32xf32, #tpu.memory_space<vmem>>, vector<1x32xf32>
    %cst_14 = arith.constant dense<0.000000e+00> : vector<32xf32>
    %13 = vector.multi_reduction <add>, %10, %cst_14 [1] : vector<32x32xf32> to vector<32xf32>
    %14 = vector.shape_cast %13 : vector<32xf32> to vector<32x1xf32>
    %cst_15 = arith.constant 3.200000e+01 : f32
    %15 = vector.broadcast %cst_15 : f32 to vector<32x1xf32>
    %16 = arith.divf %14, %15 : vector<32x1xf32>
    %17 = vector.broadcast %16 : vector<32x1xf32> to vector<32x32xf32>
    %18 = arith.subf %10, %17 : vector<32x32xf32>
    %19 = arith.mulf %18, %18 : vector<32x32xf32>
    %cst_16 = arith.constant dense<0.000000e+00> : vector<32xf32>
    %20 = vector.multi_reduction <add>, %19, %cst_16 [1] : vector<32x32xf32> to vector<32xf32>
    %21 = vector.shape_cast %20 : vector<32xf32> to vector<32x1xf32>
    %cst_17 = arith.constant 3.200000e+01 : f32
    %22 = vector.broadcast %cst_17 : f32 to vector<32x1xf32>
    %23 = arith.divf %21, %22 : vector<32x1xf32>
    %24 = vector.broadcast %16 : vector<32x1xf32> to vector<32x32xf32>
    %25 = arith.subf %10, %24 : vector<32x32xf32>
    %cst_18 = arith.constant 9.99999997E-7 : f32
    %26 = vector.broadcast %cst_18 : f32 to vector<32x1xf32>
    %27 = arith.addf %23, %26 : vector<32x1xf32>
    %28 = math.rsqrt %27 : vector<32x1xf32>
    %29 = vector.broadcast %28 : vector<32x1xf32> to vector<32x32xf32>
    %30 = arith.mulf %25, %29 : vector<32x32xf32>
    %31 = vector.broadcast %11 : vector<1x32xf32> to vector<32x32xf32>
    %32 = arith.mulf %30, %31 : vector<32x32xf32>
    %33 = vector.broadcast %12 : vector<1x32xf32> to vector<32x32xf32>
    %34 = arith.addf %32, %33 : vector<32x32xf32>
    %c3 = arith.constant 3 : index
    %c0_19 = arith.constant 0 : index
    %35 = vector.load %arg12[%c3, %c0_19] : memref<13x32xf32, #tpu.memory_space<vmem>>, vector<1x32xf32>
    %c4 = arith.constant 4 : index
    %c0_20 = arith.constant 0 : index
    %36 = vector.load %arg12[%c4, %c0_20] : memref<13x32xf32, #tpu.memory_space<vmem>>, vector<1x32xf32>
    %cst_21 = arith.constant dense<0.000000e+00> : vector<16xf32>
    %37 = vector.multi_reduction <add>, %3, %cst_21 [1] : vector<16x32xf32> to vector<16xf32>
    %38 = vector.shape_cast %37 : vector<16xf32> to vector<16x1xf32>
    %cst_22 = arith.constant 3.200000e+01 : f32
    %39 = vector.broadcast %cst_22 : f32 to vector<16x1xf32>
    %40 = arith.divf %38, %39 : vector<16x1xf32>
    %41 = vector.broadcast %40 : vector<16x1xf32> to vector<16x32xf32>
    %42 = arith.subf %3, %41 : vector<16x32xf32>
    %43 = arith.mulf %42, %42 : vector<16x32xf32>
    %cst_23 = arith.constant dense<0.000000e+00> : vector<16xf32>
    %44 = vector.multi_reduction <add>, %43, %cst_23 [1] : vector<16x32xf32> to vector<16xf32>
    %45 = vector.shape_cast %44 : vector<16xf32> to vector<16x1xf32>
    %cst_24 = arith.constant 3.200000e+01 : f32
    %46 = vector.broadcast %cst_24 : f32 to vector<16x1xf32>
    %47 = arith.divf %45, %46 : vector<16x1xf32>
    %48 = vector.broadcast %40 : vector<16x1xf32> to vector<16x32xf32>
    %49 = arith.subf %3, %48 : vector<16x32xf32>
    %cst_25 = arith.constant 9.99999974E-6 : f32
    %50 = vector.broadcast %cst_25 : f32 to vector<16x1xf32>
    %51 = arith.addf %47, %50 : vector<16x1xf32>
    %52 = math.rsqrt %51 : vector<16x1xf32>
    %53 = vector.broadcast %52 : vector<16x1xf32> to vector<16x32xf32>
    %54 = arith.mulf %49, %53 : vector<16x32xf32>
    %55 = vector.broadcast %35 : vector<1x32xf32> to vector<16x32xf32>
    %56 = arith.mulf %54, %55 : vector<16x32xf32>
    %57 = vector.broadcast %36 : vector<1x32xf32> to vector<16x32xf32>
    %58 = arith.addf %56, %57 : vector<16x32xf32>
    %c5 = arith.constant 5 : index
    %c0_26 = arith.constant 0 : index
    %59 = vector.load %arg12[%c5, %c0_26] : memref<13x32xf32, #tpu.memory_space<vmem>>, vector<1x32xf32>
    %c6 = arith.constant 6 : index
    %c0_27 = arith.constant 0 : index
    %60 = vector.load %arg12[%c6, %c0_27] : memref<13x32xf32, #tpu.memory_space<vmem>>, vector<1x32xf32>
    %cst_28 = arith.constant dense<0.000000e+00> : vector<32xf32>
    %61 = vector.multi_reduction <add>, %34, %cst_28 [1] : vector<32x32xf32> to vector<32xf32>
    %62 = vector.shape_cast %61 : vector<32xf32> to vector<32x1xf32>
    %cst_29 = arith.constant 3.200000e+01 : f32
    %63 = vector.broadcast %cst_29 : f32 to vector<32x1xf32>
    %64 = arith.divf %62, %63 : vector<32x1xf32>
    %65 = vector.broadcast %64 : vector<32x1xf32> to vector<32x32xf32>
    %66 = arith.subf %34, %65 : vector<32x32xf32>
    %67 = arith.mulf %66, %66 : vector<32x32xf32>
    %cst_30 = arith.constant dense<0.000000e+00> : vector<32xf32>
    %68 = vector.multi_reduction <add>, %67, %cst_30 [1] : vector<32x32xf32> to vector<32xf32>
    %69 = vector.shape_cast %68 : vector<32xf32> to vector<32x1xf32>
    %cst_31 = arith.constant 3.200000e+01 : f32
    %70 = vector.broadcast %cst_31 : f32 to vector<32x1xf32>
    %71 = arith.divf %69, %70 : vector<32x1xf32>
    %72 = vector.broadcast %64 : vector<32x1xf32> to vector<32x32xf32>
    %73 = arith.subf %34, %72 : vector<32x32xf32>
    %cst_32 = arith.constant 9.99999974E-6 : f32
    %74 = vector.broadcast %cst_32 : f32 to vector<32x1xf32>
    %75 = arith.addf %71, %74 : vector<32x1xf32>
    %76 = math.rsqrt %75 : vector<32x1xf32>
    %77 = vector.broadcast %76 : vector<32x1xf32> to vector<32x32xf32>
    %78 = arith.mulf %73, %77 : vector<32x32xf32>
    %79 = vector.broadcast %59 : vector<1x32xf32> to vector<32x32xf32>
    %80 = arith.mulf %78, %79 : vector<32x32xf32>
    %81 = vector.broadcast %60 : vector<1x32xf32> to vector<32x32xf32>
    %82 = arith.addf %80, %81 : vector<32x32xf32>
    %c0_33 = arith.constant 0 : index
    %c0_34 = arith.constant 0 : index
    %83 = vector.load %arg5[%c0_33, %c0_34] : memref<16x512xbf16, #tpu.memory_space<vmem>>, vector<16x512xbf16>
    %cst_35 = arith.constant dense<0.000000e+00> : vector<16x512xf32>
    %84 = tpu.matmul %5, %83, %cst_35 {dimension_numbers = #tpu.dot_dimension_numbers<[1], [0], [0], [1], [0, 0, 1, 1], [], []>} : vector<16x16xbf16>, vector<16x512xbf16>, vector<16x512xf32> -> vector<16x512xf32>
    %85 = vector.extract_strided_slice %84 {offsets = [0, 0], sizes = [16, 32], strides = [1, 1]} : vector<16x512xf32> to vector<16x32xf32>
    %cst_36 = arith.constant 1.000000e+00 : f32
    %86 = vector.broadcast %cst_36 : f32 to vector<16x32xf32>
    %87 = arith.addf %86, %85 : vector<16x32xf32>
    %88 = vector.extract_strided_slice %84 {offsets = [0, 128], sizes = [16, 16], strides = [1, 1]} : vector<16x512xf32> to vector<16x16xf32>
    %cst_37 = arith.constant 1.000000e+00 : f32
    %89 = vector.broadcast %cst_37 : f32 to vector<16x16xf32>
    %90 = arith.addf %89, %88 : vector<16x16xf32>
    %91 = vector.extract_strided_slice %84 {offsets = [0, 256], sizes = [16, 32], strides = [1, 1]} : vector<16x512xf32> to vector<16x32xf32>
    %cst_38 = arith.constant 1.000000e+00 : f32
    %92 = vector.broadcast %cst_38 : f32 to vector<16x32xf32>
    %93 = arith.addf %92, %91 : vector<16x32xf32>
    %94 = vector.extract_strided_slice %84 {offsets = [0, 384], sizes = [16, 128], strides = [1, 1]} : vector<16x512xf32> to vector<16x128xf32>
    %cst_39 = arith.constant 1.000000e+00 : f32
    %95 = vector.broadcast %cst_39 : f32 to vector<16x128xf32>
    %96 = arith.addf %95, %94 : vector<16x128xf32>
    %97 = arith.mulf %58, %87 : vector<16x32xf32>
    %c0_40 = arith.constant 0 : index
    %c0_41 = arith.constant 0 : index
    %98 = vector.load %arg6[%c0_40, %c0_41] : memref<16x32xbf16, #tpu.memory_space<vmem>>, vector<16x32xbf16>
    %99 = tpu.transpose %97, [1, 0] : vector<16x32xf32> -> vector<32x16xf32>
    %100 = arith.truncf %99 : vector<32x16xf32> to vector<32x16xbf16>
    %cst_42 = arith.constant dense<0.000000e+00> : vector<16x16xf32>
    %101 = tpu.matmul %98, %100, %cst_42 {dimension_numbers = #tpu.dot_dimension_numbers<[1], [0], [0], [1], [0, 0, 1, 1], [], []>} : vector<16x32xbf16>, vector<32x16xbf16>, vector<16x16xf32> -> vector<16x16xf32>
    %c0_43 = arith.constant 0 : index
    %c0_44 = arith.constant 0 : index
    %102 = vector.load %arg13[%c0_43, %c0_44] : memref<16x1xf32, #tpu.memory_space<vmem>>, vector<16x1xf32>
    %103 = vector.broadcast %102 : vector<16x1xf32> to vector<16x16xf32>
    %104 = arith.addf %101, %103 : vector<16x16xf32>
    %105 = arith.truncf %104 : vector<16x16xf32> to vector<16x16xbf16>
    %106 = tpu.transpose %82, [1, 0] : vector<32x32xf32> -> vector<32x32xf32>
    %107 = arith.truncf %106 : vector<32x32xf32> to vector<32x32xbf16>
    %c0_45 = arith.constant 0 : index
    %c0_46 = arith.constant 0 : index
    %108 = vector.load %arg7[%c0_45, %c0_46] : memref<32x32xbf16, #tpu.memory_space<vmem>>, vector<32x32xbf16>
    %cst_47 = arith.constant dense<0.000000e+00> : vector<32x32xf32>
    %109 = tpu.matmul %108, %107, %cst_47 {dimension_numbers = #tpu.dot_dimension_numbers<[1], [0], [0], [1], [0, 0, 1, 1], [], []>} : vector<32x32xbf16>, vector<32x32xbf16>, vector<32x32xf32> -> vector<32x32xf32>
    %c0_48 = arith.constant 0 : index
    %c0_49 = arith.constant 0 : index
    %110 = vector.load %arg14[%c0_48, %c0_49] : memref<32x1xf32, #tpu.memory_space<vmem>>, vector<32x1xf32>
    %111 = vector.broadcast %110 : vector<32x1xf32> to vector<32x32xf32>
    %112 = arith.addf %109, %111 : vector<32x32xf32>
    %113 = arith.truncf %112 : vector<32x32xf32> to vector<32x32xbf16>
    %114 = vector.extract_strided_slice %113 {offsets = [0, 0], sizes = [16, 32], strides = [1, 1]} : vector<32x32xbf16> to vector<16x32xbf16>
    %115 = vector.extract_strided_slice %113 {offsets = [16, 0], sizes = [16, 32], strides = [1, 1]} : vector<32x32xbf16> to vector<16x32xbf16>
    %116 = vector.extract_strided_slice %105 {offsets = [0, 0], sizes = [16, 8], strides = [1, 1]} : vector<16x16xbf16> to vector<16x8xbf16>
    %117 = vector.shape_cast %116 : vector<16x8xbf16> to vector<2x8x8xbf16>
    %118 = vector.extract_strided_slice %114 {offsets = [0, 0], sizes = [16, 16], strides = [1, 1]} : vector<16x32xbf16> to vector<16x16xbf16>
    %119 = vector.shape_cast %118 : vector<16x16xbf16> to vector<2x8x16xbf16>
    %120 = vector.extract_strided_slice %115 {offsets = [0, 0], sizes = [16, 16], strides = [1, 1]} : vector<16x32xbf16> to vector<16x16xbf16>
    %121 = vector.shape_cast %120 : vector<16x16xbf16> to vector<2x8x16xbf16>
    "tpu.trace_start"() <{level = 10 : i32, message = "hdr,hdt->hrt"}> : () -> ()
    %cst_50 = arith.constant dense<0.000000e+00> : vector<2x8x16xf32>
    %122 = tpu.matmul %117, %119, %cst_50 {dimension_numbers = #tpu.dot_dimension_numbers<[1], [1], [2], [2], [0, 0, 0, 2, 1, 2], [0], [0]>} : vector<2x8x8xbf16>, vector<2x8x16xbf16>, vector<2x8x16xf32> -> vector<2x8x16xf32>
    "tpu.trace_stop"() : () -> ()
    %cst_51 = arith.constant dense<0xFF800000> : vector<2x8xf32>
    %123 = vector.multi_reduction <maximumf>, %122, %cst_51 [2] : vector<2x8x16xf32> to vector<2x8xf32>
    %124 = vector.shape_cast %123 : vector<2x8xf32> to vector<2x8x1xf32>
    %125 = vector.broadcast %124 : vector<2x8x1xf32> to vector<2x8x16xf32>
    %126 = arith.subf %122, %125 : vector<2x8x16xf32>
    %127 = math.exp %126 : vector<2x8x16xf32>
    %cst_52 = arith.constant dense<0.000000e+00> : vector<2x8xf32>
    %128 = vector.multi_reduction <add>, %127, %cst_52 [2] : vector<2x8x16xf32> to vector<2x8xf32>
    %129 = vector.shape_cast %128 : vector<2x8xf32> to vector<2x8x1xf32>
    %130 = tpu.reciprocal %129 {approx = true} : vector<2x8x1xf32> -> vector<2x8x1xf32>
    %131 = vector.broadcast %130 : vector<2x8x1xf32> to vector<2x8x16xf32>
    %132 = arith.mulf %127, %131 : vector<2x8x16xf32>
    %133 = arith.truncf %132 : vector<2x8x16xf32> to vector<2x8x16xbf16>
    "tpu.trace_start"() <{level = 10 : i32, message = "hdt,hrt->hdr"}> : () -> ()
    %cst_53 = arith.constant dense<0.000000e+00> : vector<2x8x8xf32>
    %134 = tpu.matmul %121, %133, %cst_53 {dimension_numbers = #tpu.dot_dimension_numbers<[2], [2], [1], [1], [0, 0, 0, 1, 1, 1], [0], [0]>} : vector<2x8x16xbf16>, vector<2x8x16xbf16>, vector<2x8x8xf32> -> vector<2x8x8xf32>
    "tpu.trace_stop"() : () -> ()
    %135 = vector.shape_cast %134 : vector<2x8x8xf32> to vector<16x8xf32>
    %136 = vector.extract_strided_slice %105 {offsets = [0, 8], sizes = [16, 8], strides = [1, 1]} : vector<16x16xbf16> to vector<16x8xbf16>
    %137 = vector.shape_cast %136 : vector<16x8xbf16> to vector<2x8x8xbf16>
    %138 = vector.extract_strided_slice %114 {offsets = [0, 16], sizes = [16, 16], strides = [1, 1]} : vector<16x32xbf16> to vector<16x16xbf16>
    %139 = vector.shape_cast %138 : vector<16x16xbf16> to vector<2x8x16xbf16>
    %140 = vector.extract_strided_slice %115 {offsets = [0, 16], sizes = [16, 16], strides = [1, 1]} : vector<16x32xbf16> to vector<16x16xbf16>
    %141 = vector.shape_cast %140 : vector<16x16xbf16> to vector<2x8x16xbf16>
    "tpu.trace_start"() <{level = 10 : i32, message = "hdr,hdt->hrt"}> : () -> ()
    %cst_54 = arith.constant dense<0.000000e+00> : vector<2x8x16xf32>
    %142 = tpu.matmul %137, %139, %cst_54 {dimension_numbers = #tpu.dot_dimension_numbers<[1], [1], [2], [2], [0, 0, 0, 2, 1, 2], [0], [0]>} : vector<2x8x8xbf16>, vector<2x8x16xbf16>, vector<2x8x16xf32> -> vector<2x8x16xf32>
    "tpu.trace_stop"() : () -> ()
    %cst_55 = arith.constant dense<0xFF800000> : vector<2x8xf32>
    %143 = vector.multi_reduction <maximumf>, %142, %cst_55 [2] : vector<2x8x16xf32> to vector<2x8xf32>
    %144 = vector.shape_cast %143 : vector<2x8xf32> to vector<2x8x1xf32>
    %145 = vector.broadcast %144 : vector<2x8x1xf32> to vector<2x8x16xf32>
    %146 = arith.subf %142, %145 : vector<2x8x16xf32>
    %147 = math.exp %146 : vector<2x8x16xf32>
    %cst_56 = arith.constant dense<0.000000e+00> : vector<2x8xf32>
    %148 = vector.multi_reduction <add>, %147, %cst_56 [2] : vector<2x8x16xf32> to vector<2x8xf32>
    %149 = vector.shape_cast %148 : vector<2x8xf32> to vector<2x8x1xf32>
    %150 = tpu.reciprocal %149 {approx = true} : vector<2x8x1xf32> -> vector<2x8x1xf32>
    %151 = vector.broadcast %150 : vector<2x8x1xf32> to vector<2x8x16xf32>
    %152 = arith.mulf %147, %151 : vector<2x8x16xf32>
    %153 = arith.truncf %152 : vector<2x8x16xf32> to vector<2x8x16xbf16>
    "tpu.trace_start"() <{level = 10 : i32, message = "hdt,hrt->hdr"}> : () -> ()
    %cst_57 = arith.constant dense<0.000000e+00> : vector<2x8x8xf32>
    %154 = tpu.matmul %141, %153, %cst_57 {dimension_numbers = #tpu.dot_dimension_numbers<[2], [2], [1], [1], [0, 0, 0, 1, 1, 1], [0], [0]>} : vector<2x8x16xbf16>, vector<2x8x16xbf16>, vector<2x8x8xf32> -> vector<2x8x8xf32>
    "tpu.trace_stop"() : () -> ()
    %155 = vector.shape_cast %154 : vector<2x8x8xf32> to vector<16x8xf32>
    %156 = tpu.concatenate %135, %155 in 1 : vector<16x8xf32>, vector<16x8xf32> -> vector<16x16xf32>
    %157 = tpu.transpose %156, [1, 0] : vector<16x16xf32> -> vector<16x16xf32>
    %158 = arith.mulf %157, %90 : vector<16x16xf32>
    %159 = arith.truncf %158 : vector<16x16xf32> to vector<16x16xbf16>
    %c0_58 = arith.constant 0 : index
    %c0_59 = arith.constant 0 : index
    %160 = vector.load %arg8[%c0_58, %c0_59] : memref<16x32xbf16, #tpu.memory_space<vmem>>, vector<16x32xbf16>
    %cst_60 = arith.constant dense<0.000000e+00> : vector<16x32xf32>
    %161 = tpu.matmul %159, %160, %cst_60 {dimension_numbers = #tpu.dot_dimension_numbers<[1], [0], [0], [1], [0, 0, 1, 1], [], []>} : vector<16x16xbf16>, vector<16x32xbf16>, vector<16x32xf32> -> vector<16x32xf32>
    %c7 = arith.constant 7 : index
    %c0_61 = arith.constant 0 : index
    %162 = vector.load %arg12[%c7, %c0_61] : memref<13x32xf32, #tpu.memory_space<vmem>>, vector<1x32xf32>
    %163 = vector.broadcast %162 : vector<1x32xf32> to vector<16x32xf32>
    %164 = arith.addf %161, %163 : vector<16x32xf32>
    %c8 = arith.constant 8 : index
    %c0_62 = arith.constant 0 : index
    %165 = vector.load %arg12[%c8, %c0_62] : memref<13x32xf32, #tpu.memory_space<vmem>>, vector<1x32xf32>
    %166 = vector.broadcast %165 : vector<1x32xf32> to vector<16x32xf32>
    %167 = arith.mulf %166, %164 : vector<16x32xf32>
    %c9 = arith.constant 9 : index
    %c0_63 = arith.constant 0 : index
    %168 = vector.load %arg12[%c9, %c0_63] : memref<13x32xf32, #tpu.memory_space<vmem>>, vector<1x32xf32>
    %c10 = arith.constant 10 : index
    %c0_64 = arith.constant 0 : index
    %169 = vector.load %arg12[%c10, %c0_64] : memref<13x32xf32, #tpu.memory_space<vmem>>, vector<1x32xf32>
    %cst_65 = arith.constant dense<0.000000e+00> : vector<16xf32>
    %170 = vector.multi_reduction <add>, %167, %cst_65 [1] : vector<16x32xf32> to vector<16xf32>
    %171 = vector.shape_cast %170 : vector<16xf32> to vector<16x1xf32>
    %cst_66 = arith.constant 3.200000e+01 : f32
    %172 = vector.broadcast %cst_66 : f32 to vector<16x1xf32>
    %173 = arith.divf %171, %172 : vector<16x1xf32>
    %174 = vector.broadcast %173 : vector<16x1xf32> to vector<16x32xf32>
    %175 = arith.subf %167, %174 : vector<16x32xf32>
    %176 = arith.mulf %175, %175 : vector<16x32xf32>
    %cst_67 = arith.constant dense<0.000000e+00> : vector<16xf32>
    %177 = vector.multi_reduction <add>, %176, %cst_67 [1] : vector<16x32xf32> to vector<16xf32>
    %178 = vector.shape_cast %177 : vector<16xf32> to vector<16x1xf32>
    %cst_68 = arith.constant 3.200000e+01 : f32
    %179 = vector.broadcast %cst_68 : f32 to vector<16x1xf32>
    %180 = arith.divf %178, %179 : vector<16x1xf32>
    %181 = vector.broadcast %173 : vector<16x1xf32> to vector<16x32xf32>
    %182 = arith.subf %167, %181 : vector<16x32xf32>
    %cst_69 = arith.constant 9.99999974E-6 : f32
    %183 = vector.broadcast %cst_69 : f32 to vector<16x1xf32>
    %184 = arith.addf %180, %183 : vector<16x1xf32>
    %185 = math.rsqrt %184 : vector<16x1xf32>
    %186 = vector.broadcast %185 : vector<16x1xf32> to vector<16x32xf32>
    %187 = arith.mulf %182, %186 : vector<16x32xf32>
    %188 = vector.broadcast %168 : vector<1x32xf32> to vector<16x32xf32>
    %189 = arith.mulf %187, %188 : vector<16x32xf32>
    %190 = vector.broadcast %169 : vector<1x32xf32> to vector<16x32xf32>
    %191 = arith.addf %189, %190 : vector<16x32xf32>
    %192 = arith.mulf %191, %93 : vector<16x32xf32>
    %193 = arith.truncf %192 : vector<16x32xf32> to vector<16x32xbf16>
    %c0_70 = arith.constant 0 : index
    %c0_71 = arith.constant 0 : index
    %194 = vector.load %arg9[%c0_70, %c0_71] : memref<32x128xbf16, #tpu.memory_space<vmem>>, vector<32x128xbf16>
    %cst_72 = arith.constant dense<0.000000e+00> : vector<16x128xf32>
    %195 = tpu.matmul %193, %194, %cst_72 {dimension_numbers = #tpu.dot_dimension_numbers<[1], [0], [0], [1], [0, 0, 1, 1], [], []>} : vector<16x32xbf16>, vector<32x128xbf16>, vector<16x128xf32> -> vector<16x128xf32>
    %c0_73 = arith.constant 0 : index
    %c0_74 = arith.constant 0 : index
    %196 = vector.load %arg15[%c0_73, %c0_74] : memref<1x128xf32, #tpu.memory_space<vmem>>, vector<1x128xf32>
    %197 = vector.broadcast %196 : vector<1x128xf32> to vector<16x128xf32>
    %198 = arith.addf %195, %197 : vector<16x128xf32>
    %199 = arith.mulf %198, %198 : vector<16x128xf32>
    %200 = arith.mulf %198, %199 : vector<16x128xf32>
    %cst_75 = arith.constant 4.471500e-02 : f32
    %201 = vector.broadcast %cst_75 : f32 to vector<16x128xf32>
    %202 = arith.mulf %201, %200 : vector<16x128xf32>
    %203 = arith.addf %198, %202 : vector<16x128xf32>
    %cst_76 = arith.constant 0.797884583 : f32
    %204 = vector.broadcast %cst_76 : f32 to vector<16x128xf32>
    %205 = arith.mulf %204, %203 : vector<16x128xf32>
    %206 = math.tanh %205 : vector<16x128xf32>
    %cst_77 = arith.constant 1.000000e+00 : f32
    %207 = vector.broadcast %cst_77 : f32 to vector<16x128xf32>
    %208 = arith.addf %207, %206 : vector<16x128xf32>
    %cst_78 = arith.constant 5.000000e-01 : f32
    %209 = vector.broadcast %cst_78 : f32 to vector<16x128xf32>
    %210 = arith.mulf %209, %208 : vector<16x128xf32>
    %211 = arith.mulf %198, %210 : vector<16x128xf32>
    %212 = arith.mulf %211, %96 : vector<16x128xf32>
    %213 = arith.truncf %212 : vector<16x128xf32> to vector<16x128xbf16>
    %c0_79 = arith.constant 0 : index
    %c0_80 = arith.constant 0 : index
    %214 = vector.load %arg10[%c0_79, %c0_80] : memref<128x32xbf16, #tpu.memory_space<vmem>>, vector<128x32xbf16>
    %cst_81 = arith.constant dense<0.000000e+00> : vector<16x32xf32>
    %215 = tpu.matmul %213, %214, %cst_81 {dimension_numbers = #tpu.dot_dimension_numbers<[1], [0], [0], [1], [0, 0, 1, 1], [], []>} : vector<16x128xbf16>, vector<128x32xbf16>, vector<16x32xf32> -> vector<16x32xf32>
    %c11 = arith.constant 11 : index
    %c0_82 = arith.constant 0 : index
    %216 = vector.load %arg12[%c11, %c0_82] : memref<13x32xf32, #tpu.memory_space<vmem>>, vector<1x32xf32>
    %217 = vector.broadcast %216 : vector<1x32xf32> to vector<16x32xf32>
    %218 = arith.addf %215, %217 : vector<16x32xf32>
    %c12 = arith.constant 12 : index
    %c0_83 = arith.constant 0 : index
    %219 = vector.load %arg12[%c12, %c0_83] : memref<13x32xf32, #tpu.memory_space<vmem>>, vector<1x32xf32>
    %220 = vector.broadcast %219 : vector<1x32xf32> to vector<16x32xf32>
    %221 = arith.mulf %220, %218 : vector<16x32xf32>
    %222 = arith.addf %167, %221 : vector<16x32xf32>
    %223 = arith.truncf %222 : vector<16x32xf32> to vector<16x32xbf16>
    %c0_84 = arith.constant 0 : index
    %c0_85 = arith.constant 0 : index
    %224 = vector.load %arg11[%c0_84, %c0_85] : memref<32x128xbf16, #tpu.memory_space<vmem>>, vector<32x128xbf16>
    %cst_86 = arith.constant dense<0.000000e+00> : vector<16x128xf32>
    %225 = tpu.matmul %223, %224, %cst_86 {dimension_numbers = #tpu.dot_dimension_numbers<[1], [0], [0], [1], [0, 0, 1, 1], [], []>} : vector<16x32xbf16>, vector<32x128xbf16>, vector<16x128xf32> -> vector<16x128xf32>
    %c0_87 = arith.constant 0 : index
    %c0_88 = arith.constant 0 : index
    %226 = vector.load %arg16[%c0_87, %c0_88] : memref<1x128xf32, #tpu.memory_space<vmem>>, vector<1x128xf32>
    %227 = vector.broadcast %226 : vector<1x128xf32> to vector<16x128xf32>
    %228 = arith.addf %225, %227 : vector<16x128xf32>
    %229 = vector.shape_cast %228 : vector<16x128xf32> to vector<2x8x128xf32>
    %c0_89 = arith.constant 0 : index
    %c0_90 = arith.constant 0 : index
    %c0_91 = arith.constant 0 : index
    %230 = vector.load %arg17[%c0_89, %c0_90, %c0_91] : memref<2x8x128xf32, #tpu.memory_space<vmem>>, vector<2x8x128xf32>
    tpu.vector_store %arg17[%c0_89, %c0_90, %c0_91], %229 {strides = array<i32>} : memref<2x8x128xf32, #tpu.memory_space<vmem>>, vector<2x8x128xf32>,
    return
  }
  func.func @transform_0(%arg0: i32) -> (i32, i32, i32) {
    %c0_i32 = arith.constant 0 : i32
    %c0_i32_0 = arith.constant 0 : i32
    %c0_i32_1 = arith.constant 0 : i32
    return %arg0, %c0_i32, %c0_i32_0 : i32, i32, i32
  }
  func.func @transform_1(%arg0: i32) -> (i32, i32, i32) {
    %c0_i32 = arith.constant 0 : i32
    %c0_i32_0 = arith.constant 0 : i32
    %c0_i32_1 = arith.constant 0 : i32
    return %arg0, %c0_i32, %c0_i32_0 : i32, i32, i32
  }
  func.func @transform_2(%arg0: i32) -> (i32, i32, i32) {
    %c0_i32 = arith.constant 0 : i32
    %c0_i32_0 = arith.constant 0 : i32
    %c0_i32_1 = arith.constant 0 : i32
    return %arg0, %c0_i32, %c0_i32_0 : i32, i32, i32
  }
  func.func @transform_3(%arg0: i32) -> (i32, i32) {
    %c0_i32 = arith.constant 0 : i32
    %c0_i32_0 = arith.constant 0 : i32
    %c0_i32_1 = arith.constant 0 : i32
    return %c0_i32, %c0_i32_0 : i32, i32
  }
  func.func @transform_4(%arg0: i32) -> (i32, i32) {
    %c0_i32 = arith.constant 0 : i32
    %c0_i32_0 = arith.constant 0 : i32
    %c0_i32_1 = arith.constant 0 : i32
    return %c0_i32, %c0_i32_0 : i32, i32
  }
  func.func @transform_5(%arg0: i32) -> (i32, i32) {
    %c0_i32 = arith.constant 0 : i32
    %c0_i32_0 = arith.constant 0 : i32
    %c0_i32_1 = arith.constant 0 : i32
    return %c0_i32, %c0_i32_0 : i32, i32
  }
  func.func @transform_6(%arg0: i32) -> (i32, i32) {
    %c0_i32 = arith.constant 0 : i32
    %c0_i32_0 = arith.constant 0 : i32
    %c0_i32_1 = arith.constant 0 : i32
    return %c0_i32, %c0_i32_0 : i32, i32
  }
  func.func @transform_7(%arg0: i32) -> (i32, i32) {
    %c0_i32 = arith.constant 0 : i32
    %c0_i32_0 = arith.constant 0 : i32
    %c0_i32_1 = arith.constant 0 : i32
    return %c0_i32, %c0_i32_0 : i32, i32
  }
  func.func @transform_8(%arg0: i32) -> (i32, i32) {
    %c0_i32 = arith.constant 0 : i32
    %c0_i32_0 = arith.constant 0 : i32
    %c0_i32_1 = arith.constant 0 : i32
    return %c0_i32, %c0_i32_0 : i32, i32
  }
  func.func @transform_9(%arg0: i32) -> (i32, i32) {
    %c0_i32 = arith.constant 0 : i32
    %c0_i32_0 = arith.constant 0 : i32
    %c0_i32_1 = arith.constant 0 : i32
    return %c0_i32, %c0_i32_0 : i32, i32
  }
  func.func @transform_10(%arg0: i32) -> (i32, i32) {
    %c0_i32 = arith.constant 0 : i32
    %c0_i32_0 = arith.constant 0 : i32
    %c0_i32_1 = arith.constant 0 : i32
    return %c0_i32, %c0_i32_0 : i32, i32
  }
  func.func @transform_11(%arg0: i32) -> (i32, i32) {
    %c0_i32 = arith.constant 0 : i32
    %c0_i32_0 = arith.constant 0 : i32
    %c0_i32_1 = arith.constant 0 : i32
    return %c0_i32, %c0_i32_0 : i32, i32
  }
  func.func @transform_12(%arg0: i32) -> (i32, i32) {
    %c0_i32 = arith.constant 0 : i32
    %c0_i32_0 = arith.constant 0 : i32
    %c0_i32_1 = arith.constant 0 : i32
    return %c0_i32, %c0_i32_0 : i32, i32
  }
  func.func @transform_13(%arg0: i32) -> (i32, i32) {
    %c0_i32 = arith.constant 0 : i32
    %c0_i32_0 = arith.constant 0 : i32
    %c0_i32_1 = arith.constant 0 : i32
    return %c0_i32, %c0_i32_0 : i32, i32
  }
  func.func @transform_14(%arg0: i32) -> (i32, i32) {
    %c0_i32 = arith.constant 0 : i32
    %c0_i32_0 = arith.constant 0 : i32
    %c0_i32_1 = arith.constant 0 : i32
    return %c0_i32, %c0_i32_0 : i32, i32
  }
  func.func @transform_15(%arg0: i32) -> (i32, i32) {
    %c0_i32 = arith.constant 0 : i32
    %c0_i32_0 = arith.constant 0 : i32
    %c0_i32_1 = arith.constant 0 : i32
    return %c0_i32, %c0_i32_0 : i32, i32
  }
  func.func @transform_16(%arg0: i32) -> (i32, i32, i32) {
    %c0_i32 = arith.constant 0 : i32
    %c0_i32_0 = arith.constant 0 : i32
    %c0_i32_1 = arith.constant 0 : i32
    return %arg0, %c0_i32, %c0_i32_0 : i32, i32, i32
  }
}

</mosaic_0001>

<llo_original>
// kernel: tpu_custom_call.1
$region0: #{tpu_custom_call.1}
  #allocation0 [shape = 'u32[]', space=smem, size = 0x4, offset = 0x4, fixed_abs, tag = 'smem constant byte address 0x4 - core index']
  #allocation1 [shape = 'u32[144,128]{1,0:T(1,128)}', space=vmem, size = 0x12000, scoped, tag = 'internal scratch']
  %s0 = inlined_call_operand.vmem [shape: bf16[2,16,64], index: 0, kind: input, shape index: {}]
  %s1 = inlined_call_operand.vmem [shape: f32[2,8,32], index: 1, kind: input, shape index: {}]
  %s2 = inlined_call_operand.vmem [shape: bf16[2,8,16], index: 2, kind: input, shape index: {}]
  %s3 = inlined_call_operand.vmem [shape: bf16[64,32], index: 3, kind: input, shape index: {}]
  %s4 = inlined_call_operand.vmem [shape: bf16[16,512], index: 4, kind: input, shape index: {}]
  %s5 = inlined_call_operand.vmem [shape: bf16[16,32], index: 5, kind: input, shape index: {}]
  %s6 = inlined_call_operand.vmem [shape: bf16[32,32], index: 6, kind: input, shape index: {}]
  %s7 = inlined_call_operand.vmem [shape: bf16[16,32], index: 7, kind: input, shape index: {}]
  %s8 = inlined_call_operand.vmem [shape: bf16[32,128], index: 8, kind: input, shape index: {}]
  %s9 = inlined_call_operand.vmem [shape: bf16[128,32], index: 9, kind: input, shape index: {}]
  %s10 = inlined_call_operand.vmem [shape: bf16[32,128], index: 10, kind: input, shape index: {}]
  %s11 = inlined_call_operand.vmem [shape: f32[13,32], index: 11, kind: input, shape index: {}]
  %s12 = inlined_call_operand.vmem [shape: f32[16,1], index: 12, kind: input, shape index: {}]
  %s13 = inlined_call_operand.vmem [shape: f32[32,1], index: 13, kind: input, shape index: {}]
  %s14 = inlined_call_operand.vmem [shape: f32[1,128], index: 14, kind: input, shape index: {}]
  %s15 = inlined_call_operand.vmem [shape: f32[1,128], index: 15, kind: input, shape index: {}]
  %s16 = inlined_call_operand.hbm [shape: f32[2,8,128], index: 16, kind: output, shape index: {}]
  %s17 = sld [smem:[#allocation0]]
  $region74: #{tpu_custom_call.1} parent=0
    _
  %s19 = ssub.s32 1, %s17
  %s20 = scalar_select 0, %s19, %s17
  $region1: #{tpu_custom_call.1} parent=0
    #allocation2 [shape = 'u8[8192]{0}', space=vmem, size = 0x2000, scoped, tag = 'output window, operand 0, single buffered']
    #allocation3 [shape = 's32[1]{0}', space=sflag, size = 0x4, scoped, tag = 'scoped memory for tpu_custom_call.1']
    %21 = vsyncpa [#allocation3], 0
    // Predicated region
    $region2: #{tpu_custom_call.1} parent=1 // pred_check
      _
    $region3: #{tpu_custom_call.1} parent=1 // pred_check_branch
      %23 = sbr.rel (0) target = $region5
    $region4: #{tpu_custom_call.1} parent=1 // pred_region
      _
    $region5: #{tpu_custom_call.1} parent=1 // pred_fallthru
      _
    // Predicated region
    $region6: #{tpu_custom_call.1} parent=1 // pred_check
      _
    $region7: #{tpu_custom_call.1} parent=1 // pred_check_branch
      %25 = sbr.rel (0) target = $region9
    $region8: #{tpu_custom_call.1} parent=1 // pred_region
      _
    $region9: #{tpu_custom_call.1} parent=1 // pred_fallthru
      _
    // Predicated region
    $region10: #{tpu_custom_call.1} parent=1 // pred_check
      _
    $region11: #{tpu_custom_call.1} parent=1 // pred_check_branch
      %27 = sbr.rel (0) target = $region13
    $region12: #{tpu_custom_call.1} parent=1 // pred_region
      _
    $region13: #{tpu_custom_call.1} parent=1 // pred_fallthru
      _
    // Predicated region
    $region14: #{tpu_custom_call.1} parent=1 // pred_check
      _
    $region15: #{tpu_custom_call.1} parent=1 // pred_check_branch
      %29 = sbr.rel (0) target = $region17
    $region16: #{tpu_custom_call.1} parent=1 // pred_region
      _
    $region17: #{tpu_custom_call.1} parent=1 // pred_fallthru
      _
    // Predicated region
    $region18: #{tpu_custom_call.1} parent=1 // pred_check
      _
    $region19: #{tpu_custom_call.1} parent=1 // pred_check_branch
      %31 = sbr.rel (0) target = $region21
    $region20: #{tpu_custom_call.1} parent=1 // pred_region
      _
    $region21: #{tpu_custom_call.1} parent=1 // pred_fallthru
      _
    // Predicated region
    $region22: #{tpu_custom_call.1} parent=1 // pred_check
      _
    $region23: #{tpu_custom_call.1} parent=1 // pred_check_branch
      %33 = sbr.rel (0) target = $region25
    $region24: #{tpu_custom_call.1} parent=1 // pred_region
      _
    $region25: #{tpu_custom_call.1} parent=1 // pred_fallthru
      _
    // Predicated region
    $region26: #{tpu_custom_call.1} parent=1 // pred_check
      _
    $region27: #{tpu_custom_call.1} parent=1 // pred_check_branch
      %35 = sbr.rel (0) target = $region29
    $region28: #{tpu_custom_call.1} parent=1 // pred_region
      _
    $region29: #{tpu_custom_call.1} parent=1 // pred_fallthru
      _
    // Predicated region
    $region30: #{tpu_custom_call.1} parent=1 // pred_check
      _
    $region31: #{tpu_custom_call.1} parent=1 // pred_check_branch
      %37 = sbr.rel (0) target = $region33
    $region32: #{tpu_custom_call.1} parent=1 // pred_region
      _
    $region33: #{tpu_custom_call.1} parent=1 // pred_fallthru
      _
    // Predicated region
    $region34: #{tpu_custom_call.1} parent=1 // pred_check
      _
    $region35: #{tpu_custom_call.1} parent=1 // pred_check_branch
      %39 = sbr.rel (0) target = $region37
    $region36: #{tpu_custom_call.1} parent=1 // pred_region
      _
    $region37: #{tpu_custom_call.1} parent=1 // pred_fallthru
      _
    // Predicated region
    $region38: #{tpu_custom_call.1} parent=1 // pred_check
      _
    $region39: #{tpu_custom_call.1} parent=1 // pred_check_branch
      %41 = sbr.rel (0) target = $region41
    $region40: #{tpu_custom_call.1} parent=1 // pred_region
      _
    $region41: #{tpu_custom_call.1} parent=1 // pred_fallthru
      _
    // Predicated region
    $region42: #{tpu_custom_call.1} parent=1 // pred_check
      _
    $region43: #{tpu_custom_call.1} parent=1 // pred_check_branch
      %43 = sbr.rel (0) target = $region45
    $region44: #{tpu_custom_call.1} parent=1 // pred_region
      _
    $region45: #{tpu_custom_call.1} parent=1 // pred_fallthru
      _
    // Predicated region
    $region46: #{tpu_custom_call.1} parent=1 // pred_check
      _
    $region47: #{tpu_custom_call.1} parent=1 // pred_check_branch
      %45 = sbr.rel (0) target = $region49
    $region48: #{tpu_custom_call.1} parent=1 // pred_region
      _
    $region49: #{tpu_custom_call.1} parent=1 // pred_fallthru
      _
    // Predicated region
    $region50: #{tpu_custom_call.1} parent=1 // pred_check
      _
    $region51: #{tpu_custom_call.1} parent=1 // pred_check_branch
      %47 = sbr.rel (0) target = $region53
    $region52: #{tpu_custom_call.1} parent=1 // pred_region
      _
    $region53: #{tpu_custom_call.1} parent=1 // pred_fallthru
      _
    // Predicated region
    $region54: #{tpu_custom_call.1} parent=1 // pred_check
      _
    $region55: #{tpu_custom_call.1} parent=1 // pred_check_branch
      %49 = sbr.rel (0) target = $region57
    $region56: #{tpu_custom_call.1} parent=1 // pred_region
      _
    $region57: #{tpu_custom_call.1} parent=1 // pred_fallthru
      _
    // Predicated region
    $region58: #{tpu_custom_call.1} parent=1 // pred_check
      _
    $region59: #{tpu_custom_call.1} parent=1 // pred_check_branch
      %51 = sbr.rel (0) target = $region61
    $region60: #{tpu_custom_call.1} parent=1 // pred_region
      _
    $region61: #{tpu_custom_call.1} parent=1 // pred_fallthru
      _
    // Predicated region
    $region62: #{tpu_custom_call.1} parent=1 // pred_check
      _
    $region63: #{tpu_custom_call.1} parent=1 // pred_check_branch
      %53 = sbr.rel (0) target = $region65
    $region64: #{tpu_custom_call.1} parent=1 // pred_region
      _
    $region65: #{tpu_custom_call.1} parent=1 // pred_fallthru
      _
    %v55 = vld [vmem:[%s0] sm:$0xf]
    %v56 = vld [vmem:[%s0 + $0x4] sm:$0xf]
    %v57 = vld [vmem:[%s0 + $0x8] sm:$0xf]
    %v58 = vld [vmem:[%s0 + $0xc] sm:$0xf]
    %v59 = vld [vmem:[%s1] sm:$0xff]
    %v60 = vld [vmem:[%s1 + $0x8] sm:$0xff]
    %v61 = vld [vmem:[%s2] sm:$0xf]
    %v62 = vld [vmem:[%s2 + $0x4] sm:$0xf]
    %v63 = vld [vmem:[%s3] sm:$0xf]
    %v64 = vld [vmem:[%s3 + $0x4] sm:$0xf]
    %v65 = vld [vmem:[%s3 + $0x8] sm:$0xf]
    %v66 = vld [vmem:[%s3 + $0xc] sm:$0xf]
    %v67 = vld [vmem:[%s3 + $0x10] sm:$0xf]
    %v68 = vld [vmem:[%s3 + $0x14] sm:$0xf]
    %v69 = vld [vmem:[%s3 + $0x18] sm:$0xf]
    %v70 = vld [vmem:[%s3 + $0x1c] sm:$0xf]
    %v71 = vld [vmem:[%s11] sm:$0x1]
    %v72 = vlaneseq
    %v73 = vshrl.u32 %v72, 7
    %v74 = vsub.s32 0, %v73
    %v75 = vrot.slane %v71, %v74
    %v80 = vunpack.c.l.b16 %v55
    %v81 = vunpack.c.l.b16 %v56
    %v82 = vunpack.c.l.b16 %v57
    %v83 = vunpack.c.l.b16 %v58
    %v84 = vpack.c.b16 %v81, %v80
    %v85 = vpack.c.b16 %v83, %v82
    %v94 = vunpack.c.l.b16 %v63
    %v95 = vunpack.c.l.b16 %v64
    %v96 = vunpack.c.l.b16 %v65
    %v97 = vunpack.c.l.b16 %v66
    %v98 = vunpack.c.l.b16 %v67
    %v99 = vunpack.c.l.b16 %v68
    %v100 = vunpack.c.l.b16 %v69
    %v101 = vunpack.c.l.b16 %v70
    %v102 = vpack.c.b16 %v95, %v94
    %v103 = vpack.c.b16 %v97, %v96
    %v104 = vpack.c.b16 %v99, %v98
    %v105 = vpack.c.b16 %v101, %v100
    %vm110 = vcmask 523264
    %v112 = vsel %vm110, %v84, 0
    %v115 = vsel %vm110, %v85, 0
    %117 = vmatprep.subr.bf16.mxu0 0
    %118 = vmatpush1.bf16.msra.mxu0 0
    %119 = vmatprep.subr.bf16.mxu0 0
    %120 = vmatpush1.bf16.msra.mxu0 0
    %121 = vmatprep.subr.bf16.mxu0 0
    %122 = vmatpush1.bf16.msra.mxu0 0
    %123 = vmatprep.subr.bf16.mxu0 0
    %124 = vmatpush1.bf16.msra.mxu0 0
    %125 = vmatprep.subr.bf16.mxu0 0
    %126 = vmatpush1.bf16.msra.mxu0 %v105
    %127 = vmatprep.subr.bf16.mxu0 0
    %128 = vmatpush1.bf16.msra.mxu0 %v104
    %129 = vmatprep.subr.bf16.mxu0 0
    %130 = vmatpush1.bf16.msra.mxu0 %v103
    %131 = vmatprep.subr.bf16.mxu0 0
    %132 = vmatpush1.bf16.msra.mxu0 %v102
    %133 = vmatprep.subr.bf16.mxu0 0
    %134 = vmatpush2.bf16.msra.mxu0 0
    %135 = vmatprep.subr.bf16.mxu0 0
    %136 = vmatpush2.bf16.msra.mxu0 0
    %137 = vmatprep.subr.bf16.mxu0 0
    %138 = vmatpush2.bf16.msra.mxu0 0
    %139 = vmatprep.subr.bf16.mxu0 0
    %140 = vmatpush2.bf16.msra.mxu0 0
    %141 = vmatprep.subr.bf16.mxu0 0
    %142 = vmatpush2.bf16.msra.mxu0 0
    %143 = vmatprep.subr.bf16.mxu0 0
    %144 = vmatpush2.bf16.msra.mxu0 0
    %145 = vmatprep.subr.bf16.mxu0 0
    %146 = vmatpush2.bf16.msra.mxu0 0
    %147 = vmatprep.subr.bf16.mxu0 0
    %148 = vmatpush2.bf16.msra.mxu0 0
    %149 = vmatprep.mubr.bf16.mxu0 0
    %150 = vmatmul.mubr.bf16.gmra.mxu0 %v112
    %v151 = vpop.f32.mrf.mxu0
    %v152 = vadd.f32 %v75, %v151
    %v153 = vpop.f32.mrf.mxu0
    %v154 = vpop.f32.mrf.mxu0
    %v155 = vadd.f32 %v75, %v154
    %v156 = vpop.f32.mrf.mxu0
    %157 = vmatprep.mubr.bf16.mxu0 0
    %158 = vmatmul.mubr.bf16.gmra.mxu0 %v115
    %v159 = vpop.f32.mrf.mxu0
    %v160 = vadd.f32 %v75, %v159
    %v161 = vpop.f32.mrf.mxu0
    %v162 = vpop.f32.mrf.mxu0
    %v163 = vadd.f32 %v75, %v162
    %v164 = vpop.f32.mrf.mxu0
    %165 = vdwg.mxu0
    %v166 = vld [vmem:[%s11 + $0x1] sm:$0x1]
    %v167 = vld [vmem:[%s11 + $0x2] sm:$0x1]
    %vm168 = vcmask 261120
    %v169 = vsel %vm168, %v152, 0.0
    %170 = vadd.xlane.f32.xlu0 %v169
    %v171 = vpop.xlane.xlu0 %170
    %v172 = vsel %vm168, %v155, 0.0
    %173 = vadd.xlane.f32.xlu0 %v172
    %v174 = vpop.xlane.xlu0 %173
    %v175 = vsel %vm168, %v160, 0.0
    %176 = vadd.xlane.f32.xlu0 %v175
    %v177 = vpop.xlane.xlu0 %176
    %v178 = vsel %vm168, %v163, 0.0
    %179 = vadd.xlane.f32.xlu0 %v178
    %v180 = vpop.xlane.xlu0 %179
    %v181 = vrcp.pop 32.0
    %v182 = vmul.f32 %v171, %v181
    %v183 = vmul.f32 %v174, %v181
    %v184 = vmul.f32 %v177, %v181
    %v185 = vmul.f32 %v180, %v181
    %v186 = vsub.f32 %v152, %v182
    %v187 = vsub.f32 %v155, %v183
    %v188 = vsub.f32 %v160, %v184
    %v189 = vsub.f32 %v163, %v185
    %v190 = vmul.f32 %v186, %v186
    %v191 = vmul.f32 %v187, %v187
    %v192 = vmul.f32 %v188, %v188
    %v193 = vmul.f32 %v189, %v189
    %v194 = vsel %vm168, %v190, 0.0
    %195 = vadd.xlane.f32.xlu0 %v194
    %v196 = vpop.xlane.xlu0 %195
    %v197 = vsel %vm168, %v191, 0.0
    %198 = vadd.xlane.f32.xlu0 %v197
    %v199 = vpop.xlane.xlu0 %198
    %v200 = vsel %vm168, %v192, 0.0
    %201 = vadd.xlane.f32.xlu0 %v200
    %v202 = vpop.xlane.xlu0 %201
    %v203 = vsel %vm168, %v193, 0.0
    %204 = vadd.xlane.f32.xlu0 %v203
    %v205 = vpop.xlane.xlu0 %204
    %v206 = vmul.f32 %v196, %v181
    %v207 = vmul.f32 %v199, %v181
    %v208 = vmul.f32 %v202, %v181
    %v209 = vmul.f32 %v205, %v181
    %v210 = vadd.f32 %v206, 1e-06
    %v211 = vadd.f32 %v207, 1e-06
    %v212 = vadd.f32 %v208, 1e-06
    %v213 = vadd.f32 %v209, 1e-06
    %v214 = vrsqrt.pop %v210
    %v215 = vrsqrt.pop %v211
    %v216 = vrsqrt.pop %v212
    %v217 = vrsqrt.pop %v213
    %v218 = vmul.f32 %v186, %v214
    %v219 = vmul.f32 %v187, %v215
    %v220 = vmul.f32 %v188, %v216
    %v221 = vmul.f32 %v189, %v217
    %v222 = vlaneseq
    %v223 = vshrl.u32 %v222, 7
    %v224 = vsub.s32 0, %v223
    %v225 = vrot.slane %v166, %v224
    %v226 = vmul.f32 %v218, %v225
    %v227 = vmul.f32 %v219, %v225
    %v228 = vmul.f32 %v220, %v225
    %v229 = vmul.f32 %v221, %v225
    %v230 = vlaneseq
    %v231 = vshrl.u32 %v230, 7
    %v232 = vsub.s32 0, %v231
    %v233 = vrot.slane %v167, %v232
    %v234 = vadd.f32 %v226, %v233
    %v235 = vadd.f32 %v227, %v233
    %v236 = vadd.f32 %v228, %v233
    %v237 = vadd.f32 %v229, %v233
    %v238 = vld [vmem:[%s11 + $0x3] sm:$0x1]
    %v239 = vld [vmem:[%s11 + $0x4] sm:$0x1]
    %v240 = vsel %vm168, %v59, 0.0
    %241 = vadd.xlane.f32.xlu0 %v240
    %v242 = vpop.xlane.xlu0 %241
    %v243 = vsel %vm168, %v60, 0.0
    %244 = vadd.xlane.f32.xlu0 %v243
    %v245 = vpop.xlane.xlu0 %244
    %v246 = vmul.f32 %v242, %v181
    %v247 = vmul.f32 %v245, %v181
    %v248 = vsub.f32 %v59, %v246
    %v249 = vsub.f32 %v60, %v247
    %v250 = vmul.f32 %v248, %v248
    %v251 = vmul.f32 %v249, %v249
    %v252 = vsel %vm168, %v250, 0.0
    %253 = vadd.xlane.f32.xlu0 %v252
    %v254 = vpop.xlane.xlu0 %253
    %v255 = vsel %vm168, %v251, 0.0
    %256 = vadd.xlane.f32.xlu0 %v255
    %v257 = vpop.xlane.xlu0 %256
    %v258 = vmul.f32 %v254, %v181
    %v259 = vmul.f32 %v257, %v181
    %v260 = vadd.f32 %v258, 1e-05
    %v261 = vadd.f32 %v259, 1e-05
    %v262 = vrsqrt.pop %v260
    %v263 = vrsqrt.pop %v261
    %v264 = vmul.f32 %v248, %v262
    %v265 = vmul.f32 %v249, %v263
    %v266 = vlaneseq
    %v267 = vshrl.u32 %v266, 7
    %v268 = vsub.s32 0, %v267
    %v269 = vrot.slane %v238, %v268
    %v270 = vmul.f32 %v264, %v269
    %v271 = vmul.f32 %v265, %v269
    %v272 = vlaneseq
    %v273 = vshrl.u32 %v272, 7
    %v274 = vsub.s32 0, %v273
    %v275 = vrot.slane %v239, %v274
    %v276 = vadd.f32 %v270, %v275
    %v277 = vadd.f32 %v271, %v275
    %v278 = vld [vmem:[%s11 + $0x5] sm:$0x1]
    %v279 = vld [vmem:[%s11 + $0x6] sm:$0x1]
    %v280 = vsel %vm168, %v234, 0.0
    %281 = vadd.xlane.f32.xlu0 %v280
    %v282 = vpop.xlane.xlu0 %281
    %v283 = vsel %vm168, %v235, 0.0
    %284 = vadd.xlane.f32.xlu0 %v283
    %v285 = vpop.xlane.xlu0 %284
    %v286 = vsel %vm168, %v236, 0.0
    %287 = vadd.xlane.f32.xlu0 %v286
    %v288 = vpop.xlane.xlu0 %287
    %v289 = vsel %vm168, %v237, 0.0
    %290 = vadd.xlane.f32.xlu0 %v289
    %v291 = vpop.xlane.xlu0 %290
    %v292 = vmul.f32 %v282, %v181
    %v293 = vmul.f32 %v285, %v181
    %v294 = vmul.f32 %v288, %v181
    %v295 = vmul.f32 %v291, %v181
    %v296 = vsub.f32 %v234, %v292
    %v297 = vsub.f32 %v235, %v293
    %v298 = vsub.f32 %v236, %v294
    %v299 = vsub.f32 %v237, %v295
    %v300 = vmul.f32 %v296, %v296
    %v301 = vmul.f32 %v297, %v297
    %v302 = vmul.f32 %v298, %v298
    %v303 = vmul.f32 %v299, %v299
    %v304 = vsel %vm168, %v300, 0.0
    %305 = vadd.xlane.f32.xlu0 %v304
    %v306 = vpop.xlane.xlu0 %305
    %v307 = vsel %vm168, %v301, 0.0
    %308 = vadd.xlane.f32.xlu0 %v307
    %v309 = vpop.xlane.xlu0 %308
    %v310 = vsel %vm168, %v302, 0.0
    %311 = vadd.xlane.f32.xlu0 %v310
    %v312 = vpop.xlane.xlu0 %311
    %v313 = vsel %vm168, %v303, 0.0
    %314 = vadd.xlane.f32.xlu0 %v313
    %v315 = vpop.xlane.xlu0 %314
    %v316 = vmul.f32 %v306, %v181
    %v317 = vmul.f32 %v309, %v181
    %v318 = vmul.f32 %v312, %v181
    %v319 = vmul.f32 %v315, %v181
    %v320 = vadd.f32 %v316, 1e-05
    %v321 = vadd.f32 %v317, 1e-05
    %v322 = vadd.f32 %v318, 1e-05
    %v323 = vadd.f32 %v319, 1e-05
    %v324 = vrsqrt.pop %v320
    %v325 = vrsqrt.pop %v321
    %v326 = vrsqrt.pop %v322
    %v327 = vrsqrt.pop %v323
    %v328 = vmul.f32 %v296, %v324
    %v329 = vmul.f32 %v297, %v325
    %v330 = vmul.f32 %v298, %v326
    %v331 = vmul.f32 %v299, %v327
    %v332 = vlaneseq
    %v333 = vshrl.u32 %v332, 7
    %v334 = vsub.s32 0, %v333
    %v335 = vrot.slane %v278, %v334
    %v336 = vmul.f32 %v328, %v335
    %v337 = vmul.f32 %v329, %v335
    %v338 = vmul.f32 %v330, %v335
    %v339 = vmul.f32 %v331, %v335
    %v340 = vlaneseq
    %v341 = vshrl.u32 %v340, 7
    %v342 = vsub.s32 0, %v341
    %v343 = vrot.slane %v279, %v342
    %v344 = vadd.f32 %v336, %v343
    %v345 = vadd.f32 %v337, %v343
    %v346 = vadd.f32 %v338, %v343
    %v347 = vadd.f32 %v339, %v343
    %v348 = vld [vmem:[%s4] sm:$0xff]
    %v349 = vld [vmem:[%s4 + $0x8] sm:$0xff]
    %v350 = vld [vmem:[%s4 + $0x10] sm:$0xff]
    %v351 = vld [vmem:[%s4 + $0x18] sm:$0xff]
    %v354 = vunpack.c.l.b16 %v61
    %v355 = vunpack.c.l.b16 %v62
    %v356 = vpack.c.b16 %v355, %v354
    %v361 = vunpack.c.l.b16 %v348
    %v362 = vunpack.c.h.b16 %v348
    %v363 = vunpack.c.l.b16 %v349
    %v364 = vunpack.c.h.b16 %v349
    %v365 = vunpack.c.l.b16 %v350
    %v366 = vunpack.c.h.b16 %v350
    %v367 = vunpack.c.l.b16 %v351
    %v368 = vunpack.c.h.b16 %v351
    %v369 = vpack.c.b16 %v365, %v361
    %v370 = vpack.c.b16 %v366, %v362
    %v371 = vpack.c.b16 %v367, %v363
    %v372 = vpack.c.b16 %v368, %v364
    %vm377 = vcmask 130048
    %v379 = vsel %vm377, %v356, 0
    %381 = vmatprep.subr.bf16.mxu0 0
    %382 = vmatpush1.bf16.msra.mxu0 0
    %383 = vmatprep.subr.bf16.mxu0 0
    %384 = vmatpush1.bf16.msra.mxu0 0
    %385 = vmatprep.subr.bf16.mxu0 0
    %386 = vmatpush1.bf16.msra.mxu0 0
    %387 = vmatprep.subr.bf16.mxu0 0
    %388 = vmatpush1.bf16.msra.mxu0 0
    %389 = vmatprep.subr.bf16.mxu0 0
    %390 = vmatpush1.bf16.msra.mxu0 0
    %391 = vmatprep.subr.bf16.mxu0 0
    %392 = vmatpush1.bf16.msra.mxu0 0
    %393 = vmatprep.subr.bf16.mxu0 0
    %394 = vmatpush1.bf16.msra.mxu0 0
    %395 = vmatprep.subr.bf16.mxu0 %v370
    %396 = vmatpush1.bf16.msra.mxu0 %v369
    %397 = vmatprep.subr.bf16.mxu0 0
    %398 = vmatpush2.bf16.msra.mxu0 0
    %399 = vmatprep.subr.bf16.mxu0 0
    %400 = vmatpush2.bf16.msra.mxu0 0
    %401 = vmatprep.subr.bf16.mxu0 0
    %402 = vmatpush2.bf16.msra.mxu0 0
    %403 = vmatprep.subr.bf16.mxu0 0
    %404 = vmatpush2.bf16.msra.mxu0 0
    %405 = vmatprep.subr.bf16.mxu0 0
    %406 = vmatpush2.bf16.msra.mxu0 0
    %407 = vmatprep.subr.bf16.mxu0 0
    %408 = vmatpush2.bf16.msra.mxu0 0
    %409 = vmatprep.subr.bf16.mxu0 0
    %410 = vmatpush2.bf16.msra.mxu0 0
    %411 = vmatprep.subr.bf16.mxu0 0
    %412 = vmatpush2.bf16.msra.mxu0 0
    %413 = vmatprep.mubr.bf16.mxu0 0
    %414 = vmatmul.mubr.bf16.gmra.mxu0 %v379
    %v415 = vpop.f32.mrf.mxu0
    %v416 = vadd.f32 0.0, %v415
    %v417 = vpop.f32.mrf.mxu0
    %v418 = vadd.f32 0.0, %v417
    %v419 = vpop.f32.mrf.mxu0
    %v420 = vadd.f32 0.0, %v419
    %v421 = vpop.f32.mrf.mxu0
    %v422 = vadd.f32 0.0, %v421
    %423 = vdwg.mxu0
    %424 = vmatprep.subr.bf16.mxu0 0
    %425 = vmatpush1.bf16.msra.mxu0 0
    %426 = vmatprep.subr.bf16.mxu0 0
    %427 = vmatpush1.bf16.msra.mxu0 0
    %428 = vmatprep.subr.bf16.mxu0 0
    %429 = vmatpush1.bf16.msra.mxu0 0
    %430 = vmatprep.subr.bf16.mxu0 0
    %431 = vmatpush1.bf16.msra.mxu0 0
    %432 = vmatprep.subr.bf16.mxu0 0
    %433 = vmatpush1.bf16.msra.mxu0 0
    %434 = vmatprep.subr.bf16.mxu0 0
    %435 = vmatpush1.bf16.msra.mxu0 0
    %436 = vmatprep.subr.bf16.mxu0 0
    %437 = vmatpush1.bf16.msra.mxu0 0
    %438 = vmatprep.subr.bf16.mxu0 %v372
    %439 = vmatpush1.bf16.msra.mxu0 %v371
    %440 = vmatprep.subr.bf16.mxu0 0
    %441 = vmatpush2.bf16.msra.mxu0 0
    %442 = vmatprep.subr.bf16.mxu0 0
    %443 = vmatpush2.bf16.msra.mxu0 0
    %444 = vmatprep.subr.bf16.mxu0 0
    %445 = vmatpush2.bf16.msra.mxu0 0
    %446 = vmatprep.subr.bf16.mxu0 0
    %447 = vmatpush2.bf16.msra.mxu0 0
    %448 = vmatprep.subr.bf16.mxu0 0
    %449 = vmatpush2.bf16.msra.mxu0 0
    %450 = vmatprep.subr.bf16.mxu0 0
    %451 = vmatpush2.bf16.msra.mxu0 0
    %452 = vmatprep.subr.bf16.mxu0 0
    %453 = vmatpush2.bf16.msra.mxu0 0
    %454 = vmatprep.subr.bf16.mxu0 0
    %455 = vmatpush2.bf16.msra.mxu0 0
    %456 = vmatprep.mubr.bf16.mxu0 0
    %457 = vmatmul.mubr.bf16.gmra.mxu0 %v379
    %v458 = vpop.f32.mrf.mxu0
    %v459 = vadd.f32 0.0, %v458
    %v460 = vpop.f32.mrf.mxu0
    %v461 = vadd.f32 0.0, %v460
    %v462 = vpop.f32.mrf.mxu0
    %v463 = vadd.f32 0.0, %v462
    %v464 = vpop.f32.mrf.mxu0
    %v465 = vadd.f32 0.0, %v464
    %466 = vdwg.mxu0
    %v467 = vadd.f32 %v416, 1.0
    %v468 = vadd.f32 %v420, 1.0
    %v469 = vadd.f32 %v418, 1.0
    %v470 = vadd.f32 %v422, 1.0
    %v471 = vadd.f32 %v459, 1.0
    %v472 = vadd.f32 %v463, 1.0
    %v473 = vadd.f32 %v461, 1.0
    %v474 = vadd.f32 %v465, 1.0
    %v475 = vmul.f32 %v276, %v467
    %v476 = vmul.f32 %v277, %v468
    %v477 = vld [vmem:[%s5] sm:$0xf]
    %v478 = vld [vmem:[%s5 + $0x4] sm:$0xf]
    %479 = vxpose.xlu0.b32.start [1/16] %v475, 128
    %480 = vxpose.xlu0.b32.cont [2/16] %v476, 128
    %481 = vxpose.xlu0.b32.cont [3/16] 0.0, 128
    %482 = vxpose.xlu0.b32.cont [4/16] 0.0, 128
    %483 = vxpose.xlu0.b32.cont [5/16] 0.0, 128
    %484 = vxpose.xlu0.b32.cont [6/16] 0.0, 128
    %485 = vxpose.xlu0.b32.cont [7/16] 0.0, 128
    %486 = vxpose.xlu0.b32.cont [8/16] 0.0, 128
    %487 = vxpose.xlu0.b32.cont [9/16] 0.0, 128
    %488 = vxpose.xlu0.b32.cont [10/16] 0.0, 128
    %489 = vxpose.xlu0.b32.cont [11/16] 0.0, 128
    %490 = vxpose.xlu0.b32.cont [12/16] 0.0, 128
    %491 = vxpose.xlu0.b32.cont [13/16] 0.0, 128
    %492 = vxpose.xlu0.b32.cont [14/16] 0.0, 128
    %493 = vxpose.xlu0.b32.cont [15/16] 0.0, 128
    %494 = vxpose.xlu0.b32.end [16/16] 0.0, 128
    %v495 = vpop.trf.xlu0
    %v496 = vpop.trf.xlu0
    %v497 = vpop.trf.xlu0
    %v498 = vpop.trf.xlu0
    %v499 = vpop.trf.xlu0
    %v500 = vpop.trf.xlu0
    %v501 = vpop.trf.xlu0
    %v502 = vpop.trf.xlu0
    %v503 = vpop.trf.xlu0
    %v504 = vpop.trf.xlu0
    %v505 = vpop.trf.xlu0
    %v506 = vpop.trf.xlu0
    %v507 = vpop.trf.xlu0
    %v508 = vpop.trf.xlu0
    %v509 = vpop.trf.xlu0
    %v510 = vpop.trf.xlu0
    %v511 = vpack.c.bf16 %v496, %v495
    %v512 = vpack.c.bf16 %v498, %v497
    %v513 = vld [vmem:[%s12] sm:$0xff]
    %v514 = vld [vmem:[%s12 + $0x8] sm:$0xff]
    %516 = vset.pattern.permute.xlu0 0
    %517 = vperm.xlu0 %516, %v513
    %v518 = vpop.permute.xlu0 %517
    %521 = vset.pattern.permute.xlu0 0
    %522 = vperm.xlu0 %521, %v514
    %v523 = vpop.permute.xlu0 %522
    %v527 = vunpack.c.l.b16 %v477
    %v528 = vunpack.c.l.b16 %v478
    %v529 = vpack.c.b16 %v528, %v527
    %v531 = vsel %vm168, %v529, 0
    %533 = vmatprep.subr.bf16.mxu0 0
    %534 = vmatpush1.bf16.msra.mxu0 0
    %535 = vmatprep.subr.bf16.mxu0 0
    %536 = vmatpush1.bf16.msra.mxu0 0
    %537 = vmatprep.subr.bf16.mxu0 0
    %538 = vmatpush1.bf16.msra.mxu0 0
    %539 = vmatprep.subr.bf16.mxu0 0
    %540 = vmatpush1.bf16.msra.mxu0 0
    %541 = vmatprep.subr.bf16.mxu0 0
    %542 = vmatpush1.bf16.msra.mxu0 0
    %543 = vmatprep.subr.bf16.mxu0 0
    %544 = vmatpush1.bf16.msra.mxu0 0
    %545 = vmatprep.subr.bf16.mxu0 0
    %546 = vmatpush1.bf16.msra.mxu0 %v512
    %547 = vmatprep.subr.bf16.mxu0 0
    %548 = vmatpush1.bf16.msra.mxu0 %v511
    %549 = vmatprep.subr.bf16.mxu0 0
    %550 = vmatpush2.bf16.msra.mxu0 0
    %551 = vmatprep.subr.bf16.mxu0 0
    %552 = vmatpush2.bf16.msra.mxu0 0
    %553 = vmatprep.subr.bf16.mxu0 0
    %554 = vmatpush2.bf16.msra.mxu0 0
    %555 = vmatprep.subr.bf16.mxu0 0
    %556 = vmatpush2.bf16.msra.mxu0 0
    %557 = vmatprep.subr.bf16.mxu0 0
    %558 = vmatpush2.bf16.msra.mxu0 0
    %559 = vmatprep.subr.bf16.mxu0 0
    %560 = vmatpush2.bf16.msra.mxu0 0
    %561 = vmatprep.subr.bf16.mxu0 0
    %562 = vmatpush2.bf16.msra.mxu0 0
    %563 = vmatprep.subr.bf16.mxu0 0
    %564 = vmatpush2.bf16.msra.mxu0 0
    %565 = vmatprep.mubr.bf16.mxu0 0
    %566 = vmatmul.mubr.bf16.gmra.mxu0 %v531
    %v567 = vpop.f32.mrf.mxu0
    %v568 = vadd.f32 %v518, %v567
    %v569 = vpop.f32.mrf.mxu0
    %v570 = vpop.f32.mrf.mxu0
    %v571 = vadd.f32 %v523, %v570
    %v572 = vpop.f32.mrf.mxu0
    %573 = vdwg.mxu0
    %v574 = vpack.c.bf16 %v571, %v568
    %575 = vxpose.xlu0.b32.start [1/16] %v344, 128
    %576 = vxpose.xlu0.b32.cont [2/16] %v345, 128
    %577 = vxpose.xlu0.b32.cont [3/16] %v346, 128
    %578 = vxpose.xlu0.b32.cont [4/16] %v347, 128
    %579 = vxpose.xlu0.b32.cont [5/16] 0.0, 128
    %580 = vxpose.xlu0.b32.cont [6/16] 0.0, 128
    %581 = vxpose.xlu0.b32.cont [7/16] 0.0, 128
    %582 = vxpose.xlu0.b32.cont [8/16] 0.0, 128
    %583 = vxpose.xlu0.b32.cont [9/16] 0.0, 128
    %584 = vxpose.xlu0.b32.cont [10/16] 0.0, 128
    %585 = vxpose.xlu0.b32.cont [11/16] 0.0, 128
    %586 = vxpose.xlu0.b32.cont [12/16] 0.0, 128
    %587 = vxpose.xlu0.b32.cont [13/16] 0.0, 128
    %588 = vxpose.xlu0.b32.cont [14/16] 0.0, 128
    %589 = vxpose.xlu0.b32.cont [15/16] 0.0, 128
    %590 = vxpose.xlu0.b32.end [16/16] 0.0, 128
    %v591 = vpop.trf.xlu0
    %v592 = vpop.trf.xlu0
    %v593 = vpop.trf.xlu0
    %v594 = vpop.trf.xlu0
    %v595 = vpop.trf.xlu0
    %v596 = vpop.trf.xlu0
    %v597 = vpop.trf.xlu0
    %v598 = vpop.trf.xlu0
    %v599 = vpop.trf.xlu0
    %v600 = vpop.trf.xlu0
    %v601 = vpop.trf.xlu0
    %v602 = vpop.trf.xlu0
    %v603 = vpop.trf.xlu0
    %v604 = vpop.trf.xlu0
    %v605 = vpop.trf.xlu0
    %v606 = vpop.trf.xlu0
    %v607 = vpack.c.bf16 %v592, %v591
    %v608 = vpack.c.bf16 %v594, %v593
    %v609 = vld [vmem:[%s6] sm:$0xf]
    %v610 = vld [vmem:[%s6 + $0x4] sm:$0xf]
    %v611 = vld [vmem:[%s6 + $0x8] sm:$0xf]
    %v612 = vld [vmem:[%s6 + $0xc] sm:$0xf]
    %v613 = vld [vmem:[%s13] sm:$0xff]
    %v614 = vld [vmem:[%s13 + $0x8] sm:$0xff]
    %v615 = vld [vmem:[%s13 + $0x10] sm:$0xff]
    %v616 = vld [vmem:[%s13 + $0x18] sm:$0xff]
    %618 = vset.pattern.permute.xlu0 0
    %619 = vperm.xlu0 %618, %v613
    %v620 = vpop.permute.xlu0 %619
    %623 = vset.pattern.permute.xlu0 0
    %624 = vperm.xlu0 %623, %v614
    %v625 = vpop.permute.xlu0 %624
    %628 = vset.pattern.permute.xlu0 0
    %629 = vperm.xlu0 %628, %v615
    %v630 = vpop.permute.xlu0 %629
    %633 = vset.pattern.permute.xlu0 0
    %634 = vperm.xlu0 %633, %v616
    %v635 = vpop.permute.xlu0 %634
    %v641 = vunpack.c.l.b16 %v609
    %v642 = vunpack.c.l.b16 %v610
    %v643 = vunpack.c.l.b16 %v611
    %v644 = vunpack.c.l.b16 %v612
    %v645 = vpack.c.b16 %v642, %v641
    %v646 = vpack.c.b16 %v644, %v643
    %v648 = vsel %vm168, %v645, 0
    %v651 = vsel %vm168, %v646, 0
    %653 = vmatprep.subr.bf16.mxu0 0
    %654 = vmatpush1.bf16.msra.mxu0 0
    %655 = vmatprep.subr.bf16.mxu0 0
    %656 = vmatpush1.bf16.msra.mxu0 0
    %657 = vmatprep.subr.bf16.mxu0 0
    %658 = vmatpush1.bf16.msra.mxu0 0
    %659 = vmatprep.subr.bf16.mxu0 0
    %660 = vmatpush1.bf16.msra.mxu0 0
    %661 = vmatprep.subr.bf16.mxu0 0
    %662 = vmatpush1.bf16.msra.mxu0 0
    %663 = vmatprep.subr.bf16.mxu0 0
    %664 = vmatpush1.bf16.msra.mxu0 0
    %665 = vmatprep.subr.bf16.mxu0 0
    %666 = vmatpush1.bf16.msra.mxu0 %v608
    %667 = vmatprep.subr.bf16.mxu0 0
    %668 = vmatpush1.bf16.msra.mxu0 %v607
    %669 = vmatprep.subr.bf16.mxu0 0
    %670 = vmatpush2.bf16.msra.mxu0 0
    %671 = vmatprep.subr.bf16.mxu0 0
    %672 = vmatpush2.bf16.msra.mxu0 0
    %673 = vmatprep.subr.bf16.mxu0 0
    %674 = vmatpush2.bf16.msra.mxu0 0
    %675 = vmatprep.subr.bf16.mxu0 0
    %676 = vmatpush2.bf16.msra.mxu0 0
    %677 = vmatprep.subr.bf16.mxu0 0
    %678 = vmatpush2.bf16.msra.mxu0 0
    %679 = vmatprep.subr.bf16.mxu0 0
    %680 = vmatpush2.bf16.msra.mxu0 0
    %681 = vmatprep.subr.bf16.mxu0 0
    %682 = vmatpush2.bf16.msra.mxu0 0
    %683 = vmatprep.subr.bf16.mxu0 0
    %684 = vmatpush2.bf16.msra.mxu0 0
    %685 = vmatprep.mubr.bf16.mxu0 0
    %686 = vmatmul.mubr.bf16.gmra.mxu0 %v648
    %v687 = vpop.f32.mrf.mxu0
    %v688 = vadd.f32 %v620, %v687
    %v689 = vpop.f32.mrf.mxu0
    %v690 = vpop.f32.mrf.mxu0
    %v691 = vadd.f32 %v625, %v690
    %v692 = vpop.f32.mrf.mxu0
    %693 = vmatprep.mubr.bf16.mxu0 0
    %694 = vmatmul.mubr.bf16.gmra.mxu0 %v651
    %v695 = vpop.f32.mrf.mxu0
    %v696 = vadd.f32 %v630, %v695
    %v697 = vpop.f32.mrf.mxu0
    %v698 = vpop.f32.mrf.mxu0
    %v699 = vadd.f32 %v635, %v698
    %v700 = vpop.f32.mrf.mxu0
    %701 = vdwg.mxu0
    %v702 = vpack.c.bf16 %v691, %v688
    %v703 = vpack.c.bf16 %v699, %v696
    %v705 = vunpack.c.l.b16 %v574
    %v706 = vunpack.c.h.b16 %v574
    %v707 = vpack.c.b16 %v705, %v705
    %v708 = vpack.c.b16 %v706, %v706
    %v712 = vunpack.c.l.b16 %v702
    %v713 = vunpack.c.h.b16 %v702
    %v714 = vpack.c.b16 %v712, %v712
    %v715 = vpack.c.b16 %v713, %v713
    %v717 = vunpack.c.l.b16 %v703
    %v718 = vunpack.c.h.b16 %v703
    %v719 = vpack.c.b16 %v717, %v717
    %v720 = vpack.c.b16 %v718, %v718
    %721 = vxpose.xlu0.c.b16.start [1/8] %v707, 128
    %722 = vxpose.xlu0.c.b16.cont [2/8] 0, 128
    %723 = vxpose.xlu0.c.b16.cont [3/8] 0, 128
    %724 = vxpose.xlu0.c.b16.cont [4/8] 0, 128
    %725 = vxpose.xlu0.c.b16.cont [5/8] 0, 128
    %726 = vxpose.xlu0.c.b16.cont [6/8] 0, 128
    %727 = vxpose.xlu0.c.b16.cont [7/8] 0, 128
    %728 = vxpose.xlu0.c.b16.end [8/8] 0, 128
    %v729 = vpop.trf.xlu0
    %v730 = vpop.trf.xlu0
    %v731 = vpop.trf.xlu0
    %v732 = vpop.trf.xlu0
    %v733 = vpop.trf.xlu0
    %v734 = vpop.trf.xlu0
    %v735 = vpop.trf.xlu0
    %v736 = vpop.trf.xlu0
    %vm737 = vcmask 64512
    %v739 = vsel %vm737, %v729, 0
    %vm741 = vcmask 1043456
    %v743 = vsel %vm741, %v714, 0
    %745 = vmatprep.subr.bf16.mxu0 0
    %746 = vmatpush1.bf16.msra.mxu0 0
    %747 = vmatprep.subr.bf16.mxu0 0
    %748 = vmatpush1.bf16.msra.mxu0 0
    %749 = vmatprep.subr.bf16.mxu0 0
    %750 = vmatpush1.bf16.msra.mxu0 0
    %751 = vmatprep.subr.bf16.mxu0 0
    %752 = vmatpush1.bf16.msra.mxu0 0
    %753 = vmatprep.subr.bf16.mxu0 0
    %754 = vmatpush1.bf16.msra.mxu0 0
    %755 = vmatprep.subr.bf16.mxu0 0
    %756 = vmatpush1.bf16.msra.mxu0 0
    %757 = vmatprep.subr.bf16.mxu0 0
    %758 = vmatpush1.bf16.msra.mxu0 0
    %759 = vmatprep.subr.bf16.mxu0 0
    %760 = vmatpush1.bf16.msra.mxu0 %v743
    %761 = vmatprep.subr.bf16.mxu0 0
    %762 = vmatpush2.bf16.msra.mxu0 0
    %763 = vmatprep.subr.bf16.mxu0 0
    %764 = vmatpush2.bf16.msra.mxu0 0
    %765 = vmatprep.subr.bf16.mxu0 0
    %766 = vmatpush2.bf16.msra.mxu0 0
    %767 = vmatprep.subr.bf16.mxu0 0
    %768 = vmatpush2.bf16.msra.mxu0 0
    %769 = vmatprep.subr.bf16.mxu0 0
    %770 = vmatpush2.bf16.msra.mxu0 0
    %771 = vmatprep.subr.bf16.mxu0 0
    %772 = vmatpush2.bf16.msra.mxu0 0
    %773 = vmatprep.subr.bf16.mxu0 0
    %774 = vmatpush2.bf16.msra.mxu0 0
    %775 = vmatprep.subr.bf16.mxu0 0
    %776 = vmatpush2.bf16.msra.mxu0 0
    %777 = vmatprep.mubr.bf16.mxu0 0
    %778 = vmatmul.mubr.bf16.gmra.mxu0 %v739
    %v779 = vpop.f32.mrf.mxu0
    %v780 = vadd.f32 0.0, %v779
    %v781 = vpop.f32.mrf.mxu0
    %v782 = vpop.f32.mrf.mxu0
    %v783 = vpop.f32.mrf.mxu0
    %784 = vdwg.mxu0
    %785 = vxpose.xlu0.c.b16.start [1/8] %v708, 128
    %786 = vxpose.xlu0.c.b16.cont [2/8] 0, 128
    %787 = vxpose.xlu0.c.b16.cont [3/8] 0, 128
    %788 = vxpose.xlu0.c.b16.cont [4/8] 0, 128
    %789 = vxpose.xlu0.c.b16.cont [5/8] 0, 128
    %790 = vxpose.xlu0.c.b16.cont [6/8] 0, 128
    %791 = vxpose.xlu0.c.b16.cont [7/8] 0, 128
    %792 = vxpose.xlu0.c.b16.end [8/8] 0, 128
    %v793 = vpop.trf.xlu0
    %v794 = vpop.trf.xlu0
    %v795 = vpop.trf.xlu0
    %v796 = vpop.trf.xlu0
    %v797 = vpop.trf.xlu0
    %v798 = vpop.trf.xlu0
    %v799 = vpop.trf.xlu0
    %v800 = vpop.trf.xlu0
    %v802 = vsel %vm737, %v793, 0
    %v805 = vsel %vm741, %v715, 0
    %807 = vmatprep.subr.bf16.mxu0 0
    %808 = vmatpush1.bf16.msra.mxu0 0
    %809 = vmatprep.subr.bf16.mxu0 0
    %810 = vmatpush1.bf16.msra.mxu0 0
    %811 = vmatprep.subr.bf16.mxu0 0
    %812 = vmatpush1.bf16.msra.mxu0 0
    %813 = vmatprep.subr.bf16.mxu0 0
    %814 = vmatpush1.bf16.msra.mxu0 0
    %815 = vmatprep.subr.bf16.mxu0 0
    %816 = vmatpush1.bf16.msra.mxu0 0
    %817 = vmatprep.subr.bf16.mxu0 0
    %818 = vmatpush1.bf16.msra.mxu0 0
    %819 = vmatprep.subr.bf16.mxu0 0
    %820 = vmatpush1.bf16.msra.mxu0 0
    %821 = vmatprep.subr.bf16.mxu0 0
    %822 = vmatpush1.bf16.msra.mxu0 %v805
    %823 = vmatprep.subr.bf16.mxu0 0
    %824 = vmatpush2.bf16.msra.mxu0 0
    %825 = vmatprep.subr.bf16.mxu0 0
    %826 = vmatpush2.bf16.msra.mxu0 0
    %827 = vmatprep.subr.bf16.mxu0 0
    %828 = vmatpush2.bf16.msra.mxu0 0
    %829 = vmatprep.subr.bf16.mxu0 0
    %830 = vmatpush2.bf16.msra.mxu0 0
    %831 = vmatprep.subr.bf16.mxu0 0
    %832 = vmatpush2.bf16.msra.mxu0 0
    %833 = vmatprep.subr.bf16.mxu0 0
    %834 = vmatpush2.bf16.msra.mxu0 0
    %835 = vmatprep.subr.bf16.mxu0 0
    %836 = vmatpush2.bf16.msra.mxu0 0
    %837 = vmatprep.subr.bf16.mxu0 0
    %838 = vmatpush2.bf16.msra.mxu0 0
    %839 = vmatprep.mubr.bf16.mxu0 0
    %840 = vmatmul.mubr.bf16.gmra.mxu0 %v802
    %v841 = vpop.f32.mrf.mxu0
    %v842 = vadd.f32 0.0, %v841
    %v843 = vpop.f32.mrf.mxu0
    %v844 = vpop.f32.mrf.mxu0
    %v845 = vpop.f32.mrf.mxu0
    %846 = vdwg.mxu0
    %v847 = vsel %vm377, %v780, -inf
    %848 = vmax.xlane.f32.xlu0 %v847
    %v849 = vpop.xlane.xlu0 %848
    %v850 = vsel %vm377, %v842, -inf
    %851 = vmax.xlane.f32.xlu0 %v850
    %v852 = vpop.xlane.xlu0 %851
    %v853 = vsub.f32 %v780, %v849
    %v854 = vsub.f32 %v842, %v852
    %v855 = vmul.f32 %v853, 1.442695
    %v856 = vpow.pop %v855
    %v857 = vmul.f32 %v854, 1.442695
    %v858 = vpow.pop %v857
    %v859 = vsel %vm377, %v856, 0.0
    %860 = vadd.xlane.f32.xlu0 %v859
    %v861 = vpop.xlane.xlu0 %860
    %v862 = vsel %vm377, %v858, 0.0
    %863 = vadd.xlane.f32.xlu0 %v862
    %v864 = vpop.xlane.xlu0 %863
    %v865 = vrcp.pop %v861
    %v866 = vrcp.pop %v864
    %v867 = vmul.f32 %v856, %v865
    %v868 = vmul.f32 %v858, %v866
    %v869 = vpack.c.bf16 %v867, %v867
    %v870 = vpack.c.bf16 %v868, %v868
    %v872 = vsel %vm377, %v719, 0
    %v875 = vsel %vm377, %v869, 0
    %877 = vmatprep.subr.bf16.mxu0 0
    %878 = vmatpush1.bf16.xpose.msra.mxu0 0
    %879 = vmatprep.subr.bf16.mxu0 0
    %880 = vmatpush1.bf16.xpose.msra.mxu0 0
    %881 = vmatprep.subr.bf16.mxu0 0
    %882 = vmatpush1.bf16.xpose.msra.mxu0 0
    %883 = vmatprep.subr.bf16.mxu0 0
    %884 = vmatpush1.bf16.xpose.msra.mxu0 0
    %885 = vmatprep.subr.bf16.mxu0 0
    %886 = vmatpush1.bf16.xpose.msra.mxu0 0
    %887 = vmatprep.subr.bf16.mxu0 0
    %888 = vmatpush1.bf16.xpose.msra.mxu0 0
    %889 = vmatprep.subr.bf16.mxu0 0
    %890 = vmatpush1.bf16.xpose.msra.mxu0 0
    %891 = vmatprep.subr.bf16.mxu0 0
    %892 = vmatpush1.bf16.xpose.msra.mxu0 %v875
    %893 = vmatprep.subr.bf16.mxu0 0
    %894 = vmatpush2.bf16.xpose.msra.mxu0 0
    %895 = vmatprep.subr.bf16.mxu0 0
    %896 = vmatpush2.bf16.xpose.msra.mxu0 0
    %897 = vmatprep.subr.bf16.mxu0 0
    %898 = vmatpush2.bf16.xpose.msra.mxu0 0
    %899 = vmatprep.subr.bf16.mxu0 0
    %900 = vmatpush2.bf16.xpose.msra.mxu0 0
    %901 = vmatprep.subr.bf16.mxu0 0
    %902 = vmatpush2.bf16.xpose.msra.mxu0 0
    %903 = vmatprep.subr.bf16.mxu0 0
    %904 = vmatpush2.bf16.xpose.msra.mxu0 0
    %905 = vmatprep.subr.bf16.mxu0 0
    %906 = vmatpush2.bf16.xpose.msra.mxu0 0
    %907 = vmatprep.subr.bf16.mxu0 0
    %908 = vmatpush2.bf16.xpose.msra.mxu0 0
    %909 = vmatprep.mubr.bf16.mxu0 0
    %910 = vmatmul.mubr.bf16.gmra.mxu0 %v872
    %v911 = vpop.f32.mrf.mxu0
    %v912 = vadd.f32 0.0, %v911
    %v913 = vpop.f32.mrf.mxu0
    %v914 = vpop.f32.mrf.mxu0
    %v915 = vpop.f32.mrf.mxu0
    %916 = vdwg.mxu0
    %v918 = vsel %vm377, %v720, 0
    %v921 = vsel %vm377, %v870, 0
    %923 = vmatprep.subr.bf16.mxu0 0
    %924 = vmatpush1.bf16.xpose.msra.mxu0 0
    %925 = vmatprep.subr.bf16.mxu0 0
    %926 = vmatpush1.bf16.xpose.msra.mxu0 0
    %927 = vmatprep.subr.bf16.mxu0 0
    %928 = vmatpush1.bf16.xpose.msra.mxu0 0
    %929 = vmatprep.subr.bf16.mxu0 0
    %930 = vmatpush1.bf16.xpose.msra.mxu0 0
    %931 = vmatprep.subr.bf16.mxu0 0
    %932 = vmatpush1.bf16.xpose.msra.mxu0 0
    %933 = vmatprep.subr.bf16.mxu0 0
    %934 = vmatpush1.bf16.xpose.msra.mxu0 0
    %935 = vmatprep.subr.bf16.mxu0 0
    %936 = vmatpush1.bf16.xpose.msra.mxu0 0
    %937 = vmatprep.subr.bf16.mxu0 0
    %938 = vmatpush1.bf16.xpose.msra.mxu0 %v921
    %939 = vmatprep.subr.bf16.mxu0 0
    %940 = vmatpush2.bf16.xpose.msra.mxu0 0
    %941 = vmatprep.subr.bf16.mxu0 0
    %942 = vmatpush2.bf16.xpose.msra.mxu0 0
    %943 = vmatprep.subr.bf16.mxu0 0
    %944 = vmatpush2.bf16.xpose.msra.mxu0 0
    %945 = vmatprep.subr.bf16.mxu0 0
    %946 = vmatpush2.bf16.xpose.msra.mxu0 0
    %947 = vmatprep.subr.bf16.mxu0 0
    %948 = vmatpush2.bf16.xpose.msra.mxu0 0
    %949 = vmatprep.subr.bf16.mxu0 0
    %950 = vmatpush2.bf16.xpose.msra.mxu0 0
    %951 = vmatprep.subr.bf16.mxu0 0
    %952 = vmatpush2.bf16.xpose.msra.mxu0 0
    %953 = vmatprep.subr.bf16.mxu0 0
    %954 = vmatpush2.bf16.xpose.msra.mxu0 0
    %955 = vmatprep.mubr.bf16.mxu0 0
    %956 = vmatmul.mubr.bf16.gmra.mxu0 %v918
    %v957 = vpop.f32.mrf.mxu0
    %v958 = vadd.f32 0.0, %v957
    %v959 = vpop.f32.mrf.mxu0
    %v960 = vpop.f32.mrf.mxu0
    %v961 = vpop.f32.mrf.mxu0
    %962 = vdwg.mxu0
    %963 = vrot.lane.b32.xlu0 %v707, 120
    %v964 = vpop.permute.xlu0 %963
    %966 = vxpose.xlu0.c.b16.start [1/8] %v964, 128
    %967 = vxpose.xlu0.c.b16.cont [2/8] 0, 128
    %968 = vxpose.xlu0.c.b16.cont [3/8] 0, 128
    %969 = vxpose.xlu0.c.b16.cont [4/8] 0, 128
    %970 = vxpose.xlu0.c.b16.cont [5/8] 0, 128
    %971 = vxpose.xlu0.c.b16.cont [6/8] 0, 128
    %972 = vxpose.xlu0.c.b16.cont [7/8] 0, 128
    %973 = vxpose.xlu0.c.b16.end [8/8] 0, 128
    %v974 = vpop.trf.xlu0
    %v975 = vpop.trf.xlu0
    %v976 = vpop.trf.xlu0
    %v977 = vpop.trf.xlu0
    %v978 = vpop.trf.xlu0
    %v979 = vpop.trf.xlu0
    %v980 = vpop.trf.xlu0
    %v981 = vpop.trf.xlu0
    %982 = vrot.lane.b32.xlu0 %v714, 112
    %v983 = vpop.permute.xlu0 %982
    %v985 = vsel %vm737, %v974, 0
    %v988 = vsel %vm741, %v983, 0
    %990 = vmatprep.subr.bf16.mxu0 0
    %991 = vmatpush1.bf16.msra.mxu0 0
    %992 = vmatprep.subr.bf16.mxu0 0
    %993 = vmatpush1.bf16.msra.mxu0 0
    %994 = vmatprep.subr.bf16.mxu0 0
    %995 = vmatpush1.bf16.msra.mxu0 0
    %996 = vmatprep.subr.bf16.mxu0 0
    %997 = vmatpush1.bf16.msra.mxu0 0
    %998 = vmatprep.subr.bf16.mxu0 0
    %999 = vmatpush1.bf16.msra.mxu0 0
    %1000 = vmatprep.subr.bf16.mxu0 0
    %1001 = vmatpush1.bf16.msra.mxu0 0
    %1002 = vmatprep.subr.bf16.mxu0 0
    %1003 = vmatpush1.bf16.msra.mxu0 0
    %1004 = vmatprep.subr.bf16.mxu0 0
    %1005 = vmatpush1.bf16.msra.mxu0 %v988
    %1006 = vmatprep.subr.bf16.mxu0 0
    %1007 = vmatpush2.bf16.msra.mxu0 0
    %1008 = vmatprep.subr.bf16.mxu0 0
    %1009 = vmatpush2.bf16.msra.mxu0 0
    %1010 = vmatprep.subr.bf16.mxu0 0
    %1011 = vmatpush2.bf16.msra.mxu0 0
    %1012 = vmatprep.subr.bf16.mxu0 0
    %1013 = vmatpush2.bf16.msra.mxu0 0
    %1014 = vmatprep.subr.bf16.mxu0 0
    %1015 = vmatpush2.bf16.msra.mxu0 0
    %1016 = vmatprep.subr.bf16.mxu0 0
    %1017 = vmatpush2.bf16.msra.mxu0 0
    %1018 = vmatprep.subr.bf16.mxu0 0
    %1019 = vmatpush2.bf16.msra.mxu0 0
    %1020 = vmatprep.subr.bf16.mxu0 0
    %1021 = vmatpush2.bf16.msra.mxu0 0
    %1022 = vmatprep.mubr.bf16.mxu0 0
    %1023 = vmatmul.mubr.bf16.gmra.mxu0 %v985
    %v1024 = vpop.f32.mrf.mxu0
    %v1025 = vadd.f32 0.0, %v1024
    %v1026 = vpop.f32.mrf.mxu0
    %v1027 = vpop.f32.mrf.mxu0
    %v1028 = vpop.f32.mrf.mxu0
    %1029 = vdwg.mxu0
    %1030 = vrot.lane.b32.xlu0 %v708, 120
    %v1031 = vpop.permute.xlu0 %1030
    %1033 = vxpose.xlu0.c.b16.start [1/8] %v1031, 128
    %1034 = vxpose.xlu0.c.b16.cont [2/8] 0, 128
    %1035 = vxpose.xlu0.c.b16.cont [3/8] 0, 128
    %1036 = vxpose.xlu0.c.b16.cont [4/8] 0, 128
    %1037 = vxpose.xlu0.c.b16.cont [5/8] 0, 128
    %1038 = vxpose.xlu0.c.b16.cont [6/8] 0, 128
    %1039 = vxpose.xlu0.c.b16.cont [7/8] 0, 128
    %1040 = vxpose.xlu0.c.b16.end [8/8] 0, 128
    %v1041 = vpop.trf.xlu0
    %v1042 = vpop.trf.xlu0
    %v1043 = vpop.trf.xlu0
    %v1044 = vpop.trf.xlu0
    %v1045 = vpop.trf.xlu0
    %v1046 = vpop.trf.xlu0
    %v1047 = vpop.trf.xlu0
    %v1048 = vpop.trf.xlu0
    %1049 = vrot.lane.b32.xlu0 %v715, 112
    %v1050 = vpop.permute.xlu0 %1049
    %v1052 = vsel %vm737, %v1041, 0
    %v1055 = vsel %vm741, %v1050, 0
    %1057 = vmatprep.subr.bf16.mxu0 0
    %1058 = vmatpush1.bf16.msra.mxu0 0
    %1059 = vmatprep.subr.bf16.mxu0 0
    %1060 = vmatpush1.bf16.msra.mxu0 0
    %1061 = vmatprep.subr.bf16.mxu0 0
    %1062 = vmatpush1.bf16.msra.mxu0 0
    %1063 = vmatprep.subr.bf16.mxu0 0
    %1064 = vmatpush1.bf16.msra.mxu0 0
    %1065 = vmatprep.subr.bf16.mxu0 0
    %1066 = vmatpush1.bf16.msra.mxu0 0
    %1067 = vmatprep.subr.bf16.mxu0 0
    %1068 = vmatpush1.bf16.msra.mxu0 0
    %1069 = vmatprep.subr.bf16.mxu0 0
    %1070 = vmatpush1.bf16.msra.mxu0 0
    %1071 = vmatprep.subr.bf16.mxu0 0
    %1072 = vmatpush1.bf16.msra.mxu0 %v1055
    %1073 = vmatprep.subr.bf16.mxu0 0
    %1074 = vmatpush2.bf16.msra.mxu0 0
    %1075 = vmatprep.subr.bf16.mxu0 0
    %1076 = vmatpush2.bf16.msra.mxu0 0
    %1077 = vmatprep.subr.bf16.mxu0 0
    %1078 = vmatpush2.bf16.msra.mxu0 0
    %1079 = vmatprep.subr.bf16.mxu0 0
    %1080 = vmatpush2.bf16.msra.mxu0 0
    %1081 = vmatprep.subr.bf16.mxu0 0
    %1082 = vmatpush2.bf16.msra.mxu0 0
    %1083 = vmatprep.subr.bf16.mxu0 0
    %1084 = vmatpush2.bf16.msra.mxu0 0
    %1085 = vmatprep.subr.bf16.mxu0 0
    %1086 = vmatpush2.bf16.msra.mxu0 0
    %1087 = vmatprep.subr.bf16.mxu0 0
    %1088 = vmatpush2.bf16.msra.mxu0 0
    %1089 = vmatprep.mubr.bf16.mxu0 0
    %1090 = vmatmul.mubr.bf16.gmra.mxu0 %v1052
    %v1091 = vpop.f32.mrf.mxu0
    %v1092 = vadd.f32 0.0, %v1091
    %v1093 = vpop.f32.mrf.mxu0
    %v1094 = vpop.f32.mrf.mxu0
    %v1095 = vpop.f32.mrf.mxu0
    %1096 = vdwg.mxu0
    %v1097 = vsel %vm377, %v1025, -inf
    %1098 = vmax.xlane.f32.xlu0 %v1097
    %v1099 = vpop.xlane.xlu0 %1098
    %v1100 = vsel %vm377, %v1092, -inf
    %1101 = vmax.xlane.f32.xlu0 %v1100
    %v1102 = vpop.xlane.xlu0 %1101
    %v1103 = vsub.f32 %v1025, %v1099
    %v1104 = vsub.f32 %v1092, %v1102
    %v1105 = vmul.f32 %v1103, 1.442695
    %v1106 = vpow.pop %v1105
    %v1107 = vmul.f32 %v1104, 1.442695
    %v1108 = vpow.pop %v1107
    %v1109 = vsel %vm377, %v1106, 0.0
    %1110 = vadd.xlane.f32.xlu0 %v1109
    %v1111 = vpop.xlane.xlu0 %1110
    %v1112 = vsel %vm377, %v1108, 0.0
    %1113 = vadd.xlane.f32.xlu0 %v1112
    %v1114 = vpop.xlane.xlu0 %1113
    %v1115 = vrcp.pop %v1111
    %v1116 = vrcp.pop %v1114
    %v1117 = vmul.f32 %v1106, %v1115
    %v1118 = vmul.f32 %v1108, %v1116
    %v1119 = vpack.c.bf16 %v1117, %v1117
    %v1120 = vpack.c.bf16 %v1118, %v1118
    %1121 = vrot.lane.b32.xlu0 %v719, 112
    %v1122 = vpop.permute.xlu0 %1121
    %v1124 = vsel %vm377, %v1122, 0
    %v1127 = vsel %vm377, %v1119, 0
    %1129 = vmatprep.subr.bf16.mxu0 0
    %1130 = vmatpush1.bf16.xpose.msra.mxu0 0
    %1131 = vmatprep.subr.bf16.mxu0 0
    %1132 = vmatpush1.bf16.xpose.msra.mxu0 0
    %1133 = vmatprep.subr.bf16.mxu0 0
    %1134 = vmatpush1.bf16.xpose.msra.mxu0 0
    %1135 = vmatprep.subr.bf16.mxu0 0
    %1136 = vmatpush1.bf16.xpose.msra.mxu0 0
    %1137 = vmatprep.subr.bf16.mxu0 0
    %1138 = vmatpush1.bf16.xpose.msra.mxu0 0
    %1139 = vmatprep.subr.bf16.mxu0 0
    %1140 = vmatpush1.bf16.xpose.msra.mxu0 0
    %1141 = vmatprep.subr.bf16.mxu0 0
    %1142 = vmatpush1.bf16.xpose.msra.mxu0 0
    %1143 = vmatprep.subr.bf16.mxu0 0
    %1144 = vmatpush1.bf16.xpose.msra.mxu0 %v1127
    %1145 = vmatprep.subr.bf16.mxu0 0
    %1146 = vmatpush2.bf16.xpose.msra.mxu0 0
    %1147 = vmatprep.subr.bf16.mxu0 0
    %1148 = vmatpush2.bf16.xpose.msra.mxu0 0
    %1149 = vmatprep.subr.bf16.mxu0 0
    %1150 = vmatpush2.bf16.xpose.msra.mxu0 0
    %1151 = vmatprep.subr.bf16.mxu0 0
    %1152 = vmatpush2.bf16.xpose.msra.mxu0 0
    %1153 = vmatprep.subr.bf16.mxu0 0
    %1154 = vmatpush2.bf16.xpose.msra.mxu0 0
    %1155 = vmatprep.subr.bf16.mxu0 0
    %1156 = vmatpush2.bf16.xpose.msra.mxu0 0
    %1157 = vmatprep.subr.bf16.mxu0 0
    %1158 = vmatpush2.bf16.xpose.msra.mxu0 0
    %1159 = vmatprep.subr.bf16.mxu0 0
    %1160 = vmatpush2.bf16.xpose.msra.mxu0 0
    %1161 = vmatprep.mubr.bf16.mxu0 0
    %1162 = vmatmul.mubr.bf16.gmra.mxu0 %v1124
    %v1163 = vpop.f32.mrf.mxu0
    %v1164 = vadd.f32 0.0, %v1163
    %v1165 = vpop.f32.mrf.mxu0
    %v1166 = vpop.f32.mrf.mxu0
    %v1167 = vpop.f32.mrf.mxu0
    %1168 = vdwg.mxu0
    %1169 = vrot.lane.b32.xlu0 %v720, 112
    %v1170 = vpop.permute.xlu0 %1169
    %v1172 = vsel %vm377, %v1170, 0
    %v1175 = vsel %vm377, %v1120, 0
    %1177 = vmatprep.subr.bf16.mxu0 0
    %1178 = vmatpush1.bf16.xpose.msra.mxu0 0
    %1179 = vmatprep.subr.bf16.mxu0 0
    %1180 = vmatpush1.bf16.xpose.msra.mxu0 0
    %1181 = vmatprep.subr.bf16.mxu0 0
    %1182 = vmatpush1.bf16.xpose.msra.mxu0 0
    %1183 = vmatprep.subr.bf16.mxu0 0
    %1184 = vmatpush1.bf16.xpose.msra.mxu0 0
    %1185 = vmatprep.subr.bf16.mxu0 0
    %1186 = vmatpush1.bf16.xpose.msra.mxu0 0
    %1187 = vmatprep.subr.bf16.mxu0 0
    %1188 = vmatpush1.bf16.xpose.msra.mxu0 0
    %1189 = vmatprep.subr.bf16.mxu0 0
    %1190 = vmatpush1.bf16.xpose.msra.mxu0 0
    %1191 = vmatprep.subr.bf16.mxu0 0
    %1192 = vmatpush1.bf16.xpose.msra.mxu0 %v1175
    %1193 = vmatprep.subr.bf16.mxu0 0
    %1194 = vmatpush2.bf16.xpose.msra.mxu0 0
    %1195 = vmatprep.subr.bf16.mxu0 0
    %1196 = vmatpush2.bf16.xpose.msra.mxu0 0
    %1197 = vmatprep.subr.bf16.mxu0 0
    %1198 = vmatpush2.bf16.xpose.msra.mxu0 0
    %1199 = vmatprep.subr.bf16.mxu0 0
    %1200 = vmatpush2.bf16.xpose.msra.mxu0 0
    %1201 = vmatprep.subr.bf16.mxu0 0
    %1202 = vmatpush2.bf16.xpose.msra.mxu0 0
    %1203 = vmatprep.subr.bf16.mxu0 0
    %1204 = vmatpush2.bf16.xpose.msra.mxu0 0
    %1205 = vmatprep.subr.bf16.mxu0 0
    %1206 = vmatpush2.bf16.xpose.msra.mxu0 0
    %1207 = vmatprep.subr.bf16.mxu0 0
    %1208 = vmatpush2.bf16.xpose.msra.mxu0 0
    %1209 = vmatprep.mubr.bf16.mxu0 0
    %1210 = vmatmul.mubr.bf16.gmra.mxu0 %v1172
    %v1211 = vpop.f32.mrf.mxu0
    %v1212 = vadd.f32 0.0, %v1211
    %v1213 = vpop.f32.mrf.mxu0
    %v1214 = vpop.f32.mrf.mxu0
    %v1215 = vpop.f32.mrf.mxu0
    %1216 = vdwg.mxu0
    %1219 = vrot.lane.b32.xlu0 %v1164, 8
    %v1220 = vpop.permute.xlu0 %1219
    %1221 = vrot.lane.b32.xlu0 %v1212, 8
    %v1222 = vpop.permute.xlu0 %1221
    %v1225 = vsel %vm737, %v912, %v1220
    %v1226 = vsel %vm737, %v958, %v1222
    %1227 = vxpose.xlu0.b32.start [1/16] %v1225, 128
    %1228 = vxpose.xlu0.b32.cont [2/16] %v1226, 128
    %1229 = vxpose.xlu0.b32.cont [3/16] 0.0, 128
    %1230 = vxpose.xlu0.b32.cont [4/16] 0.0, 128
    %1231 = vxpose.xlu0.b32.cont [5/16] 0.0, 128
    %1232 = vxpose.xlu0.b32.cont [6/16] 0.0, 128
    %1233 = vxpose.xlu0.b32.cont [7/16] 0.0, 128
    %1234 = vxpose.xlu0.b32.cont [8/16] 0.0, 128
    %1235 = vxpose.xlu0.b32.cont [9/16] 0.0, 128
    %1236 = vxpose.xlu0.b32.cont [10/16] 0.0, 128
    %1237 = vxpose.xlu0.b32.cont [11/16] 0.0, 128
    %1238 = vxpose.xlu0.b32.cont [12/16] 0.0, 128
    %1239 = vxpose.xlu0.b32.cont [13/16] 0.0, 128
    %1240 = vxpose.xlu0.b32.cont [14/16] 0.0, 128
    %1241 = vxpose.xlu0.b32.cont [15/16] 0.0, 128
    %1242 = vxpose.xlu0.b32.end [16/16] 0.0, 128
    %v1243 = vpop.trf.xlu0
    %v1244 = vpop.trf.xlu0
    %v1245 = vpop.trf.xlu0
    %v1246 = vpop.trf.xlu0
    %v1247 = vpop.trf.xlu0
    %v1248 = vpop.trf.xlu0
    %v1249 = vpop.trf.xlu0
    %v1250 = vpop.trf.xlu0
    %v1251 = vpop.trf.xlu0
    %v1252 = vpop.trf.xlu0
    %v1253 = vpop.trf.xlu0
    %v1254 = vpop.trf.xlu0
    %v1255 = vpop.trf.xlu0
    %v1256 = vpop.trf.xlu0
    %v1257 = vpop.trf.xlu0
    %v1258 = vpop.trf.xlu0
    %v1259 = vmul.f32 %v1243, %v469
    %v1260 = vmul.f32 %v1244, %v470
    %v1261 = vpack.c.bf16 %v1260, %v1259
    %v1262 = vld [vmem:[%s7] sm:$0xf]
    %v1263 = vld [vmem:[%s7 + $0x4] sm:$0xf]
    %v1264 = vld [vmem:[%s11 + $0x7] sm:$0x1]
    %v1265 = vlaneseq
    %v1266 = vshrl.u32 %v1265, 7
    %v1267 = vsub.s32 0, %v1266
    %v1268 = vrot.slane %v1264, %v1267
    %v1271 = vunpack.c.l.b16 %v1262
    %v1272 = vunpack.c.l.b16 %v1263
    %v1273 = vpack.c.b16 %v1272, %v1271
    %v1276 = vsel %vm377, %v1261, 0
    %1278 = vmatprep.subr.bf16.mxu0 0
    %1279 = vmatpush1.bf16.msra.mxu0 0
    %1280 = vmatprep.subr.bf16.mxu0 0
    %1281 = vmatpush1.bf16.msra.mxu0 0
    %1282 = vmatprep.subr.bf16.mxu0 0
    %1283 = vmatpush1.bf16.msra.mxu0 0
    %1284 = vmatprep.subr.bf16.mxu0 0
    %1285 = vmatpush1.bf16.msra.mxu0 0
    %1286 = vmatprep.subr.bf16.mxu0 0
    %1287 = vmatpush1.bf16.msra.mxu0 0
    %1288 = vmatprep.subr.bf16.mxu0 0
    %1289 = vmatpush1.bf16.msra.mxu0 0
    %1290 = vmatprep.subr.bf16.mxu0 0
    %1291 = vmatpush1.bf16.msra.mxu0 0
    %1292 = vmatprep.subr.bf16.mxu0 0
    %1293 = vmatpush1.bf16.msra.mxu0 %v1273
    %1294 = vmatprep.subr.bf16.mxu0 0
    %1295 = vmatpush2.bf16.msra.mxu0 0
    %1296 = vmatprep.subr.bf16.mxu0 0
    %1297 = vmatpush2.bf16.msra.mxu0 0
    %1298 = vmatprep.subr.bf16.mxu0 0
    %1299 = vmatpush2.bf16.msra.mxu0 0
    %1300 = vmatprep.subr.bf16.mxu0 0
    %1301 = vmatpush2.bf16.msra.mxu0 0
    %1302 = vmatprep.subr.bf16.mxu0 0
    %1303 = vmatpush2.bf16.msra.mxu0 0
    %1304 = vmatprep.subr.bf16.mxu0 0
    %1305 = vmatpush2.bf16.msra.mxu0 0
    %1306 = vmatprep.subr.bf16.mxu0 0
    %1307 = vmatpush2.bf16.msra.mxu0 0
    %1308 = vmatprep.subr.bf16.mxu0 0
    %1309 = vmatpush2.bf16.msra.mxu0 0
    %1310 = vmatprep.mubr.bf16.mxu0 0
    %1311 = vmatmul.mubr.bf16.gmra.mxu0 %v1276
    %v1312 = vpop.f32.mrf.mxu0
    %v1313 = vadd.f32 %v1268, %v1312
    %v1314 = vpop.f32.mrf.mxu0
    %v1315 = vpop.f32.mrf.mxu0
    %v1316 = vadd.f32 %v1268, %v1315
    %v1317 = vpop.f32.mrf.mxu0
    %1318 = vdwg.mxu0
    %v1319 = vld [vmem:[%s11 + $0x8] sm:$0x1]
    %v1320 = vlaneseq
    %v1321 = vshrl.u32 %v1320, 7
    %v1322 = vsub.s32 0, %v1321
    %v1323 = vrot.slane %v1319, %v1322
    %v1324 = vmul.f32 %v1323, %v1313
    %v1325 = vmul.f32 %v1323, %v1316
    %v1326 = vld [vmem:[%s11 + $0x9] sm:$0x1]
    %v1327 = vld [vmem:[%s11 + $0xa] sm:$0x1]
    %v1328 = vsel %vm168, %v1324, 0.0
    %1329 = vadd.xlane.f32.xlu0 %v1328
    %v1330 = vpop.xlane.xlu0 %1329
    %v1331 = vsel %vm168, %v1325, 0.0
    %1332 = vadd.xlane.f32.xlu0 %v1331
    %v1333 = vpop.xlane.xlu0 %1332
    %v1334 = vmul.f32 %v1330, %v181
    %v1335 = vmul.f32 %v1333, %v181
    %v1336 = vsub.f32 %v1324, %v1334
    %v1337 = vsub.f32 %v1325, %v1335
    %v1338 = vmul.f32 %v1336, %v1336
    %v1339 = vmul.f32 %v1337, %v1337
    %v1340 = vsel %vm168, %v1338, 0.0
    %1341 = vadd.xlane.f32.xlu0 %v1340
    %v1342 = vpop.xlane.xlu0 %1341
    %v1343 = vsel %vm168, %v1339, 0.0
    %1344 = vadd.xlane.f32.xlu0 %v1343
    %v1345 = vpop.xlane.xlu0 %1344
    %v1346 = vmul.f32 %v1342, %v181
    %v1347 = vmul.f32 %v1345, %v181
    %v1348 = vadd.f32 %v1346, 1e-05
    %v1349 = vadd.f32 %v1347, 1e-05
    %v1350 = vrsqrt.pop %v1348
    %v1351 = vrsqrt.pop %v1349
    %v1352 = vmul.f32 %v1336, %v1350
    %v1353 = vmul.f32 %v1337, %v1351
    %v1354 = vlaneseq
    %v1355 = vshrl.u32 %v1354, 7
    %v1356 = vsub.s32 0, %v1355
    %v1357 = vrot.slane %v1326, %v1356
    %v1358 = vmul.f32 %v1352, %v1357
    %v1359 = vmul.f32 %v1353, %v1357
    %v1360 = vlaneseq
    %v1361 = vshrl.u32 %v1360, 7
    %v1362 = vsub.s32 0, %v1361
    %v1363 = vrot.slane %v1327, %v1362
    %v1364 = vadd.f32 %v1358, %v1363
    %v1365 = vadd.f32 %v1359, %v1363
    %v1366 = vmul.f32 %v1364, %v471
    %v1367 = vmul.f32 %v1365, %v472
    %v1368 = vpack.c.bf16 %v1367, %v1366
    %v1369 = vld [vmem:[%s8] sm:$0xf]
    %v1370 = vld [vmem:[%s8 + $0x4] sm:$0xf]
    %v1371 = vld [vmem:[%s8 + $0x8] sm:$0xf]
    %v1372 = vld [vmem:[%s8 + $0xc] sm:$0xf]
    %v1373 = vld [vmem:[%s14] sm:$0x1]
    %v1375 = vlaneseq
    %v1376 = vshrl.u32 %v1375, 7
    %v1377 = vsub.s32 0, %v1376
    %v1378 = vrot.slane %v1373, %v1377
    %v1384 = vunpack.c.l.b16 %v1369
    %v1385 = vunpack.c.l.b16 %v1370
    %v1386 = vunpack.c.l.b16 %v1371
    %v1387 = vunpack.c.l.b16 %v1372
    %v1388 = vpack.c.b16 %v1385, %v1384
    %v1389 = vpack.c.b16 %v1387, %v1386
    %v1393 = vsel %vm168, %v1368, 0
    %1395 = vmatprep.subr.bf16.mxu0 0
    %1396 = vmatpush1.bf16.msra.mxu0 0
    %1397 = vmatprep.subr.bf16.mxu0 0
    %1398 = vmatpush1.bf16.msra.mxu0 0
    %1399 = vmatprep.subr.bf16.mxu0 0
    %1400 = vmatpush1.bf16.msra.mxu0 0
    %1401 = vmatprep.subr.bf16.mxu0 0
    %1402 = vmatpush1.bf16.msra.mxu0 0
    %1403 = vmatprep.subr.bf16.mxu0 0
    %1404 = vmatpush1.bf16.msra.mxu0 0
    %1405 = vmatprep.subr.bf16.mxu0 0
    %1406 = vmatpush1.bf16.msra.mxu0 0
    %1407 = vmatprep.subr.bf16.mxu0 0
    %1408 = vmatpush1.bf16.msra.mxu0 %v1389
    %1409 = vmatprep.subr.bf16.mxu0 0
    %1410 = vmatpush1.bf16.msra.mxu0 %v1388
    %1411 = vmatprep.subr.bf16.mxu0 0
    %1412 = vmatpush2.bf16.msra.mxu0 0
    %1413 = vmatprep.subr.bf16.mxu0 0
    %1414 = vmatpush2.bf16.msra.mxu0 0
    %1415 = vmatprep.subr.bf16.mxu0 0
    %1416 = vmatpush2.bf16.msra.mxu0 0
    %1417 = vmatprep.subr.bf16.mxu0 0
    %1418 = vmatpush2.bf16.msra.mxu0 0
    %1419 = vmatprep.subr.bf16.mxu0 0
    %1420 = vmatpush2.bf16.msra.mxu0 0
    %1421 = vmatprep.subr.bf16.mxu0 0
    %1422 = vmatpush2.bf16.msra.mxu0 0
    %1423 = vmatprep.subr.bf16.mxu0 0
    %1424 = vmatpush2.bf16.msra.mxu0 0
    %1425 = vmatprep.subr.bf16.mxu0 0
    %1426 = vmatpush2.bf16.msra.mxu0 0
    %1427 = vmatprep.mubr.bf16.mxu0 0
    %1428 = vmatmul.mubr.bf16.gmra.mxu0 %v1393
    %v1429 = vpop.f32.mrf.mxu0
    %v1430 = vadd.f32 %v1378, %v1429
    %v1431 = vpop.f32.mrf.mxu0
    %v1432 = vpop.f32.mrf.mxu0
    %v1433 = vadd.f32 %v1378, %v1432
    %v1434 = vpop.f32.mrf.mxu0
    %1435 = vdwg.mxu0
    %v1436 = vmul.f32 %v1430, %v1430
    %v1437 = vmul.f32 %v1433, %v1433
    %v1438 = vmul.f32 %v1430, %v1436
    %v1439 = vmul.f32 %v1433, %v1437
    %v1440 = vmul.f32 %v1438, 0.044715
    %v1441 = vmul.f32 %v1439, 0.044715
    %v1442 = vadd.f32 %v1430, %v1440
    %v1443 = vadd.f32 %v1433, %v1441
    %v1444 = vmul.f32 %v1442, 0.7978846
    %v1445 = vmul.f32 %v1443, 0.7978846
    %v1446 = vtanh.pop %v1444
    %v1447 = vtanh.pop %v1445
    %v1448 = vadd.f32 %v1446, 1.0
    %v1449 = vadd.f32 %v1447, 1.0
    %v1450 = vmul.f32 %v1448, 0.5
    %v1451 = vmul.f32 %v1449, 0.5
    %v1452 = vmul.f32 %v1430, %v1450
    %v1453 = vmul.f32 %v1433, %v1451
    %v1454 = vmul.f32 %v1452, %v473
    %v1455 = vmul.f32 %v1453, %v474
    %v1456 = vpack.c.bf16 %v1455, %v1454
    %v1457 = vld [vmem:[%s9] sm:$0xf]
    %v1458 = vld [vmem:[%s9 + $0x4] sm:$0xf]
    %v1459 = vld [vmem:[%s9 + $0x8] sm:$0xf]
    %v1460 = vld [vmem:[%s9 + $0xc] sm:$0xf]
    %v1461 = vld [vmem:[%s9 + $0x10] sm:$0xf]
    %v1462 = vld [vmem:[%s9 + $0x14] sm:$0xf]
    %v1463 = vld [vmem:[%s9 + $0x18] sm:$0xf]
    %v1464 = vld [vmem:[%s9 + $0x1c] sm:$0xf]
    %v1465 = vld [vmem:[%s9 + $0x20] sm:$0xf]
    %v1466 = vld [vmem:[%s9 + $0x24] sm:$0xf]
    %v1467 = vld [vmem:[%s9 + $0x28] sm:$0xf]
    %v1468 = vld [vmem:[%s9 + $0x2c] sm:$0xf]
    %v1469 = vld [vmem:[%s9 + $0x30] sm:$0xf]
    %v1470 = vld [vmem:[%s9 + $0x34] sm:$0xf]
    %v1471 = vld [vmem:[%s9 + $0x38] sm:$0xf]
    %v1472 = vld [vmem:[%s9 + $0x3c] sm:$0xf]
    %v1473 = vld [vmem:[%s11 + $0xb] sm:$0x1]
    %v1474 = vlaneseq
    %v1475 = vshrl.u32 %v1474, 7
    %v1476 = vsub.s32 0, %v1475
    %v1477 = vrot.slane %v1473, %v1476
    %v1494 = vunpack.c.l.b16 %v1457
    %v1495 = vunpack.c.l.b16 %v1458
    %v1496 = vunpack.c.l.b16 %v1459
    %v1497 = vunpack.c.l.b16 %v1460
    %v1498 = vunpack.c.l.b16 %v1461
    %v1499 = vunpack.c.l.b16 %v1462
    %v1500 = vunpack.c.l.b16 %v1463
    %v1501 = vunpack.c.l.b16 %v1464
    %v1502 = vunpack.c.l.b16 %v1465
    %v1503 = vunpack.c.l.b16 %v1466
    %v1504 = vunpack.c.l.b16 %v1467
    %v1505 = vunpack.c.l.b16 %v1468
    %v1506 = vunpack.c.l.b16 %v1469
    %v1507 = vunpack.c.l.b16 %v1470
    %v1508 = vunpack.c.l.b16 %v1471
    %v1509 = vunpack.c.l.b16 %v1472
    %v1510 = vpack.c.b16 %v1495, %v1494
    %v1511 = vpack.c.b16 %v1497, %v1496
    %v1512 = vpack.c.b16 %v1499, %v1498
    %v1513 = vpack.c.b16 %v1501, %v1500
    %v1514 = vpack.c.b16 %v1503, %v1502
    %v1515 = vpack.c.b16 %v1505, %v1504
    %v1516 = vpack.c.b16 %v1507, %v1506
    %v1517 = vpack.c.b16 %v1509, %v1508
    %1526 = vmatprep.subr.bf16.mxu0 0
    %1527 = vmatpush1.bf16.msra.mxu0 %v1517
    %1528 = vmatprep.subr.bf16.mxu0 0
    %1529 = vmatpush1.bf16.msra.mxu0 %v1516
    %1530 = vmatprep.subr.bf16.mxu0 0
    %1531 = vmatpush1.bf16.msra.mxu0 %v1515
    %1532 = vmatprep.subr.bf16.mxu0 0
    %1533 = vmatpush1.bf16.msra.mxu0 %v1514
    %1534 = vmatprep.subr.bf16.mxu0 0
    %1535 = vmatpush1.bf16.msra.mxu0 %v1513
    %1536 = vmatprep.subr.bf16.mxu0 0
    %1537 = vmatpush1.bf16.msra.mxu0 %v1512
    %1538 = vmatprep.subr.bf16.mxu0 0
    %1539 = vmatpush1.bf16.msra.mxu0 %v1511
    %1540 = vmatprep.subr.bf16.mxu0 0
    %1541 = vmatpush1.bf16.msra.mxu0 %v1510
    %1542 = vmatprep.subr.bf16.mxu0 0
    %1543 = vmatpush2.bf16.msra.mxu0 0
    %1544 = vmatprep.subr.bf16.mxu0 0
    %1545 = vmatpush2.bf16.msra.mxu0 0
    %1546 = vmatprep.subr.bf16.mxu0 0
    %1547 = vmatpush2.bf16.msra.mxu0 0
    %1548 = vmatprep.subr.bf16.mxu0 0
    %1549 = vmatpush2.bf16.msra.mxu0 0
    %1550 = vmatprep.subr.bf16.mxu0 0
    %1551 = vmatpush2.bf16.msra.mxu0 0
    %1552 = vmatprep.subr.bf16.mxu0 0
    %1553 = vmatpush2.bf16.msra.mxu0 0
    %1554 = vmatprep.subr.bf16.mxu0 0
    %1555 = vmatpush2.bf16.msra.mxu0 0
    %1556 = vmatprep.subr.bf16.mxu0 0
    %1557 = vmatpush2.bf16.msra.mxu0 0
    %1558 = vmatprep.mubr.bf16.mxu0 0
    %1559 = vmatmul.mubr.bf16.gmra.mxu0 %v1456
    %v1560 = vpop.f32.mrf.mxu0
    %v1561 = vadd.f32 %v1477, %v1560
    %v1562 = vpop.f32.mrf.mxu0
    %v1563 = vpop.f32.mrf.mxu0
    %v1564 = vadd.f32 %v1477, %v1563
    %v1565 = vpop.f32.mrf.mxu0
    %1566 = vdwg.mxu0
    %v1567 = vld [vmem:[%s11 + $0xc] sm:$0x1]
    %v1568 = vlaneseq
    %v1569 = vshrl.u32 %v1568, 7
    %v1570 = vsub.s32 0, %v1569
    %v1571 = vrot.slane %v1567, %v1570
    %v1572 = vmul.f32 %v1571, %v1561
    %v1573 = vmul.f32 %v1571, %v1564
    %v1574 = vadd.f32 %v1324, %v1572
    %v1575 = vadd.f32 %v1325, %v1573
    %v1576 = vpack.c.bf16 %v1575, %v1574
    %v1577 = vld [vmem:[%s10] sm:$0xf]
    %v1578 = vld [vmem:[%s10 + $0x4] sm:$0xf]
    %v1579 = vld [vmem:[%s10 + $0x8] sm:$0xf]
    %v1580 = vld [vmem:[%s10 + $0xc] sm:$0xf]
    %v1581 = vld [vmem:[%s15] sm:$0x1]
    %v1583 = vlaneseq
    %v1584 = vshrl.u32 %v1583, 7
    %v1585 = vsub.s32 0, %v1584
    %v1586 = vrot.slane %v1581, %v1585
    %v1592 = vunpack.c.l.b16 %v1577
    %v1593 = vunpack.c.l.b16 %v1578
    %v1594 = vunpack.c.l.b16 %v1579
    %v1595 = vunpack.c.l.b16 %v1580
    %v1596 = vpack.c.b16 %v1593, %v1592
    %v1597 = vpack.c.b16 %v1595, %v1594
    %v1601 = vsel %vm168, %v1576, 0
    %1603 = vmatprep.subr.bf16.mxu0 0
    %1604 = vmatpush1.bf16.msra.mxu0 0
    %1605 = vmatprep.subr.bf16.mxu0 0
    %1606 = vmatpush1.bf16.msra.mxu0 0
    %1607 = vmatprep.subr.bf16.mxu0 0
    %1608 = vmatpush1.bf16.msra.mxu0 0
    %1609 = vmatprep.subr.bf16.mxu0 0
    %1610 = vmatpush1.bf16.msra.mxu0 0
    %1611 = vmatprep.subr.bf16.mxu0 0
    %1612 = vmatpush1.bf16.msra.mxu0 0
    %1613 = vmatprep.subr.bf16.mxu0 0
    %1614 = vmatpush1.bf16.msra.mxu0 0
    %1615 = vmatprep.subr.bf16.mxu0 0
    %1616 = vmatpush1.bf16.msra.mxu0 %v1597
    %1617 = vmatprep.subr.bf16.mxu0 0
    %1618 = vmatpush1.bf16.msra.mxu0 %v1596
    %1619 = vmatprep.subr.bf16.mxu0 0
    %1620 = vmatpush2.bf16.msra.mxu0 0
    %1621 = vmatprep.subr.bf16.mxu0 0
    %1622 = vmatpush2.bf16.msra.mxu0 0
    %1623 = vmatprep.subr.bf16.mxu0 0
    %1624 = vmatpush2.bf16.msra.mxu0 0
    %1625 = vmatprep.subr.bf16.mxu0 0
    %1626 = vmatpush2.bf16.msra.mxu0 0
    %1627 = vmatprep.subr.bf16.mxu0 0
    %1628 = vmatpush2.bf16.msra.mxu0 0
    %1629 = vmatprep.subr.bf16.mxu0 0
    %1630 = vmatpush2.bf16.msra.mxu0 0
    %1631 = vmatprep.subr.bf16.mxu0 0
    %1632 = vmatpush2.bf16.msra.mxu0 0
    %1633 = vmatprep.subr.bf16.mxu0 0
    %1634 = vmatpush2.bf16.msra.mxu0 0
    %1635 = vmatprep.mubr.bf16.mxu0 0
    %1636 = vmatmul.mubr.bf16.gmra.mxu0 %v1601
    %v1637 = vpop.f32.mrf.mxu0
    %v1638 = vadd.f32 %v1586, %v1637
    %v1639 = vpop.f32.mrf.mxu0
    %v1640 = vpop.f32.mrf.mxu0
    %v1641 = vadd.f32 %v1586, %v1640
    %v1642 = vpop.f32.mrf.mxu0
    %1643 = vdwg.mxu0
    %1644 = vst [vmem:[#allocation2] sm:$0xff] %v1638
    %1645 = vst [vmem:[#allocation2 + $0x8] sm:$0xff] %v1641
    // Predicated region
    $region66: #{tpu_custom_call.1} parent=1 // pred_check
      _
    $region67: #{tpu_custom_call.1} parent=1 // pred_check_branch
      %1647 = sbr.rel (0) target = $region69
    $region68: #{tpu_custom_call.1} parent=1 // pred_region
      %s1649 = ssub.s32 256, 256
      %1650 = vsyncadd [#allocation3], %s1649
      %s1651 = sshll.u32 [#allocation2], 4
      %s1652 = int_to_ptr.vmem [resolvable:$true] %s1651
      %1657 = dma.vmem_to_hbm [thread:$0]  %s1652, 256, %s16, [#allocation3], 128, 128, 8
    $region69: #{tpu_custom_call.1} parent=1 // pred_fallthru
      _
    // Predicated region
    $region70: #{tpu_custom_call.1} parent=1 // pred_check
      _
    $region71: #{tpu_custom_call.1} parent=1 // pred_check_branch
      %1659 = sbr.rel (0) target = $region73
    $region72: #{tpu_custom_call.1} parent=1 // pred_region
      %1660 = dma.done [#allocation3], 256
    $region73: #{tpu_custom_call.1} parent=1 // pred_fallthru
      _
    %1661 = vsyncpa [#allocation3], 1

// kernel: tpu_custom_call.1
$region0: #{tpu_custom_call.1}
  #allocation0 [shape = 'u32[]', space=smem, size = 0x4, offset = 0x4, fixed_abs, tag = 'smem constant byte address 0x4 - core index']
  #allocation1 [shape = 'u32[144,128]{1,0:T(1,128)}', space=vmem, size = 0x12000, scoped, tag = 'internal scratch']
  %s0 = inlined_call_operand.vmem [shape: bf16[2,16,64], index: 0, kind: input, shape index: {}]
  %s1 = inlined_call_operand.vmem [shape: f32[2,8,32], index: 1, kind: input, shape index: {}]
  %s2 = inlined_call_operand.vmem [shape: bf16[2,8,16], index: 2, kind: input, shape index: {}]
  %s3 = inlined_call_operand.vmem [shape: bf16[64,32], index: 3, kind: input, shape index: {}]
  %s4 = inlined_call_operand.vmem [shape: bf16[16,512], index: 4, kind: input, shape index: {}]
  %s5 = inlined_call_operand.vmem [shape: bf16[16,32], index: 5, kind: input, shape index: {}]
  %s6 = inlined_call_operand.vmem [shape: bf16[32,32], index: 6, kind: input, shape index: {}]
  %s7 = inlined_call_operand.vmem [shape: bf16[16,32], index: 7, kind: input, shape index: {}]
  %s8 = inlined_call_operand.vmem [shape: bf16[32,128], index: 8, kind: input, shape index: {}]
  %s9 = inlined_call_operand.vmem [shape: bf16[128,32], index: 9, kind: input, shape index: {}]
  %s10 = inlined_call_operand.vmem [shape: bf16[32,128], index: 10, kind: input, shape index: {}]
  %s11 = inlined_call_operand.vmem [shape: f32[13,32], index: 11, kind: input, shape index: {}]
  %s12 = inlined_call_operand.vmem [shape: f32[16,1], index: 12, kind: input, shape index: {}]
  %s13 = inlined_call_operand.vmem [shape: f32[32,1], index: 13, kind: input, shape index: {}]
  %s14 = inlined_call_operand.vmem [shape: f32[1,128], index: 14, kind: input, shape index: {}]
  %s15 = inlined_call_operand.vmem [shape: f32[1,128], index: 15, kind: input, shape index: {}]
  %s16 = inlined_call_operand.hbm [shape: f32[2,8,128], index: 16, kind: output, shape index: {}]
  %s17 = sld [smem:[#allocation0]]
  $region74: #{tpu_custom_call.1} parent=0
    _
  %s19 = ssub.s32 1, %s17
  %s20 = scalar_select 0, %s19, %s17
  $region1: #{tpu_custom_call.1} parent=0
    #allocation2 [shape = 'u8[8192]{0}', space=vmem, size = 0x2000, scoped, tag = 'output window, operand 0, single buffered']
    #allocation3 [shape = 's32[1]{0}', space=sflag, size = 0x4, scoped, tag = 'scoped memory for tpu_custom_call.1']
    %21 = vsyncpa [#allocation3], 0
    // Predicated region
    $region2: #{tpu_custom_call.1} parent=1 // pred_check
      _
    $region3: #{tpu_custom_call.1} parent=1 // pred_check_branch
      %23 = sbr.rel (0) target = $region5
    $region4: #{tpu_custom_call.1} parent=1 // pred_region
      _
    $region5: #{tpu_custom_call.1} parent=1 // pred_fallthru
      _
    // Predicated region
    $region6: #{tpu_custom_call.1} parent=1 // pred_check
      _
    $region7: #{tpu_custom_call.1} parent=1 // pred_check_branch
      %25 = sbr.rel (0) target = $region9
    $region8: #{tpu_custom_call.1} parent=1 // pred_region
      _
    $region9: #{tpu_custom_call.1} parent=1 // pred_fallthru
      _
    // Predicated region
    $region10: #{tpu_custom_call.1} parent=1 // pred_check
      _
    $region11: #{tpu_custom_call.1} parent=1 // pred_check_branch
      %27 = sbr.rel (0) target = $region13
    $region12: #{tpu_custom_call.1} parent=1 // pred_region
      _
    $region13: #{tpu_custom_call.1} parent=1 // pred_fallthru
      _
    // Predicated region
    $region14: #{tpu_custom_call.1} parent=1 // pred_check
      _
    $region15: #{tpu_custom_call.1} parent=1 // pred_check_branch
      %29 = sbr.rel (0) target = $region17
    $region16: #{tpu_custom_call.1} parent=1 // pred_region
      _
    $region17: #{tpu_custom_call.1} parent=1 // pred_fallthru
      _
    // Predicated region
    $region18: #{tpu_custom_call.1} parent=1 // pred_check
      _
    $region19: #{tpu_custom_call.1} parent=1 // pred_check_branch
      %31 = sbr.rel (0) target = $region21
    $region20: #{tpu_custom_call.1} parent=1 // pred_region
      _
    $region21: #{tpu_custom_call.1} parent=1 // pred_fallthru
      _
    // Predicated region
    $region22: #{tpu_custom_call.1} parent=1 // pred_check
      _
    $region23: #{tpu_custom_call.1} parent=1 // pred_check_branch
      %33 = sbr.rel (0) target = $region25
    $region24: #{tpu_custom_call.1} parent=1 // pred_region
      _
    $region25: #{tpu_custom_call.1} parent=1 // pred_fallthru
      _
    // Predicated region
    $region26: #{tpu_custom_call.1} parent=1 // pred_check
      _
    $region27: #{tpu_custom_call.1} parent=1 // pred_check_branch
      %35 = sbr.rel (0) target = $region29
    $region28: #{tpu_custom_call.1} parent=1 // pred_region
      _
    $region29: #{tpu_custom_call.1} parent=1 // pred_fallthru
      _
    // Predicated region
    $region30: #{tpu_custom_call.1} parent=1 // pred_check
      _
    $region31: #{tpu_custom_call.1} parent=1 // pred_check_branch
      %37 = sbr.rel (0) target = $region33
    $region32: #{tpu_custom_call.1} parent=1 // pred_region
      _
    $region33: #{tpu_custom_call.1} parent=1 // pred_fallthru
      _
    // Predicated region
    $region34: #{tpu_custom_call.1} parent=1 // pred_check
      _
    $region35: #{tpu_custom_call.1} parent=1 // pred_check_branch
      %39 = sbr.rel (0) target = $region37
    $region36: #{tpu_custom_call.1} parent=1 // pred_region
      _
    $region37: #{tpu_custom_call.1} parent=1 // pred_fallthru
      _
    // Predicated region
    $region38: #{tpu_custom_call.1} parent=1 // pred_check
      _
    $region39: #{tpu_custom_call.1} parent=1 // pred_check_branch
      %41 = sbr.rel (0) target = $region41
    $region40: #{tpu_custom_call.1} parent=1 // pred_region
      _
    $region41: #{tpu_custom_call.1} parent=1 // pred_fallthru
      _
    // Predicated region
    $region42: #{tpu_custom_call.1} parent=1 // pred_check
      _
    $region43: #{tpu_custom_call.1} parent=1 // pred_check_branch
      %43 = sbr.rel (0) target = $region45
    $region44: #{tpu_custom_call.1} parent=1 // pred_region
      _
    $region45: #{tpu_custom_call.1} parent=1 // pred_fallthru
      _
    // Predicated region
    $region46: #{tpu_custom_call.1} parent=1 // pred_check
      _
    $region47: #{tpu_custom_call.1} parent=1 // pred_check_branch
      %45 = sbr.rel (0) target = $region49
    $region48: #{tpu_custom_call.1} parent=1 // pred_region
      _
    $region49: #{tpu_custom_call.1} parent=1 // pred_fallthru
      _
    // Predicated region
    $region50: #{tpu_custom_call.1} parent=1 // pred_check
      _
    $region51: #{tpu_custom_call.1} parent=1 // pred_check_branch
      %47 = sbr.rel (0) target = $region53
    $region52: #{tpu_custom_call.1} parent=1 // pred_region
      _
    $region53: #{tpu_custom_call.1} parent=1 // pred_fallthru
      _
    // Predicated region
    $region54: #{tpu_custom_call.1} parent=1 // pred_check
      _
    $region55: #{tpu_custom_call.1} parent=1 // pred_check_branch
      %49 = sbr.rel (0) target = $region57
    $region56: #{tpu_custom_call.1} parent=1 // pred_region
      _
    $region57: #{tpu_custom_call.1} parent=1 // pred_fallthru
      _
    // Predicated region
    $region58: #{tpu_custom_call.1} parent=1 // pred_check
      _
    $region59: #{tpu_custom_call.1} parent=1 // pred_check_branch
      %51 = sbr.rel (0) target = $region61
    $region60: #{tpu_custom_call.1} parent=1 // pred_region
      _
    $region61: #{tpu_custom_call.1} parent=1 // pred_fallthru
      _
    // Predicated region
    $region62: #{tpu_custom_call.1} parent=1 // pred_check
      _
    $region63: #{tpu_custom_call.1} parent=1 // pred_check_branch
      %53 = sbr.rel (0) target = $region65
    $region64: #{tpu_custom_call.1} parent=1 // pred_region
      _
    $region65: #{tpu_custom_call.1} parent=1 // pred_fallthru
      _
    %v55 = vld [vmem:[%s0] sm:$0xf]
    %v56 = vld [vmem:[%s0 + $0x4] sm:$0xf]
    %v57 = vld [vmem:[%s0 + $0x8] sm:$0xf]
    %v58 = vld [vmem:[%s0 + $0xc] sm:$0xf]
    %v59 = vld [vmem:[%s1] sm:$0xff]
    %v60 = vld [vmem:[%s1 + $0x8] sm:$0xff]
    %v61 = vld [vmem:[%s2] sm:$0xf]
    %v62 = vld [vmem:[%s2 + $0x4] sm:$0xf]
    %v63 = vld [vmem:[%s3] sm:$0xf]
    %v64 = vld [vmem:[%s3 + $0x4] sm:$0xf]
    %v65 = vld [vmem:[%s3 + $0x8] sm:$0xf]
    %v66 = vld [vmem:[%s3 + $0xc] sm:$0xf]
    %v67 = vld [vmem:[%s3 + $0x10] sm:$0xf]
    %v68 = vld [vmem:[%s3 + $0x14] sm:$0xf]
    %v69 = vld [vmem:[%s3 + $0x18] sm:$0xf]
    %v70 = vld [vmem:[%s3 + $0x1c] sm:$0xf]
    %v71 = vld [vmem:[%s11] sm:$0x1]
    %v72 = vlaneseq
    %v73 = vshrl.u32 %v72, 7
    %v74 = vsub.s32 0, %v73
    %v75 = vrot.slane %v71, %v74
    %v80 = vunpack.c.l.b16 %v55
    %v81 = vunpack.c.l.b16 %v56
    %v82 = vunpack.c.l.b16 %v57
    %v83 = vunpack.c.l.b16 %v58
    %v84 = vpack.c.b16 %v81, %v80
    %v85 = vpack.c.b16 %v83, %v82
    %v94 = vunpack.c.l.b16 %v63
    %v95 = vunpack.c.l.b16 %v64
    %v96 = vunpack.c.l.b16 %v65
    %v97 = vunpack.c.l.b16 %v66
    %v98 = vunpack.c.l.b16 %v67
    %v99 = vunpack.c.l.b16 %v68
    %v100 = vunpack.c.l.b16 %v69
    %v101 = vunpack.c.l.b16 %v70
    %v102 = vpack.c.b16 %v95, %v94
    %v103 = vpack.c.b16 %v97, %v96
    %v104 = vpack.c.b16 %v99, %v98
    %v105 = vpack.c.b16 %v101, %v100
    %vm110 = vcmask 523264
    %v112 = vsel %vm110, %v84, 0
    %v115 = vsel %vm110, %v85, 0
    %117 = vmatprep.subr.bf16.mxu0 0
    %118 = vmatpush1.bf16.msra.mxu0 0
    %119 = vmatprep.subr.bf16.mxu0 0
    %120 = vmatpush1.bf16.msra.mxu0 0
    %121 = vmatprep.subr.bf16.mxu0 0
    %122 = vmatpush1.bf16.msra.mxu0 0
    %123 = vmatprep.subr.bf16.mxu0 0
    %124 = vmatpush1.bf16.msra.mxu0 0
    %125 = vmatprep.subr.bf16.mxu0 0
    %126 = vmatpush1.bf16.msra.mxu0 %v105
    %127 = vmatprep.subr.bf16.mxu0 0
    %128 = vmatpush1.bf16.msra.mxu0 %v104
    %129 = vmatprep.subr.bf16.mxu0 0
    %130 = vmatpush1.bf16.msra.mxu0 %v103
    %131 = vmatprep.subr.bf16.mxu0 0
    %132 = vmatpush1.bf16.msra.mxu0 %v102
    %133 = vmatprep.subr.bf16.mxu0 0
    %134 = vmatpush2.bf16.msra.mxu0 0
    %135 = vmatprep.subr.bf16.mxu0 0
    %136 = vmatpush2.bf16.msra.mxu0 0
    %137 = vmatprep.subr.bf16.mxu0 0
    %138 = vmatpush2.bf16.msra.mxu0 0
    %139 = vmatprep.subr.bf16.mxu0 0
    %140 = vmatpush2.bf16.msra.mxu0 0
    %141 = vmatprep.subr.bf16.mxu0 0
    %142 = vmatpush2.bf16.msra.mxu0 0
    %143 = vmatprep.subr.bf16.mxu0 0
    %144 = vmatpush2.bf16.msra.mxu0 0
    %145 = vmatprep.subr.bf16.mxu0 0
    %146 = vmatpush2.bf16.msra.mxu0 0
    %147 = vmatprep.subr.bf16.mxu0 0
    %148 = vmatpush2.bf16.msra.mxu0 0
    %149 = vmatprep.mubr.bf16.mxu0 0
    %150 = vmatmul.mubr.bf16.gmra.mxu0 %v112
    %v151 = vpop.f32.mrf.mxu0
    %v152 = vadd.f32 %v75, %v151
    %v153 = vpop.f32.mrf.mxu0
    %v154 = vpop.f32.mrf.mxu0
    %v155 = vadd.f32 %v75, %v154
    %v156 = vpop.f32.mrf.mxu0
    %157 = vmatprep.mubr.bf16.mxu0 0
    %158 = vmatmul.mubr.bf16.gmra.mxu0 %v115
    %v159 = vpop.f32.mrf.mxu0
    %v160 = vadd.f32 %v75, %v159
    %v161 = vpop.f32.mrf.mxu0
    %v162 = vpop.f32.mrf.mxu0
    %v163 = vadd.f32 %v75, %v162
    %v164 = vpop.f32.mrf.mxu0
    %165 = vdwg.mxu0
    %v166 = vld [vmem:[%s11 + $0x1] sm:$0x1]
    %v167 = vld [vmem:[%s11 + $0x2] sm:$0x1]
    %vm168 = vcmask 261120
    %v169 = vsel %vm168, %v152, 0.0
    %170 = vadd.xlane.f32.xlu0 %v169
    %v171 = vpop.xlane.xlu0 %170
    %v172 = vsel %vm168, %v155, 0.0
    %173 = vadd.xlane.f32.xlu0 %v172
    %v174 = vpop.xlane.xlu0 %173
    %v175 = vsel %vm168, %v160, 0.0
    %176 = vadd.xlane.f32.xlu0 %v175
    %v177 = vpop.xlane.xlu0 %176
    %v178 = vsel %vm168, %v163, 0.0
    %179 = vadd.xlane.f32.xlu0 %v178
    %v180 = vpop.xlane.xlu0 %179
    %v181 = vrcp.pop 32.0
    %v182 = vmul.f32 %v171, %v181
    %v183 = vmul.f32 %v174, %v181
    %v184 = vmul.f32 %v177, %v181
    %v185 = vmul.f32 %v180, %v181
    %v186 = vsub.f32 %v152, %v182
    %v187 = vsub.f32 %v155, %v183
    %v188 = vsub.f32 %v160, %v184
    %v189 = vsub.f32 %v163, %v185
    %v190 = vmul.f32 %v186, %v186
    %v191 = vmul.f32 %v187, %v187
    %v192 = vmul.f32 %v188, %v188
    %v193 = vmul.f32 %v189, %v189
    %v194 = vsel %vm168, %v190, 0.0
    %195 = vadd.xlane.f32.xlu0 %v194
    %v196 = vpop.xlane.xlu0 %195
    %v197 = vsel %vm168, %v191, 0.0
    %198 = vadd.xlane.f32.xlu0 %v197
    %v199 = vpop.xlane.xlu0 %198
    %v200 = vsel %vm168, %v192, 0.0
    %201 = vadd.xlane.f32.xlu0 %v200
    %v202 = vpop.xlane.xlu0 %201
    %v203 = vsel %vm168, %v193, 0.0
    %204 = vadd.xlane.f32.xlu0 %v203
    %v205 = vpop.xlane.xlu0 %204
    %v206 = vmul.f32 %v196, %v181
    %v207 = vmul.f32 %v199, %v181
    %v208 = vmul.f32 %v202, %v181
    %v209 = vmul.f32 %v205, %v181
    %v210 = vadd.f32 %v206, 1e-06
    %v211 = vadd.f32 %v207, 1e-06
    %v212 = vadd.f32 %v208, 1e-06
    %v213 = vadd.f32 %v209, 1e-06
    %v214 = vrsqrt.pop %v210
    %v215 = vrsqrt.pop %v211
    %v216 = vrsqrt.pop %v212
    %v217 = vrsqrt.pop %v213
    %v218 = vmul.f32 %v186, %v214
    %v219 = vmul.f32 %v187, %v215
    %v220 = vmul.f32 %v188, %v216
    %v221 = vmul.f32 %v189, %v217
    %v222 = vlaneseq
    %v223 = vshrl.u32 %v222, 7
    %v224 = vsub.s32 0, %v223
    %v225 = vrot.slane %v166, %v224
    %v226 = vmul.f32 %v218, %v225
    %v227 = vmul.f32 %v219, %v225
    %v228 = vmul.f32 %v220, %v225
    %v229 = vmul.f32 %v221, %v225
    %v230 = vlaneseq
    %v231 = vshrl.u32 %v230, 7
    %v232 = vsub.s32 0, %v231
    %v233 = vrot.slane %v167, %v232
    %v234 = vadd.f32 %v226, %v233
    %v235 = vadd.f32 %v227, %v233
    %v236 = vadd.f32 %v228, %v233
    %v237 = vadd.f32 %v229, %v233
    %v238 = vld [vmem:[%s11 + $0x3] sm:$0x1]
    %v239 = vld [vmem:[%s11 + $0x4] sm:$0x1]
    %v240 = vsel %vm168, %v59, 0.0
    %241 = vadd.xlane.f32.xlu0 %v240
    %v242 = vpop.xlane.xlu0 %241
    %v243 = vsel %vm168, %v60, 0.0
    %244 = vadd.xlane.f32.xlu0 %v243
    %v245 = vpop.xlane.xlu0 %244
    %v246 = vmul.f32 %v242, %v181
    %v247 = vmul.f32 %v245, %v181
    %v248 = vsub.f32 %v59, %v246
    %v249 = vsub.f32 %v60, %v247
    %v250 = vmul.f32 %v248, %v248
    %v251 = vmul.f32 %v249, %v249
    %v252 = vsel %vm168, %v250, 0.0
    %253 = vadd.xlane.f32.xlu0 %v252
    %v254 = vpop.xlane.xlu0 %253
    %v255 = vsel %vm168, %v251, 0.0
    %256 = vadd.xlane.f32.xlu0 %v255
    %v257 = vpop.xlane.xlu0 %256
    %v258 = vmul.f32 %v254, %v181
    %v259 = vmul.f32 %v257, %v181
    %v260 = vadd.f32 %v258, 1e-05
    %v261 = vadd.f32 %v259, 1e-05
    %v262 = vrsqrt.pop %v260
    %v263 = vrsqrt.pop %v261
    %v264 = vmul.f32 %v248, %v262
    %v265 = vmul.f32 %v249, %v263
    %v266 = vlaneseq
    %v267 = vshrl.u32 %v266, 7
    %v268 = vsub.s32 0, %v267
    %v269 = vrot.slane %v238, %v268
    %v270 = vmul.f32 %v264, %v269
    %v271 = vmul.f32 %v265, %v269
    %v272 = vlaneseq
    %v273 = vshrl.u32 %v272, 7
    %v274 = vsub.s32 0, %v273
    %v275 = vrot.slane %v239, %v274
    %v276 = vadd.f32 %v270, %v275
    %v277 = vadd.f32 %v271, %v275
    %v278 = vld [vmem:[%s11 + $0x5] sm:$0x1]
    %v279 = vld [vmem:[%s11 + $0x6] sm:$0x1]
    %v280 = vsel %vm168, %v234, 0.0
    %281 = vadd.xlane.f32.xlu0 %v280
    %v282 = vpop.xlane.xlu0 %281
    %v283 = vsel %vm168, %v235, 0.0
    %284 = vadd.xlane.f32.xlu0 %v283
    %v285 = vpop.xlane.xlu0 %284
    %v286 = vsel %vm168, %v236, 0.0
    %287 = vadd.xlane.f32.xlu0 %v286
    %v288 = vpop.xlane.xlu0 %287
    %v289 = vsel %vm168, %v237, 0.0
    %290 = vadd.xlane.f32.xlu0 %v289
    %v291 = vpop.xlane.xlu0 %290
    %v292 = vmul.f32 %v282, %v181
    %v293 = vmul.f32 %v285, %v181
    %v294 = vmul.f32 %v288, %v181
    %v295 = vmul.f32 %v291, %v181
    %v296 = vsub.f32 %v234, %v292
    %v297 = vsub.f32 %v235, %v293
    %v298 = vsub.f32 %v236, %v294
    %v299 = vsub.f32 %v237, %v295
    %v300 = vmul.f32 %v296, %v296
    %v301 = vmul.f32 %v297, %v297
    %v302 = vmul.f32 %v298, %v298
    %v303 = vmul.f32 %v299, %v299
    %v304 = vsel %vm168, %v300, 0.0
    %305 = vadd.xlane.f32.xlu0 %v304
    %v306 = vpop.xlane.xlu0 %305
    %v307 = vsel %vm168, %v301, 0.0
    %308 = vadd.xlane.f32.xlu0 %v307
    %v309 = vpop.xlane.xlu0 %308
    %v310 = vsel %vm168, %v302, 0.0
    %311 = vadd.xlane.f32.xlu0 %v310
    %v312 = vpop.xlane.xlu0 %311
    %v313 = vsel %vm168, %v303, 0.0
    %314 = vadd.xlane.f32.xlu0 %v313
    %v315 = vpop.xlane.xlu0 %314
    %v316 = vmul.f32 %v306, %v181
    %v317 = vmul.f32 %v309, %v181
    %v318 = vmul.f32 %v312, %v181
    %v319 = vmul.f32 %v315, %v181
    %v320 = vadd.f32 %v316, 1e-05
    %v321 = vadd.f32 %v317, 1e-05
    %v322 = vadd.f32 %v318, 1e-05
    %v323 = vadd.f32 %v319, 1e-05
    %v324 = vrsqrt.pop %v320
    %v325 = vrsqrt.pop %v321
    %v326 = vrsqrt.pop %v322
    %v327 = vrsqrt.pop %v323
    %v328 = vmul.f32 %v296, %v324
    %v329 = vmul.f32 %v297, %v325
    %v330 = vmul.f32 %v298, %v326
    %v331 = vmul.f32 %v299, %v327
    %v332 = vlaneseq
    %v333 = vshrl.u32 %v332, 7
    %v334 = vsub.s32 0, %v333
    %v335 = vrot.slane %v278, %v334
    %v336 = vmul.f32 %v328, %v335
    %v337 = vmul.f32 %v329, %v335
    %v338 = vmul.f32 %v330, %v335
    %v339 = vmul.f32 %v331, %v335
    %v340 = vlaneseq
    %v341 = vshrl.u32 %v340, 7
    %v342 = vsub.s32 0, %v341
    %v343 = vrot.slane %v279, %v342
    %v344 = vadd.f32 %v336, %v343
    %v345 = vadd.f32 %v337, %v343
    %v346 = vadd.f32 %v338, %v343
    %v347 = vadd.f32 %v339, %v343
    %v348 = vld [vmem:[%s4] sm:$0xff]
    %v349 = vld [vmem:[%s4 + $0x8] sm:$0xff]
    %v350 = vld [vmem:[%s4 + $0x10] sm:$0xff]
    %v351 = vld [vmem:[%s4 + $0x18] sm:$0xff]
    %v354 = vunpack.c.l.b16 %v61
    %v355 = vunpack.c.l.b16 %v62
    %v356 = vpack.c.b16 %v355, %v354
    %v361 = vunpack.c.l.b16 %v348
    %v362 = vunpack.c.h.b16 %v348
    %v363 = vunpack.c.l.b16 %v349
    %v364 = vunpack.c.h.b16 %v349
    %v365 = vunpack.c.l.b16 %v350
    %v366 = vunpack.c.h.b16 %v350
    %v367 = vunpack.c.l.b16 %v351
    %v368 = vunpack.c.h.b16 %v351
    %v369 = vpack.c.b16 %v365, %v361
    %v370 = vpack.c.b16 %v366, %v362
    %v371 = vpack.c.b16 %v367, %v363
    %v372 = vpack.c.b16 %v368, %v364
    %vm377 = vcmask 130048
    %v379 = vsel %vm377, %v356, 0
    %381 = vmatprep.subr.bf16.mxu0 0
    %382 = vmatpush1.bf16.msra.mxu0 0
    %383 = vmatprep.subr.bf16.mxu0 0
    %384 = vmatpush1.bf16.msra.mxu0 0
    %385 = vmatprep.subr.bf16.mxu0 0
    %386 = vmatpush1.bf16.msra.mxu0 0
    %387 = vmatprep.subr.bf16.mxu0 0
    %388 = vmatpush1.bf16.msra.mxu0 0
    %389 = vmatprep.subr.bf16.mxu0 0
    %390 = vmatpush1.bf16.msra.mxu0 0
    %391 = vmatprep.subr.bf16.mxu0 0
    %392 = vmatpush1.bf16.msra.mxu0 0
    %393 = vmatprep.subr.bf16.mxu0 0
    %394 = vmatpush1.bf16.msra.mxu0 0
    %395 = vmatprep.subr.bf16.mxu0 %v370
    %396 = vmatpush1.bf16.msra.mxu0 %v369
    %397 = vmatprep.subr.bf16.mxu0 0
    %398 = vmatpush2.bf16.msra.mxu0 0
    %399 = vmatprep.subr.bf16.mxu0 0
    %400 = vmatpush2.bf16.msra.mxu0 0
    %401 = vmatprep.subr.bf16.mxu0 0
    %402 = vmatpush2.bf16.msra.mxu0 0
    %403 = vmatprep.subr.bf16.mxu0 0
    %404 = vmatpush2.bf16.msra.mxu0 0
    %405 = vmatprep.subr.bf16.mxu0 0
    %406 = vmatpush2.bf16.msra.mxu0 0
    %407 = vmatprep.subr.bf16.mxu0 0
    %408 = vmatpush2.bf16.msra.mxu0 0
    %409 = vmatprep.subr.bf16.mxu0 0
    %410 = vmatpush2.bf16.msra.mxu0 0
    %411 = vmatprep.subr.bf16.mxu0 0
    %412 = vmatpush2.bf16.msra.mxu0 0
    %413 = vmatprep.mubr.bf16.mxu0 0
    %414 = vmatmul.mubr.bf16.gmra.mxu0 %v379
    %v415 = vpop.f32.mrf.mxu0
    %v416 = vadd.f32 0.0, %v415
    %v417 = vpop.f32.mrf.mxu0
    %v418 = vadd.f32 0.0, %v417
    %v419 = vpop.f32.mrf.mxu0
    %v420 = vadd.f32 0.0, %v419
    %v421 = vpop.f32.mrf.mxu0
    %v422 = vadd.f32 0.0, %v421
    %423 = vdwg.mxu0
    %424 = vmatprep.subr.bf16.mxu0 0
    %425 = vmatpush1.bf16.msra.mxu0 0
    %426 = vmatprep.subr.bf16.mxu0 0
    %427 = vmatpush1.bf16.msra.mxu0 0
    %428 = vmatprep.subr.bf16.mxu0 0
    %429 = vmatpush1.bf16.msra.mxu0 0
    %430 = vmatprep.subr.bf16.mxu0 0
    %431 = vmatpush1.bf16.msra.mxu0 0
    %432 = vmatprep.subr.bf16.mxu0 0
    %433 = vmatpush1.bf16.msra.mxu0 0
    %434 = vmatprep.subr.bf16.mxu0 0
    %435 = vmatpush1.bf16.msra.mxu0 0
    %436 = vmatprep.subr.bf16.mxu0 0
    %437 = vmatpush1.bf16.msra.mxu0 0
    %438 = vmatprep.subr.bf16.mxu0 %v372
    %439 = vmatpush1.bf16.msra.mxu0 %v371
    %440 = vmatprep.subr.bf16.mxu0 0
    %441 = vmatpush2.bf16.msra.mxu0 0
    %442 = vmatprep.subr.bf16.mxu0 0
    %443 = vmatpush2.bf16.msra.mxu0 0
    %444 = vmatprep.subr.bf16.mxu0 0
    %445 = vmatpush2.bf16.msra.mxu0 0
    %446 = vmatprep.subr.bf16.mxu0 0
    %447 = vmatpush2.bf16.msra.mxu0 0
    %448 = vmatprep.subr.bf16.mxu0 0
    %449 = vmatpush2.bf16.msra.mxu0 0
    %450 = vmatprep.subr.bf16.mxu0 0
    %451 = vmatpush2.bf16.msra.mxu0 0
    %452 = vmatprep.subr.bf16.mxu0 0
    %453 = vmatpush2.bf16.msra.mxu0 0
    %454 = vmatprep.subr.bf16.mxu0 0
    %455 = vmatpush2.bf16.msra.mxu0 0
    %456 = vmatprep.mubr.bf16.mxu0 0
    %457 = vmatmul.mubr.bf16.gmra.mxu0 %v379
    %v458 = vpop.f32.mrf.mxu0
    %v459 = vadd.f32 0.0, %v458
    %v460 = vpop.f32.mrf.mxu0
    %v461 = vadd.f32 0.0, %v460
    %v462 = vpop.f32.mrf.mxu0
    %v463 = vadd.f32 0.0, %v462
    %v464 = vpop.f32.mrf.mxu0
    %v465 = vadd.f32 0.0, %v464
    %466 = vdwg.mxu0
    %v467 = vadd.f32 %v416, 1.0
    %v468 = vadd.f32 %v420, 1.0
    %v469 = vadd.f32 %v418, 1.0
    %v470 = vadd.f32 %v422, 1.0
    %v471 = vadd.f32 %v459, 1.0
    %v472 = vadd.f32 %v463, 1.0
    %v473 = vadd.f32 %v461, 1.0
    %v474 = vadd.f32 %v465, 1.0
    %v475 = vmul.f32 %v276, %v467
    %v476 = vmul.f32 %v277, %v468
    %v477 = vld [vmem:[%s5] sm:$0xf]
    %v478 = vld [vmem:[%s5 + $0x4] sm:$0xf]
    %479 = vxpose.xlu0.b32.start [1/16] %v475, 128
    %480 = vxpose.xlu0.b32.cont [2/16] %v476, 128
    %481 = vxpose.xlu0.b32.cont [3/16] 0.0, 128
    %482 = vxpose.xlu0.b32.cont [4/16] 0.0, 128
    %483 = vxpose.xlu0.b32.cont [5/16] 0.0, 128
    %484 = vxpose.xlu0.b32.cont [6/16] 0.0, 128
    %485 = vxpose.xlu0.b32.cont [7/16] 0.0, 128
    %486 = vxpose.xlu0.b32.cont [8/16] 0.0, 128
    %487 = vxpose.xlu0.b32.cont [9/16] 0.0, 128
    %488 = vxpose.xlu0.b32.cont [10/16] 0.0, 128
    %489 = vxpose.xlu0.b32.cont [11/16] 0.0, 128
    %490 = vxpose.xlu0.b32.cont [12/16] 0.0, 128
    %491 = vxpose.xlu0.b32.cont [13/16] 0.0, 128
    %492 = vxpose.xlu0.b32.cont [14/16] 0.0, 128
    %493 = vxpose.xlu0.b32.cont [15/16] 0.0, 128
    %494 = vxpose.xlu0.b32.end [16/16] 0.0, 128
    %v495 = vpop.trf.xlu0
    %v496 = vpop.trf.xlu0
    %v497 = vpop.trf.xlu0
    %v498 = vpop.trf.xlu0
    %v499 = vpop.trf.xlu0
    %v500 = vpop.trf.xlu0
    %v501 = vpop.trf.xlu0
    %v502 = vpop.trf.xlu0
    %v503 = vpop.trf.xlu0
    %v504 = vpop.trf.xlu0
    %v505 = vpop.trf.xlu0
    %v506 = vpop.trf.xlu0
    %v507 = vpop.trf.xlu0
    %v508 = vpop.trf.xlu0
    %v509 = vpop.trf.xlu0
    %v510 = vpop.trf.xlu0
    %v511 = vpack.c.bf16 %v496, %v495
    %v512 = vpack.c.bf16 %v498, %v497
    %v513 = vld [vmem:[%s12] sm:$0xff]
    %v514 = vld [vmem:[%s12 + $0x8] sm:$0xff]
    %516 = vset.pattern.permute.xlu0 0
    %517 = vperm.xlu0 %516, %v513
    %v518 = vpop.permute.xlu0 %517
    %521 = vset.pattern.permute.xlu0 0
    %522 = vperm.xlu0 %521, %v514
    %v523 = vpop.permute.xlu0 %522
    %v527 = vunpack.c.l.b16 %v477
    %v528 = vunpack.c.l.b16 %v478
    %v529 = vpack.c.b16 %v528, %v527
    %v531 = vsel %vm168, %v529, 0
    %533 = vmatprep.subr.bf16.mxu0 0
    %534 = vmatpush1.bf16.msra.mxu0 0
    %535 = vmatprep.subr.bf16.mxu0 0
    %536 = vmatpush1.bf16.msra.mxu0 0
    %537 = vmatprep.subr.bf16.mxu0 0
    %538 = vmatpush1.bf16.msra.mxu0 0
    %539 = vmatprep.subr.bf16.mxu0 0
    %540 = vmatpush1.bf16.msra.mxu0 0
    %541 = vmatprep.subr.bf16.mxu0 0
    %542 = vmatpush1.bf16.msra.mxu0 0
    %543 = vmatprep.subr.bf16.mxu0 0
    %544 = vmatpush1.bf16.msra.mxu0 0
    %545 = vmatprep.subr.bf16.mxu0 0
    %546 = vmatpush1.bf16.msra.mxu0 %v512
    %547 = vmatprep.subr.bf16.mxu0 0
    %548 = vmatpush1.bf16.msra.mxu0 %v511
    %549 = vmatprep.subr.bf16.mxu0 0
    %550 = vmatpush2.bf16.msra.mxu0 0
    %551 = vmatprep.subr.bf16.mxu0 0
    %552 = vmatpush2.bf16.msra.mxu0 0
    %553 = vmatprep.subr.bf16.mxu0 0
    %554 = vmatpush2.bf16.msra.mxu0 0
    %555 = vmatprep.subr.bf16.mxu0 0
    %556 = vmatpush2.bf16.msra.mxu0 0
    %557 = vmatprep.subr.bf16.mxu0 0
    %558 = vmatpush2.bf16.msra.mxu0 0
    %559 = vmatprep.subr.bf16.mxu0 0
    %560 = vmatpush2.bf16.msra.mxu0 0
    %561 = vmatprep.subr.bf16.mxu0 0
    %562 = vmatpush2.bf16.msra.mxu0 0
    %563 = vmatprep.subr.bf16.mxu0 0
    %564 = vmatpush2.bf16.msra.mxu0 0
    %565 = vmatprep.mubr.bf16.mxu0 0
    %566 = vmatmul.mubr.bf16.gmra.mxu0 %v531
    %v567 = vpop.f32.mrf.mxu0
    %v568 = vadd.f32 %v518, %v567
    %v569 = vpop.f32.mrf.mxu0
    %v570 = vpop.f32.mrf.mxu0
    %v571 = vadd.f32 %v523, %v570
    %v572 = vpop.f32.mrf.mxu0
    %573 = vdwg.mxu0
    %v574 = vpack.c.bf16 %v571, %v568
    %575 = vxpose.xlu0.b32.start [1/16] %v344, 128
    %576 = vxpose.xlu0.b32.cont [2/16] %v345, 128
    %577 = vxpose.xlu0.b32.cont [3/16] %v346, 128
    %578 = vxpose.xlu0.b32.cont [4/16] %v347, 128
    %579 = vxpose.xlu0.b32.cont [5/16] 0.0, 128
    %580 = vxpose.xlu0.b32.cont [6/16] 0.0, 128
    %581 = vxpose.xlu0.b32.cont [7/16] 0.0, 128
    %582 = vxpose.xlu0.b32.cont [8/16] 0.0, 128
    %583 = vxpose.xlu0.b32.cont [9/16] 0.0, 128
    %584 = vxpose.xlu0.b32.cont [10/16] 0.0, 128
    %585 = vxpose.xlu0.b32.cont [11/16] 0.0, 128
    %586 = vxpose.xlu0.b32.cont [12/16] 0.0, 128
    %587 = vxpose.xlu0.b32.cont [13/16] 0.0, 128
    %588 = vxpose.xlu0.b32.cont [14/16] 0.0, 128
    %589 = vxpose.xlu0.b32.cont [15/16] 0.0, 128
    %590 = vxpose.xlu0.b32.end [16/16] 0.0, 128
    %v591 = vpop.trf.xlu0
    %v592 = vpop.trf.xlu0
    %v593 = vpop.trf.xlu0
    %v594 = vpop.trf.xlu0
    %v595 = vpop.trf.xlu0
    %v596 = vpop.trf.xlu0
    %v597 = vpop.trf.xlu0
    %v598 = vpop.trf.xlu0
    %v599 = vpop.trf.xlu0
    %v600 = vpop.trf.xlu0
    %v601 = vpop.trf.xlu0
    %v602 = vpop.trf.xlu0
    %v603 = vpop.trf.xlu0
    %v604 = vpop.trf.xlu0
    %v605 = vpop.trf.xlu0
    %v606 = vpop.trf.xlu0
    %v607 = vpack.c.bf16 %v592, %v591
    %v608 = vpack.c.bf16 %v594, %v593
    %v609 = vld [vmem:[%s6] sm:$0xf]
    %v610 = vld [vmem:[%s6 + $0x4] sm:$0xf]
    %v611 = vld [vmem:[%s6 + $0x8] sm:$0xf]
    %v612 = vld [vmem:[%s6 + $0xc] sm:$0xf]
    %v613 = vld [vmem:[%s13] sm:$0xff]
    %v614 = vld [vmem:[%s13 + $0x8] sm:$0xff]
    %v615 = vld [vmem:[%s13 + $0x10] sm:$0xff]
    %v616 = vld [vmem:[%s13 + $0x18] sm:$0xff]
    %618 = vset.pattern.permute.xlu0 0
    %619 = vperm.xlu0 %618, %v613
    %v620 = vpop.permute.xlu0 %619
    %623 = vset.pattern.permute.xlu0 0
    %624 = vperm.xlu0 %623, %v614
    %v625 = vpop.permute.xlu0 %624
    %628 = vset.pattern.permute.xlu0 0
    %629 = vperm.xlu0 %628, %v615
    %v630 = vpop.permute.xlu0 %629
    %633 = vset.pattern.permute.xlu0 0
    %634 = vperm.xlu0 %633, %v616
    %v635 = vpop.permute.xlu0 %634
    %v641 = vunpack.c.l.b16 %v609
    %v642 = vunpack.c.l.b16 %v610
    %v643 = vunpack.c.l.b16 %v611
    %v644 = vunpack.c.l.b16 %v612
    %v645 = vpack.c.b16 %v642, %v641
    %v646 = vpack.c.b16 %v644, %v643
    %v648 = vsel %vm168, %v645, 0
    %v651 = vsel %vm168, %v646, 0
    %653 = vmatprep.subr.bf16.mxu0 0
    %654 = vmatpush1.bf16.msra.mxu0 0
    %655 = vmatprep.subr.bf16.mxu0 0
    %656 = vmatpush1.bf16.msra.mxu0 0
    %657 = vmatprep.subr.bf16.mxu0 0
    %658 = vmatpush1.bf16.msra.mxu0 0
    %659 = vmatprep.subr.bf16.mxu0 0
    %660 = vmatpush1.bf16.msra.mxu0 0
    %661 = vmatprep.subr.bf16.mxu0 0
    %662 = vmatpush1.bf16.msra.mxu0 0
    %663 = vmatprep.subr.bf16.mxu0 0
    %664 = vmatpush1.bf16.msra.mxu0 0
    %665 = vmatprep.subr.bf16.mxu0 0
    %666 = vmatpush1.bf16.msra.mxu0 %v608
    %667 = vmatprep.subr.bf16.mxu0 0
    %668 = vmatpush1.bf16.msra.mxu0 %v607
    %669 = vmatprep.subr.bf16.mxu0 0
    %670 = vmatpush2.bf16.msra.mxu0 0
    %671 = vmatprep.subr.bf16.mxu0 0
    %672 = vmatpush2.bf16.msra.mxu0 0
    %673 = vmatprep.subr.bf16.mxu0 0
    %674 = vmatpush2.bf16.msra.mxu0 0
    %675 = vmatprep.subr.bf16.mxu0 0
    %676 = vmatpush2.bf16.msra.mxu0 0
    %677 = vmatprep.subr.bf16.mxu0 0
    %678 = vmatpush2.bf16.msra.mxu0 0
    %679 = vmatprep.subr.bf16.mxu0 0
    %680 = vmatpush2.bf16.msra.mxu0 0
    %681 = vmatprep.subr.bf16.mxu0 0
    %682 = vmatpush2.bf16.msra.mxu0 0
    %683 = vmatprep.subr.bf16.mxu0 0
    %684 = vmatpush2.bf16.msra.mxu0 0
    %685 = vmatprep.mubr.bf16.mxu0 0
    %686 = vmatmul.mubr.bf16.gmra.mxu0 %v648
    %v687 = vpop.f32.mrf.mxu0
    %v688 = vadd.f32 %v620, %v687
    %v689 = vpop.f32.mrf.mxu0
    %v690 = vpop.f32.mrf.mxu0
    %v691 = vadd.f32 %v625, %v690
    %v692 = vpop.f32.mrf.mxu0
    %693 = vmatprep.mubr.bf16.mxu0 0
    %694 = vmatmul.mubr.bf16.gmra.mxu0 %v651
    %v695 = vpop.f32.mrf.mxu0
    %v696 = vadd.f32 %v630, %v695
    %v697 = vpop.f32.mrf.mxu0
    %v698 = vpop.f32.mrf.mxu0
    %v699 = vadd.f32 %v635, %v698
    %v700 = vpop.f32.mrf.mxu0
    %701 = vdwg.mxu0
    %v702 = vpack.c.bf16 %v691, %v688
    %v703 = vpack.c.bf16 %v699, %v696
    %v705 = vunpack.c.l.b16 %v574
    %v706 = vunpack.c.h.b16 %v574
    %v707 = vpack.c.b16 %v705, %v705
    %v708 = vpack.c.b16 %v706, %v706
    %v712 = vunpack.c.l.b16 %v702
    %v713 = vunpack.c.h.b16 %v702
    %v714 = vpack.c.b16 %v712, %v712
    %v715 = vpack.c.b16 %v713, %v713
    %v717 = vunpack.c.l.b16 %v703
    %v718 = vunpack.c.h.b16 %v703
    %v719 = vpack.c.b16 %v717, %v717
    %v720 = vpack.c.b16 %v718, %v718
    %721 = vxpose.xlu0.c.b16.start [1/8] %v707, 128
    %722 = vxpose.xlu0.c.b16.cont [2/8] 0, 128
    %723 = vxpose.xlu0.c.b16.cont [3/8] 0, 128
    %724 = vxpose.xlu0.c.b16.cont [4/8] 0, 128
    %725 = vxpose.xlu0.c.b16.cont [5/8] 0, 128
    %726 = vxpose.xlu0.c.b16.cont [6/8] 0, 128
    %727 = vxpose.xlu0.c.b16.cont [7/8] 0, 128
    %728 = vxpose.xlu0.c.b16.end [8/8] 0, 128
    %v729 = vpop.trf.xlu0
    %v730 = vpop.trf.xlu0
    %v731 = vpop.trf.xlu0
    %v732 = vpop.trf.xlu0
    %v733 = vpop.trf.xlu0
    %v734 = vpop.trf.xlu0
    %v735 = vpop.trf.xlu0
    %v736 = vpop.trf.xlu0
    %vm737 = vcmask 64512
    %v739 = vsel %vm737, %v729, 0
    %vm741 = vcmask 1043456
    %v743 = vsel %vm741, %v714, 0
    %745 = vmatprep.subr.bf16.mxu0 0
    %746 = vmatpush1.bf16.msra.mxu0 0
    %747 = vmatprep.subr.bf16.mxu0 0
    %748 = vmatpush1.bf16.msra.mxu0 0
    %749 = vmatprep.subr.bf16.mxu0 0
    %750 = vmatpush1.bf16.msra.mxu0 0
    %751 = vmatprep.subr.bf16.mxu0 0
    %752 = vmatpush1.bf16.msra.mxu0 0
    %753 = vmatprep.subr.bf16.mxu0 0
    %754 = vmatpush1.bf16.msra.mxu0 0
    %755 = vmatprep.subr.bf16.mxu0 0
    %756 = vmatpush1.bf16.msra.mxu0 0
    %757 = vmatprep.subr.bf16.mxu0 0
    %758 = vmatpush1.bf16.msra.mxu0 0
    %759 = vmatprep.subr.bf16.mxu0 0
    %760 = vmatpush1.bf16.msra.mxu0 %v743
    %761 = vmatprep.subr.bf16.mxu0 0
    %762 = vmatpush2.bf16.msra.mxu0 0
    %763 = vmatprep.subr.bf16.mxu0 0
    %764 = vmatpush2.bf16.msra.mxu0 0
    %765 = vmatprep.subr.bf16.mxu0 0
    %766 = vmatpush2.bf16.msra.mxu0 0
    %767 = vmatprep.subr.bf16.mxu0 0
    %768 = vmatpush2.bf16.msra.mxu0 0
    %769 = vmatprep.subr.bf16.mxu0 0
    %770 = vmatpush2.bf16.msra.mxu0 0
    %771 = vmatprep.subr.bf16.mxu0 0
    %772 = vmatpush2.bf16.msra.mxu0 0
    %773 = vmatprep.subr.bf16.mxu0 0
    %774 = vmatpush2.bf16.msra.mxu0 0
    %775 = vmatprep.subr.bf16.mxu0 0
    %776 = vmatpush2.bf16.msra.mxu0 0
    %777 = vmatprep.mubr.bf16.mxu0 0
    %778 = vmatmul.mubr.bf16.gmra.mxu0 %v739
    %v779 = vpop.f32.mrf.mxu0
    %v780 = vadd.f32 0.0, %v779
    %v781 = vpop.f32.mrf.mxu0
    %v782 = vpop.f32.mrf.mxu0
    %v783 = vpop.f32.mrf.mxu0
    %784 = vdwg.mxu0
    %785 = vxpose.xlu0.c.b16.start [1/8] %v708, 128
    %786 = vxpose.xlu0.c.b16.cont [2/8] 0, 128
    %787 = vxpose.xlu0.c.b16.cont [3/8] 0, 128
    %788 = vxpose.xlu0.c.b16.cont [4/8] 0, 128
    %789 = vxpose.xlu0.c.b16.cont [5/8] 0, 128
    %790 = vxpose.xlu0.c.b16.cont [6/8] 0, 128
    %791 = vxpose.xlu0.c.b16.cont [7/8] 0, 128
    %792 = vxpose.xlu0.c.b16.end [8/8] 0, 128
    %v793 = vpop.trf.xlu0
    %v794 = vpop.trf.xlu0
    %v795 = vpop.trf.xlu0
    %v796 = vpop.trf.xlu0
    %v797 = vpop.trf.xlu0
    %v798 = vpop.trf.xlu0
    %v799 = vpop.trf.xlu0
    %v800 = vpop.trf.xlu0
    %v802 = vsel %vm737, %v793, 0
    %v805 = vsel %vm741, %v715, 0
    %807 = vmatprep.subr.bf16.mxu0 0
    %808 = vmatpush1.bf16.msra.mxu0 0
    %809 = vmatprep.subr.bf16.mxu0 0
    %810 = vmatpush1.bf16.msra.mxu0 0
    %811 = vmatprep.subr.bf16.mxu0 0
    %812 = vmatpush1.bf16.msra.mxu0 0
    %813 = vmatprep.subr.bf16.mxu0 0
    %814 = vmatpush1.bf16.msra.mxu0 0
    %815 = vmatprep.subr.bf16.mxu0 0
    %816 = vmatpush1.bf16.msra.mxu0 0
    %817 = vmatprep.subr.bf16.mxu0 0
    %818 = vmatpush1.bf16.msra.mxu0 0
    %819 = vmatprep.subr.bf16.mxu0 0
    %820 = vmatpush1.bf16.msra.mxu0 0
    %821 = vmatprep.subr.bf16.mxu0 0
    %822 = vmatpush1.bf16.msra.mxu0 %v805
    %823 = vmatprep.subr.bf16.mxu0 0
    %824 = vmatpush2.bf16.msra.mxu0 0
    %825 = vmatprep.subr.bf16.mxu0 0
    %826 = vmatpush2.bf16.msra.mxu0 0
    %827 = vmatprep.subr.bf16.mxu0 0
    %828 = vmatpush2.bf16.msra.mxu0 0
    %829 = vmatprep.subr.bf16.mxu0 0
    %830 = vmatpush2.bf16.msra.mxu0 0
    %831 = vmatprep.subr.bf16.mxu0 0
    %832 = vmatpush2.bf16.msra.mxu0 0
    %833 = vmatprep.subr.bf16.mxu0 0
    %834 = vmatpush2.bf16.msra.mxu0 0
    %835 = vmatprep.subr.bf16.mxu0 0
    %836 = vmatpush2.bf16.msra.mxu0 0
    %837 = vmatprep.subr.bf16.mxu0 0
    %838 = vmatpush2.bf16.msra.mxu0 0
    %839 = vmatprep.mubr.bf16.mxu0 0
    %840 = vmatmul.mubr.bf16.gmra.mxu0 %v802
    %v841 = vpop.f32.mrf.mxu0
    %v842 = vadd.f32 0.0, %v841
    %v843 = vpop.f32.mrf.mxu0
    %v844 = vpop.f32.mrf.mxu0
    %v845 = vpop.f32.mrf.mxu0
    %846 = vdwg.mxu0
    %v847 = vsel %vm377, %v780, -inf
    %848 = vmax.xlane.f32.xlu0 %v847
    %v849 = vpop.xlane.xlu0 %848
    %v850 = vsel %vm377, %v842, -inf
    %851 = vmax.xlane.f32.xlu0 %v850
    %v852 = vpop.xlane.xlu0 %851
    %v853 = vsub.f32 %v780, %v849
    %v854 = vsub.f32 %v842, %v852
    %v855 = vmul.f32 %v853, 1.442695
    %v856 = vpow.pop %v855
    %v857 = vmul.f32 %v854, 1.442695
    %v858 = vpow.pop %v857
    %v859 = vsel %vm377, %v856, 0.0
    %860 = vadd.xlane.f32.xlu0 %v859
    %v861 = vpop.xlane.xlu0 %860
    %v862 = vsel %vm377, %v858, 0.0
    %863 = vadd.xlane.f32.xlu0 %v862
    %v864 = vpop.xlane.xlu0 %863
    %v865 = vrcp.pop %v861
    %v866 = vrcp.pop %v864
    %v867 = vmul.f32 %v856, %v865
    %v868 = vmul.f32 %v858, %v866
    %v869 = vpack.c.bf16 %v867, %v867
    %v870 = vpack.c.bf16 %v868, %v868
    %v872 = vsel %vm377, %v719, 0
    %v875 = vsel %vm377, %v869, 0
    %877 = vmatprep.subr.bf16.mxu0 0
    %878 = vmatpush1.bf16.xpose.msra.mxu0 0
    %879 = vmatprep.subr.bf16.mxu0 0
    %880 = vmatpush1.bf16.xpose.msra.mxu0 0
    %881 = vmatprep.subr.bf16.mxu0 0
    %882 = vmatpush1.bf16.xpose.msra.mxu0 0
    %883 = vmatprep.subr.bf16.mxu0 0
    %884 = vmatpush1.bf16.xpose.msra.mxu0 0
    %885 = vmatprep.subr.bf16.mxu0 0
    %886 = vmatpush1.bf16.xpose.msra.mxu0 0
    %887 = vmatprep.subr.bf16.mxu0 0
    %888 = vmatpush1.bf16.xpose.msra.mxu0 0
    %889 = vmatprep.subr.bf16.mxu0 0
    %890 = vmatpush1.bf16.xpose.msra.mxu0 0
    %891 = vmatprep.subr.bf16.mxu0 0
    %892 = vmatpush1.bf16.xpose.msra.mxu0 %v875
    %893 = vmatprep.subr.bf16.mxu0 0
    %894 = vmatpush2.bf16.xpose.msra.mxu0 0
    %895 = vmatprep.subr.bf16.mxu0 0
    %896 = vmatpush2.bf16.xpose.msra.mxu0 0
    %897 = vmatprep.subr.bf16.mxu0 0
    %898 = vmatpush2.bf16.xpose.msra.mxu0 0
    %899 = vmatprep.subr.bf16.mxu0 0
    %900 = vmatpush2.bf16.xpose.msra.mxu0 0
    %901 = vmatprep.subr.bf16.mxu0 0
    %902 = vmatpush2.bf16.xpose.msra.mxu0 0
    %903 = vmatprep.subr.bf16.mxu0 0
    %904 = vmatpush2.bf16.xpose.msra.mxu0 0
    %905 = vmatprep.subr.bf16.mxu0 0
    %906 = vmatpush2.bf16.xpose.msra.mxu0 0
    %907 = vmatprep.subr.bf16.mxu0 0
    %908 = vmatpush2.bf16.xpose.msra.mxu0 0
    %909 = vmatprep.mubr.bf16.mxu0 0
    %910 = vmatmul.mubr.bf16.gmra.mxu0 %v872
    %v911 = vpop.f32.mrf.mxu0
    %v912 = vadd.f32 0.0, %v911
    %v913 = vpop.f32.mrf.mxu0
    %v914 = vpop.f32.mrf.mxu0
    %v915 = vpop.f32.mrf.mxu0
    %916 = vdwg.mxu0
    %v918 = vsel %vm377, %v720, 0
    %v921 = vsel %vm377, %v870, 0
    %923 = vmatprep.subr.bf16.mxu0 0
    %924 = vmatpush1.bf16.xpose.msra.mxu0 0
    %925 = vmatprep.subr.bf16.mxu0 0
    %926 = vmatpush1.bf16.xpose.msra.mxu0 0
    %927 = vmatprep.subr.bf16.mxu0 0
    %928 = vmatpush1.bf16.xpose.msra.mxu0 0
    %929 = vmatprep.subr.bf16.mxu0 0
    %930 = vmatpush1.bf16.xpose.msra.mxu0 0
    %931 = vmatprep.subr.bf16.mxu0 0
    %932 = vmatpush1.bf16.xpose.msra.mxu0 0
    %933 = vmatprep.subr.bf16.mxu0 0
    %934 = vmatpush1.bf16.xpose.msra.mxu0 0
    %935 = vmatprep.subr.bf16.mxu0 0
    %936 = vmatpush1.bf16.xpose.msra.mxu0 0
    %937 = vmatprep.subr.bf16.mxu0 0
    %938 = vmatpush1.bf16.xpose.msra.mxu0 %v921
    %939 = vmatprep.subr.bf16.mxu0 0
    %940 = vmatpush2.bf16.xpose.msra.mxu0 0
    %941 = vmatprep.subr.bf16.mxu0 0
    %942 = vmatpush2.bf16.xpose.msra.mxu0 0
    %943 = vmatprep.subr.bf16.mxu0 0
    %944 = vmatpush2.bf16.xpose.msra.mxu0 0
    %945 = vmatprep.subr.bf16.mxu0 0
    %946 = vmatpush2.bf16.xpose.msra.mxu0 0
    %947 = vmatprep.subr.bf16.mxu0 0
    %948 = vmatpush2.bf16.xpose.msra.mxu0 0
    %949 = vmatprep.subr.bf16.mxu0 0
    %950 = vmatpush2.bf16.xpose.msra.mxu0 0
    %951 = vmatprep.subr.bf16.mxu0 0
    %952 = vmatpush2.bf16.xpose.msra.mxu0 0
    %953 = vmatprep.subr.bf16.mxu0 0
    %954 = vmatpush2.bf16.xpose.msra.mxu0 0
    %955 = vmatprep.mubr.bf16.mxu0 0
    %956 = vmatmul.mubr.bf16.gmra.mxu0 %v918
    %v957 = vpop.f32.mrf.mxu0
    %v958 = vadd.f32 0.0, %v957
    %v959 = vpop.f32.mrf.mxu0
    %v960 = vpop.f32.mrf.mxu0
    %v961 = vpop.f32.mrf.mxu0
    %962 = vdwg.mxu0
    %963 = vrot.lane.b32.xlu0 %v707, 120
    %v964 = vpop.permute.xlu0 %963
    %966 = vxpose.xlu0.c.b16.start [1/8] %v964, 128
    %967 = vxpose.xlu0.c.b16.cont [2/8] 0, 128
    %968 = vxpose.xlu0.c.b16.cont [3/8] 0, 128
    %969 = vxpose.xlu0.c.b16.cont [4/8] 0, 128
    %970 = vxpose.xlu0.c.b16.cont [5/8] 0, 128
    %971 = vxpose.xlu0.c.b16.cont [6/8] 0, 128
    %972 = vxpose.xlu0.c.b16.cont [7/8] 0, 128
    %973 = vxpose.xlu0.c.b16.end [8/8] 0, 128
    %v974 = vpop.trf.xlu0
    %v975 = vpop.trf.xlu0
    %v976 = vpop.trf.xlu0
    %v977 = vpop.trf.xlu0
    %v978 = vpop.trf.xlu0
    %v979 = vpop.trf.xlu0
    %v980 = vpop.trf.xlu0
    %v981 = vpop.trf.xlu0
    %982 = vrot.lane.b32.xlu0 %v714, 112
    %v983 = vpop.permute.xlu0 %982
    %v985 = vsel %vm737, %v974, 0
    %v988 = vsel %vm741, %v983, 0
    %990 = vmatprep.subr.bf16.mxu0 0
    %991 = vmatpush1.bf16.msra.mxu0 0
    %992 = vmatprep.subr.bf16.mxu0 0
    %993 = vmatpush1.bf16.msra.mxu0 0
    %994 = vmatprep.subr.bf16.mxu0 0
    %995 = vmatpush1.bf16.msra.mxu0 0
    %996 = vmatprep.subr.bf16.mxu0 0
    %997 = vmatpush1.bf16.msra.mxu0 0
    %998 = vmatprep.subr.bf16.mxu0 0
    %999 = vmatpush1.bf16.msra.mxu0 0
    %1000 = vmatprep.subr.bf16.mxu0 0
    %1001 = vmatpush1.bf16.msra.mxu0 0
    %1002 = vmatprep.subr.bf16.mxu0 0
    %1003 = vmatpush1.bf16.msra.mxu0 0
    %1004 = vmatprep.subr.bf16.mxu0 0
    %1005 = vmatpush1.bf16.msra.mxu0 %v988
    %1006 = vmatprep.subr.bf16.mxu0 0
    %1007 = vmatpush2.bf16.msra.mxu0 0
    %1008 = vmatprep.subr.bf16.mxu0 0
    %1009 = vmatpush2.bf16.msra.mxu0 0
    %1010 = vmatprep.subr.bf16.mxu0 0
    %1011 = vmatpush2.bf16.msra.mxu0 0
    %1012 = vmatprep.subr.bf16.mxu0 0
    %1013 = vmatpush2.bf16.msra.mxu0 0
    %1014 = vmatprep.subr.bf16.mxu0 0
    %1015 = vmatpush2.bf16.msra.mxu0 0
    %1016 = vmatprep.subr.bf16.mxu0 0
    %1017 = vmatpush2.bf16.msra.mxu0 0
    %1018 = vmatprep.subr.bf16.mxu0 0
    %1019 = vmatpush2.bf16.msra.mxu0 0
    %1020 = vmatprep.subr.bf16.mxu0 0
    %1021 = vmatpush2.bf16.msra.mxu0 0
    %1022 = vmatprep.mubr.bf16.mxu0 0
    %1023 = vmatmul.mubr.bf16.gmra.mxu0 %v985
    %v1024 = vpop.f32.mrf.mxu0
    %v1025 = vadd.f32 0.0, %v1024
    %v1026 = vpop.f32.mrf.mxu0
    %v1027 = vpop.f32.mrf.mxu0
    %v1028 = vpop.f32.mrf.mxu0
    %1029 = vdwg.mxu0
    %1030 = vrot.lane.b32.xlu0 %v708, 120
    %v1031 = vpop.permute.xlu0 %1030
    %1033 = vxpose.xlu0.c.b16.start [1/8] %v1031, 128
    %1034 = vxpose.xlu0.c.b16.cont [2/8] 0, 128
    %1035 = vxpose.xlu0.c.b16.cont [3/8] 0, 128
    %1036 = vxpose.xlu0.c.b16.cont [4/8] 0, 128
    %1037 = vxpose.xlu0.c.b16.cont [5/8] 0, 128
    %1038 = vxpose.xlu0.c.b16.cont [6/8] 0, 128
    %1039 = vxpose.xlu0.c.b16.cont [7/8] 0, 128
    %1040 = vxpose.xlu0.c.b16.end [8/8] 0, 128
    %v1041 = vpop.trf.xlu0
    %v1042 = vpop.trf.xlu0
    %v1043 = vpop.trf.xlu0
    %v1044 = vpop.trf.xlu0
    %v1045 = vpop.trf.xlu0
    %v1046 = vpop.trf.xlu0
    %v1047 = vpop.trf.xlu0
    %v1048 = vpop.trf.xlu0
    %1049 = vrot.lane.b32.xlu0 %v715, 112
    %v1050 = vpop.permute.xlu0 %1049
    %v1052 = vsel %vm737, %v1041, 0
    %v1055 = vsel %vm741, %v1050, 0
    %1057 = vmatprep.subr.bf16.mxu0 0
    %1058 = vmatpush1.bf16.msra.mxu0 0
    %1059 = vmatprep.subr.bf16.mxu0 0
    %1060 = vmatpush1.bf16.msra.mxu0 0
    %1061 = vmatprep.subr.bf16.mxu0 0
    %1062 = vmatpush1.bf16.msra.mxu0 0
    %1063 = vmatprep.subr.bf16.mxu0 0
    %1064 = vmatpush1.bf16.msra.mxu0 0
    %1065 = vmatprep.subr.bf16.mxu0 0
    %1066 = vmatpush1.bf16.msra.mxu0 0
    %1067 = vmatprep.subr.bf16.mxu0 0
    %1068 = vmatpush1.bf16.msra.mxu0 0
    %1069 = vmatprep.subr.bf16.mxu0 0
    %1070 = vmatpush1.bf16.msra.mxu0 0
    %1071 = vmatprep.subr.bf16.mxu0 0
    %1072 = vmatpush1.bf16.msra.mxu0 %v1055
    %1073 = vmatprep.subr.bf16.mxu0 0
    %1074 = vmatpush2.bf16.msra.mxu0 0
    %1075 = vmatprep.subr.bf16.mxu0 0
    %1076 = vmatpush2.bf16.msra.mxu0 0
    %1077 = vmatprep.subr.bf16.mxu0 0
    %1078 = vmatpush2.bf16.msra.mxu0 0
    %1079 = vmatprep.subr.bf16.mxu0 0
    %1080 = vmatpush2.bf16.msra.mxu0 0
    %1081 = vmatprep.subr.bf16.mxu0 0
    %1082 = vmatpush2.bf16.msra.mxu0 0
    %1083 = vmatprep.subr.bf16.mxu0 0
    %1084 = vmatpush2.bf16.msra.mxu0 0
    %1085 = vmatprep.subr.bf16.mxu0 0
    %1086 = vmatpush2.bf16.msra.mxu0 0
    %1087 = vmatprep.subr.bf16.mxu0 0
    %1088 = vmatpush2.bf16.msra.mxu0 0
    %1089 = vmatprep.mubr.bf16.mxu0 0
    %1090 = vmatmul.mubr.bf16.gmra.mxu0 %v1052
    %v1091 = vpop.f32.mrf.mxu0
    %v1092 = vadd.f32 0.0, %v1091
    %v1093 = vpop.f32.mrf.mxu0
    %v1094 = vpop.f32.mrf.mxu0
    %v1095 = vpop.f32.mrf.mxu0
    %1096 = vdwg.mxu0
    %v1097 = vsel %vm377, %v1025, -inf
    %1098 = vmax.xlane.f32.xlu0 %v1097
    %v1099 = vpop.xlane.xlu0 %1098
    %v1100 = vsel %vm377, %v1092, -inf
    %1101 = vmax.xlane.f32.xlu0 %v1100
    %v1102 = vpop.xlane.xlu0 %1101
    %v1103 = vsub.f32 %v1025, %v1099
    %v1104 = vsub.f32 %v1092, %v1102
    %v1105 = vmul.f32 %v1103, 1.442695
    %v1106 = vpow.pop %v1105
    %v1107 = vmul.f32 %v1104, 1.442695
    %v1108 = vpow.pop %v1107
    %v1109 = vsel %vm377, %v1106, 0.0
    %1110 = vadd.xlane.f32.xlu0 %v1109
    %v1111 = vpop.xlane.xlu0 %1110
    %v1112 = vsel %vm377, %v1108, 0.0
    %1113 = vadd.xlane.f32.xlu0 %v1112
    %v1114 = vpop.xlane.xlu0 %1113
    %v1115 = vrcp.pop %v1111
    %v1116 = vrcp.pop %v1114
    %v1117 = vmul.f32 %v1106, %v1115
    %v1118 = vmul.f32 %v1108, %v1116
    %v1119 = vpack.c.bf16 %v1117, %v1117
    %v1120 = vpack.c.bf16 %v1118, %v1118
    %1121 = vrot.lane.b32.xlu0 %v719, 112
    %v1122 = vpop.permute.xlu0 %1121
    %v1124 = vsel %vm377, %v1122, 0
    %v1127 = vsel %vm377, %v1119, 0
    %1129 = vmatprep.subr.bf16.mxu0 0
    %1130 = vmatpush1.bf16.xpose.msra.mxu0 0
    %1131 = vmatprep.subr.bf16.mxu0 0
    %1132 = vmatpush1.bf16.xpose.msra.mxu0 0
    %1133 = vmatprep.subr.bf16.mxu0 0
    %1134 = vmatpush1.bf16.xpose.msra.mxu0 0
    %1135 = vmatprep.subr.bf16.mxu0 0
    %1136 = vmatpush1.bf16.xpose.msra.mxu0 0
    %1137 = vmatprep.subr.bf16.mxu0 0
    %1138 = vmatpush1.bf16.xpose.msra.mxu0 0
    %1139 = vmatprep.subr.bf16.mxu0 0
    %1140 = vmatpush1.bf16.xpose.msra.mxu0 0
    %1141 = vmatprep.subr.bf16.mxu0 0
    %1142 = vmatpush1.bf16.xpose.msra.mxu0 0
    %1143 = vmatprep.subr.bf16.mxu0 0
    %1144 = vmatpush1.bf16.xpose.msra.mxu0 %v1127
    %1145 = vmatprep.subr.bf16.mxu0 0
    %1146 = vmatpush2.bf16.xpose.msra.mxu0 0
    %1147 = vmatprep.subr.bf16.mxu0 0
    %1148 = vmatpush2.bf16.xpose.msra.mxu0 0
    %1149 = vmatprep.subr.bf16.mxu0 0
    %1150 = vmatpush2.bf16.xpose.msra.mxu0 0
    %1151 = vmatprep.subr.bf16.mxu0 0
    %1152 = vmatpush2.bf16.xpose.msra.mxu0 0
    %1153 = vmatprep.subr.bf16.mxu0 0
    %1154 = vmatpush2.bf16.xpose.msra.mxu0 0
    %1155 = vmatprep.subr.bf16.mxu0 0
    %1156 = vmatpush2.bf16.xpose.msra.mxu0 0
    %1157 = vmatprep.subr.bf16.mxu0 0
    %1158 = vmatpush2.bf16.xpose.msra.mxu0 0
    %1159 = vmatprep.subr.bf16.mxu0 0
    %1160 = vmatpush2.bf16.xpose.msra.mxu0 0
    %1161 = vmatprep.mubr.bf16.mxu0 0
    %1162 = vmatmul.mubr.bf16.gmra.mxu0 %v1124
    %v1163 = vpop.f32.mrf.mxu0
    %v1164 = vadd.f32 0.0, %v1163
    %v1165 = vpop.f32.mrf.mxu0
    %v1166 = vpop.f32.mrf.mxu0
    %v1167 = vpop.f32.mrf.mxu0
    %1168 = vdwg.mxu0
    %1169 = vrot.lane.b32.xlu0 %v720, 112
    %v1170 = vpop.permute.xlu0 %1169
    %v1172 = vsel %vm377, %v1170, 0
    %v1175 = vsel %vm377, %v1120, 0
    %1177 = vmatprep.subr.bf16.mxu0 0
    %1178 = vmatpush1.bf16.xpose.msra.mxu0 0
    %1179 = vmatprep.subr.bf16.mxu0 0
    %1180 = vmatpush1.bf16.xpose.msra.mxu0 0
    %1181 = vmatprep.subr.bf16.mxu0 0
    %1182 = vmatpush1.bf16.xpose.msra.mxu0 0
    %1183 = vmatprep.subr.bf16.mxu0 0
    %1184 = vmatpush1.bf16.xpose.msra.mxu0 0
    %1185 = vmatprep.subr.bf16.mxu0 0
    %1186 = vmatpush1.bf16.xpose.msra.mxu0 0
    %1187 = vmatprep.subr.bf16.mxu0 0
    %1188 = vmatpush1.bf16.xpose.msra.mxu0 0
    %1189 = vmatprep.subr.bf16.mxu0 0
    %1190 = vmatpush1.bf16.xpose.msra.mxu0 0
    %1191 = vmatprep.subr.bf16.mxu0 0
    %1192 = vmatpush1.bf16.xpose.msra.mxu0 %v1175
    %1193 = vmatprep.subr.bf16.mxu0 0
    %1194 = vmatpush2.bf16.xpose.msra.mxu0 0
    %1195 = vmatprep.subr.bf16.mxu0 0
    %1196 = vmatpush2.bf16.xpose.msra.mxu0 0
    %1197 = vmatprep.subr.bf16.mxu0 0
    %1198 = vmatpush2.bf16.xpose.msra.mxu0 0
    %1199 = vmatprep.subr.bf16.mxu0 0
    %1200 = vmatpush2.bf16.xpose.msra.mxu0 0
    %1201 = vmatprep.subr.bf16.mxu0 0
    %1202 = vmatpush2.bf16.xpose.msra.mxu0 0
    %1203 = vmatprep.subr.bf16.mxu0 0
    %1204 = vmatpush2.bf16.xpose.msra.mxu0 0
    %1205 = vmatprep.subr.bf16.mxu0 0
    %1206 = vmatpush2.bf16.xpose.msra.mxu0 0
    %1207 = vmatprep.subr.bf16.mxu0 0
    %1208 = vmatpush2.bf16.xpose.msra.mxu0 0
    %1209 = vmatprep.mubr.bf16.mxu0 0
    %1210 = vmatmul.mubr.bf16.gmra.mxu0 %v1172
    %v1211 = vpop.f32.mrf.mxu0
    %v1212 = vadd.f32 0.0, %v1211
    %v1213 = vpop.f32.mrf.mxu0
    %v1214 = vpop.f32.mrf.mxu0
    %v1215 = vpop.f32.mrf.mxu0
    %1216 = vdwg.mxu0
    %1219 = vrot.lane.b32.xlu0 %v1164, 8
    %v1220 = vpop.permute.xlu0 %1219
    %1221 = vrot.lane.b32.xlu0 %v1212, 8
    %v1222 = vpop.permute.xlu0 %1221
    %v1225 = vsel %vm737, %v912, %v1220
    %v1226 = vsel %vm737, %v958, %v1222
    %1227 = vxpose.xlu0.b32.start [1/16] %v1225, 128
    %1228 = vxpose.xlu0.b32.cont [2/16] %v1226, 128
    %1229 = vxpose.xlu0.b32.cont [3/16] 0.0, 128
    %1230 = vxpose.xlu0.b32.cont [4/16] 0.0, 128
    %1231 = vxpose.xlu0.b32.cont [5/16] 0.0, 128
    %1232 = vxpose.xlu0.b32.cont [6/16] 0.0, 128
    %1233 = vxpose.xlu0.b32.cont [7/16] 0.0, 128
    %1234 = vxpose.xlu0.b32.cont [8/16] 0.0, 128
    %1235 = vxpose.xlu0.b32.cont [9/16] 0.0, 128
    %1236 = vxpose.xlu0.b32.cont [10/16] 0.0, 128
    %1237 = vxpose.xlu0.b32.cont [11/16] 0.0, 128
    %1238 = vxpose.xlu0.b32.cont [12/16] 0.0, 128
    %1239 = vxpose.xlu0.b32.cont [13/16] 0.0, 128
    %1240 = vxpose.xlu0.b32.cont [14/16] 0.0, 128
    %1241 = vxpose.xlu0.b32.cont [15/16] 0.0, 128
    %1242 = vxpose.xlu0.b32.end [16/16] 0.0, 128
    %v1243 = vpop.trf.xlu0
    %v1244 = vpop.trf.xlu0
    %v1245 = vpop.trf.xlu0
    %v1246 = vpop.trf.xlu0
    %v1247 = vpop.trf.xlu0
    %v1248 = vpop.trf.xlu0
    %v1249 = vpop.trf.xlu0
    %v1250 = vpop.trf.xlu0
    %v1251 = vpop.trf.xlu0
    %v1252 = vpop.trf.xlu0
    %v1253 = vpop.trf.xlu0
    %v1254 = vpop.trf.xlu0
    %v1255 = vpop.trf.xlu0
    %v1256 = vpop.trf.xlu0
    %v1257 = vpop.trf.xlu0
    %v1258 = vpop.trf.xlu0
    %v1259 = vmul.f32 %v1243, %v469
    %v1260 = vmul.f32 %v1244, %v470
    %v1261 = vpack.c.bf16 %v1260, %v1259
    %v1262 = vld [vmem:[%s7] sm:$0xf]
    %v1263 = vld [vmem:[%s7 + $0x4] sm:$0xf]
    %v1264 = vld [vmem:[%s11 + $0x7] sm:$0x1]
    %v1265 = vlaneseq
    %v1266 = vshrl.u32 %v1265, 7
    %v1267 = vsub.s32 0, %v1266
    %v1268 = vrot.slane %v1264, %v1267
    %v1271 = vunpack.c.l.b16 %v1262
    %v1272 = vunpack.c.l.b16 %v1263
    %v1273 = vpack.c.b16 %v1272, %v1271
    %v1276 = vsel %vm377, %v1261, 0
    %1278 = vmatprep.subr.bf16.mxu0 0
    %1279 = vmatpush1.bf16.msra.mxu0 0
    %1280 = vmatprep.subr.bf16.mxu0 0
    %1281 = vmatpush1.bf16.msra.mxu0 0
    %1282 = vmatprep.subr.bf16.mxu0 0
    %1283 = vmatpush1.bf16.msra.mxu0 0
    %1284 = vmatprep.subr.bf16.mxu0 0
    %1285 = vmatpush1.bf16.msra.mxu0 0
    %1286 = vmatprep.subr.bf16.mxu0 0
    %1287 = vmatpush1.bf16.msra.mxu0 0
    %1288 = vmatprep.subr.bf16.mxu0 0
    %1289 = vmatpush1.bf16.msra.mxu0 0
    %1290 = vmatprep.subr.bf16.mxu0 0
    %1291 = vmatpush1.bf16.msra.mxu0 0
    %1292 = vmatprep.subr.bf16.mxu0 0
    %1293 = vmatpush1.bf16.msra.mxu0 %v1273
    %1294 = vmatprep.subr.bf16.mxu0 0
    %1295 = vmatpush2.bf16.msra.mxu0 0
    %1296 = vmatprep.subr.bf16.mxu0 0
    %1297 = vmatpush2.bf16.msra.mxu0 0
    %1298 = vmatprep.subr.bf16.mxu0 0
    %1299 = vmatpush2.bf16.msra.mxu0 0
    %1300 = vmatprep.subr.bf16.mxu0 0
    %1301 = vmatpush2.bf16.msra.mxu0 0
    %1302 = vmatprep.subr.bf16.mxu0 0
    %1303 = vmatpush2.bf16.msra.mxu0 0
    %1304 = vmatprep.subr.bf16.mxu0 0
    %1305 = vmatpush2.bf16.msra.mxu0 0
    %1306 = vmatprep.subr.bf16.mxu0 0
    %1307 = vmatpush2.bf16.msra.mxu0 0
    %1308 = vmatprep.subr.bf16.mxu0 0
    %1309 = vmatpush2.bf16.msra.mxu0 0
    %1310 = vmatprep.mubr.bf16.mxu0 0
    %1311 = vmatmul.mubr.bf16.gmra.mxu0 %v1276
    %v1312 = vpop.f32.mrf.mxu0
    %v1313 = vadd.f32 %v1268, %v1312
    %v1314 = vpop.f32.mrf.mxu0
    %v1315 = vpop.f32.mrf.mxu0
    %v1316 = vadd.f32 %v1268, %v1315
    %v1317 = vpop.f32.mrf.mxu0
    %1318 = vdwg.mxu0
    %v1319 = vld [vmem:[%s11 + $0x8] sm:$0x1]
    %v1320 = vlaneseq
    %v1321 = vshrl.u32 %v1320, 7
    %v1322 = vsub.s32 0, %v1321
    %v1323 = vrot.slane %v1319, %v1322
    %v1324 = vmul.f32 %v1323, %v1313
    %v1325 = vmul.f32 %v1323, %v1316
    %v1326 = vld [vmem:[%s11 + $0x9] sm:$0x1]
    %v1327 = vld [vmem:[%s11 + $0xa] sm:$0x1]
    %v1328 = vsel %vm168, %v1324, 0.0
    %1329 = vadd.xlane.f32.xlu0 %v1328
    %v1330 = vpop.xlane.xlu0 %1329
    %v1331 = vsel %vm168, %v1325, 0.0
    %1332 = vadd.xlane.f32.xlu0 %v1331
    %v1333 = vpop.xlane.xlu0 %1332
    %v1334 = vmul.f32 %v1330, %v181
    %v1335 = vmul.f32 %v1333, %v181
    %v1336 = vsub.f32 %v1324, %v1334
    %v1337 = vsub.f32 %v1325, %v1335
    %v1338 = vmul.f32 %v1336, %v1336
    %v1339 = vmul.f32 %v1337, %v1337
    %v1340 = vsel %vm168, %v1338, 0.0
    %1341 = vadd.xlane.f32.xlu0 %v1340
    %v1342 = vpop.xlane.xlu0 %1341
    %v1343 = vsel %vm168, %v1339, 0.0
    %1344 = vadd.xlane.f32.xlu0 %v1343
    %v1345 = vpop.xlane.xlu0 %1344
    %v1346 = vmul.f32 %v1342, %v181
    %v1347 = vmul.f32 %v1345, %v181
    %v1348 = vadd.f32 %v1346, 1e-05
    %v1349 = vadd.f32 %v1347, 1e-05
    %v1350 = vrsqrt.pop %v1348
    %v1351 = vrsqrt.pop %v1349
    %v1352 = vmul.f32 %v1336, %v1350
    %v1353 = vmul.f32 %v1337, %v1351
    %v1354 = vlaneseq
    %v1355 = vshrl.u32 %v1354, 7
    %v1356 = vsub.s32 0, %v1355
    %v1357 = vrot.slane %v1326, %v1356
    %v1358 = vmul.f32 %v1352, %v1357
    %v1359 = vmul.f32 %v1353, %v1357
    %v1360 = vlaneseq
    %v1361 = vshrl.u32 %v1360, 7
    %v1362 = vsub.s32 0, %v1361
    %v1363 = vrot.slane %v1327, %v1362
    %v1364 = vadd.f32 %v1358, %v1363
    %v1365 = vadd.f32 %v1359, %v1363
    %v1366 = vmul.f32 %v1364, %v471
    %v1367 = vmul.f32 %v1365, %v472
    %v1368 = vpack.c.bf16 %v1367, %v1366
    %v1369 = vld [vmem:[%s8] sm:$0xf]
    %v1370 = vld [vmem:[%s8 + $0x4] sm:$0xf]
    %v1371 = vld [vmem:[%s8 + $0x8] sm:$0xf]
    %v1372 = vld [vmem:[%s8 + $0xc] sm:$0xf]
    %v1373 = vld [vmem:[%s14] sm:$0x1]
    %v1375 = vlaneseq
    %v1376 = vshrl.u32 %v1375, 7
    %v1377 = vsub.s32 0, %v1376
    %v1378 = vrot.slane %v1373, %v1377
    %v1384 = vunpack.c.l.b16 %v1369
    %v1385 = vunpack.c.l.b16 %v1370
    %v1386 = vunpack.c.l.b16 %v1371
    %v1387 = vunpack.c.l.b16 %v1372
    %v1388 = vpack.c.b16 %v1385, %v1384
    %v1389 = vpack.c.b16 %v1387, %v1386
    %v1393 = vsel %vm168, %v1368, 0
    %1395 = vmatprep.subr.bf16.mxu0 0
    %1396 = vmatpush1.bf16.msra.mxu0 0
    %1397 = vmatprep.subr.bf16.mxu0 0
    %1398 = vmatpush1.bf16.msra.mxu0 0
    %1399 = vmatprep.subr.bf16.mxu0 0
    %1400 = vmatpush1.bf16.msra.mxu0 0
    %1401 = vmatprep.subr.bf16.mxu0 0
    %1402 = vmatpush1.bf16.msra.mxu0 0
    %1403 = vmatprep.subr.bf16.mxu0 0
    %1404 = vmatpush1.bf16.msra.mxu0 0
    %1405 = vmatprep.subr.bf16.mxu0 0
    %1406 = vmatpush1.bf16.msra.mxu0 0
    %1407 = vmatprep.subr.bf16.mxu0 0
    %1408 = vmatpush1.bf16.msra.mxu0 %v1389
    %1409 = vmatprep.subr.bf16.mxu0 0
    %1410 = vmatpush1.bf16.msra.mxu0 %v1388
    %1411 = vmatprep.subr.bf16.mxu0 0
    %1412 = vmatpush2.bf16.msra.mxu0 0
    %1413 = vmatprep.subr.bf16.mxu0 0
    %1414 = vmatpush2.bf16.msra.mxu0 0
    %1415 = vmatprep.subr.bf16.mxu0 0
    %1416 = vmatpush2.bf16.msra.mxu0 0
    %1417 = vmatprep.subr.bf16.mxu0 0
    %1418 = vmatpush2.bf16.msra.mxu0 0
    %1419 = vmatprep.subr.bf16.mxu0 0
    %1420 = vmatpush2.bf16.msra.mxu0 0
    %1421 = vmatprep.subr.bf16.mxu0 0
    %1422 = vmatpush2.bf16.msra.mxu0 0
    %1423 = vmatprep.subr.bf16.mxu0 0
    %1424 = vmatpush2.bf16.msra.mxu0 0
    %1425 = vmatprep.subr.bf16.mxu0 0
    %1426 = vmatpush2.bf16.msra.mxu0 0
    %1427 = vmatprep.mubr.bf16.mxu0 0
    %1428 = vmatmul.mubr.bf16.gmra.mxu0 %v1393
    %v1429 = vpop.f32.mrf.mxu0
    %v1430 = vadd.f32 %v1378, %v1429
    %v1431 = vpop.f32.mrf.mxu0
    %v1432 = vpop.f32.mrf.mxu0
    %v1433 = vadd.f32 %v1378, %v1432
    %v1434 = vpop.f32.mrf.mxu0
    %1435 = vdwg.mxu0
    %v1436 = vmul.f32 %v1430, %v1430
    %v1437 = vmul.f32 %v1433, %v1433
    %v1438 = vmul.f32 %v1430, %v1436
    %v1439 = vmul.f32 %v1433, %v1437
    %v1440 = vmul.f32 %v1438, 0.044715
    %v1441 = vmul.f32 %v1439, 0.044715
    %v1442 = vadd.f32 %v1430, %v1440
    %v1443 = vadd.f32 %v1433, %v1441
    %v1444 = vmul.f32 %v1442, 0.7978846
    %v1445 = vmul.f32 %v1443, 0.7978846
    %v1446 = vtanh.pop %v1444
    %v1447 = vtanh.pop %v1445
    %v1448 = vadd.f32 %v1446, 1.0
    %v1449 = vadd.f32 %v1447, 1.0
    %v1450 = vmul.f32 %v1448, 0.5
    %v1451 = vmul.f32 %v1449, 0.5
    %v1452 = vmul.f32 %v1430, %v1450
    %v1453 = vmul.f32 %v1433, %v1451
    %v1454 = vmul.f32 %v1452, %v473
    %v1455 = vmul.f32 %v1453, %v474
    %v1456 = vpack.c.bf16 %v1455, %v1454
    %v1457 = vld [vmem:[%s9] sm:$0xf]
    %v1458 = vld [vmem:[%s9 + $0x4] sm:$0xf]
    %v1459 = vld [vmem:[%s9 + $0x8] sm:$0xf]
    %v1460 = vld [vmem:[%s9 + $0xc] sm:$0xf]
    %v1461 = vld [vmem:[%s9 + $0x10] sm:$0xf]
    %v1462 = vld [vmem:[%s9 + $0x14] sm:$0xf]
    %v1463 = vld [vmem:[%s9 + $0x18] sm:$0xf]
    %v1464 = vld [vmem:[%s9 + $0x1c] sm:$0xf]
    %v1465 = vld [vmem:[%s9 + $0x20] sm:$0xf]
    %v1466 = vld [vmem:[%s9 + $0x24] sm:$0xf]
    %v1467 = vld [vmem:[%s9 + $0x28] sm:$0xf]
    %v1468 = vld [vmem:[%s9 + $0x2c] sm:$0xf]
    %v1469 = vld [vmem:[%s9 + $0x30] sm:$0xf]
    %v1470 = vld [vmem:[%s9 + $0x34] sm:$0xf]
    %v1471 = vld [vmem:[%s9 + $0x38] sm:$0xf]
    %v1472 = vld [vmem:[%s9 + $0x3c] sm:$0xf]
    %v1473 = vld [vmem:[%s11 + $0xb] sm:$0x1]
    %v1474 = vlaneseq
    %v1475 = vshrl.u32 %v1474, 7
    %v1476 = vsub.s32 0, %v1475
    %v1477 = vrot.slane %v1473, %v1476
    %v1494 = vunpack.c.l.b16 %v1457
    %v1495 = vunpack.c.l.b16 %v1458
    %v1496 = vunpack.c.l.b16 %v1459
    %v1497 = vunpack.c.l.b16 %v1460
    %v1498 = vunpack.c.l.b16 %v1461
    %v1499 = vunpack.c.l.b16 %v1462
    %v1500 = vunpack.c.l.b16 %v1463
    %v1501 = vunpack.c.l.b16 %v1464
    %v1502 = vunpack.c.l.b16 %v1465
    %v1503 = vunpack.c.l.b16 %v1466
    %v1504 = vunpack.c.l.b16 %v1467
    %v1505 = vunpack.c.l.b16 %v1468
    %v1506 = vunpack.c.l.b16 %v1469
    %v1507 = vunpack.c.l.b16 %v1470
    %v1508 = vunpack.c.l.b16 %v1471
    %v1509 = vunpack.c.l.b16 %v1472
    %v1510 = vpack.c.b16 %v1495, %v1494
    %v1511 = vpack.c.b16 %v1497, %v1496
    %v1512 = vpack.c.b16 %v1499, %v1498
    %v1513 = vpack.c.b16 %v1501, %v1500
    %v1514 = vpack.c.b16 %v1503, %v1502
    %v1515 = vpack.c.b16 %v1505, %v1504
    %v1516 = vpack.c.b16 %v1507, %v1506
    %v1517 = vpack.c.b16 %v1509, %v1508
    %1526 = vmatprep.subr.bf16.mxu0 0
    %1527 = vmatpush1.bf16.msra.mxu0 %v1517
    %1528 = vmatprep.subr.bf16.mxu0 0
    %1529 = vmatpush1.bf16.msra.mxu0 %v1516
    %1530 = vmatprep.subr.bf16.mxu0 0
    %1531 = vmatpush1.bf16.msra.mxu0 %v1515
    %1532 = vmatprep.subr.bf16.mxu0 0
    %1533 = vmatpush1.bf16.msra.mxu0 %v1514
    %1534 = vmatprep.subr.bf16.mxu0 0
    %1535 = vmatpush1.bf16.msra.mxu0 %v1513
    %1536 = vmatprep.subr.bf16.mxu0 0
    %1537 = vmatpush1.bf16.msra.mxu0 %v1512
    %1538 = vmatprep.subr.bf16.mxu0 0
    %1539 = vmatpush1.bf16.msra.mxu0 %v1511
    %1540 = vmatprep.subr.bf16.mxu0 0
    %1541 = vmatpush1.bf16.msra.mxu0 %v1510
    %1542 = vmatprep.subr.bf16.mxu0 0
    %1543 = vmatpush2.bf16.msra.mxu0 0
    %1544 = vmatprep.subr.bf16.mxu0 0
    %1545 = vmatpush2.bf16.msra.mxu0 0
    %1546 = vmatprep.subr.bf16.mxu0 0
    %1547 = vmatpush2.bf16.msra.mxu0 0
    %1548 = vmatprep.subr.bf16.mxu0 0
    %1549 = vmatpush2.bf16.msra.mxu0 0
    %1550 = vmatprep.subr.bf16.mxu0 0
    %1551 = vmatpush2.bf16.msra.mxu0 0
    %1552 = vmatprep.subr.bf16.mxu0 0
    %1553 = vmatpush2.bf16.msra.mxu0 0
    %1554 = vmatprep.subr.bf16.mxu0 0
    %1555 = vmatpush2.bf16.msra.mxu0 0
    %1556 = vmatprep.subr.bf16.mxu0 0
    %1557 = vmatpush2.bf16.msra.mxu0 0
    %1558 = vmatprep.mubr.bf16.mxu0 0
    %1559 = vmatmul.mubr.bf16.gmra.mxu0 %v1456
    %v1560 = vpop.f32.mrf.mxu0
    %v1561 = vadd.f32 %v1477, %v1560
    %v1562 = vpop.f32.mrf.mxu0
    %v1563 = vpop.f32.mrf.mxu0
    %v1564 = vadd.f32 %v1477, %v1563
    %v1565 = vpop.f32.mrf.mxu0
    %1566 = vdwg.mxu0
    %v1567 = vld [vmem:[%s11 + $0xc] sm:$0x1]
    %v1568 = vlaneseq
    %v1569 = vshrl.u32 %v1568, 7
    %v1570 = vsub.s32 0, %v1569
    %v1571 = vrot.slane %v1567, %v1570
    %v1572 = vmul.f32 %v1571, %v1561
    %v1573 = vmul.f32 %v1571, %v1564
    %v1574 = vadd.f32 %v1324, %v1572
    %v1575 = vadd.f32 %v1325, %v1573
    %v1576 = vpack.c.bf16 %v1575, %v1574
    %v1577 = vld [vmem:[%s10] sm:$0xf]
    %v1578 = vld [vmem:[%s10 + $0x4] sm:$0xf]
    %v1579 = vld [vmem:[%s10 + $0x8] sm:$0xf]
    %v1580 = vld [vmem:[%s10 + $0xc] sm:$0xf]
    %v1581 = vld [vmem:[%s15] sm:$0x1]
    %v1583 = vlaneseq
    %v1584 = vshrl.u32 %v1583, 7
    %v1585 = vsub.s32 0, %v1584
    %v1586 = vrot.slane %v1581, %v1585
    %v1592 = vunpack.c.l.b16 %v1577
    %v1593 = vunpack.c.l.b16 %v1578
    %v1594 = vunpack.c.l.b16 %v1579
    %v1595 = vunpack.c.l.b16 %v1580
    %v1596 = vpack.c.b16 %v1593, %v1592
    %v1597 = vpack.c.b16 %v1595, %v1594
    %v1601 = vsel %vm168, %v1576, 0
    %1603 = vmatprep.subr.bf16.mxu0 0
    %1604 = vmatpush1.bf16.msra.mxu0 0
    %1605 = vmatprep.subr.bf16.mxu0 0
    %1606 = vmatpush1.bf16.msra.mxu0 0
    %1607 = vmatprep.subr.bf16.mxu0 0
    %1608 = vmatpush1.bf16.msra.mxu0 0
    %1609 = vmatprep.subr.bf16.mxu0 0
    %1610 = vmatpush1.bf16.msra.mxu0 0
    %1611 = vmatprep.subr.bf16.mxu0 0
    %1612 = vmatpush1.bf16.msra.mxu0 0
    %1613 = vmatprep.subr.bf16.mxu0 0
    %1614 = vmatpush1.bf16.msra.mxu0 0
    %1615 = vmatprep.subr.bf16.mxu0 0
    %1616 = vmatpush1.bf16.msra.mxu0 %v1597
    %1617 = vmatprep.subr.bf16.mxu0 0
    %1618 = vmatpush1.bf16.msra.mxu0 %v1596
    %1619 = vmatprep.subr.bf16.mxu0 0
    %1620 = vmatpush2.bf16.msra.mxu0 0
    %1621 = vmatprep.subr.bf16.mxu0 0
    %1622 = vmatpush2.bf16.msra.mxu0 0
    %1623 = vmatprep.subr.bf16.mxu0 0
    %1624 = vmatpush2.bf16.msra.mxu0 0
    %1625 = vmatprep.subr.bf16.mxu0 0
    %1626 = vmatpush2.bf16.msra.mxu0 0
    %1627 = vmatprep.subr.bf16.mxu0 0
    %1628 = vmatpush2.bf16.msra.mxu0 0
    %1629 = vmatprep.subr.bf16.mxu0 0
    %1630 = vmatpush2.bf16.msra.mxu0 0
    %1631 = vmatprep.subr.bf16.mxu0 0
    %1632 = vmatpush2.bf16.msra.mxu0 0
    %1633 = vmatprep.subr.bf16.mxu0 0
    %1634 = vmatpush2.bf16.msra.mxu0 0
    %1635 = vmatprep.mubr.bf16.mxu0 0
    %1636 = vmatmul.mubr.bf16.gmra.mxu0 %v1601
    %v1637 = vpop.f32.mrf.mxu0
    %v1638 = vadd.f32 %v1586, %v1637
    %v1639 = vpop.f32.mrf.mxu0
    %v1640 = vpop.f32.mrf.mxu0
    %v1641 = vadd.f32 %v1586, %v1640
    %v1642 = vpop.f32.mrf.mxu0
    %1643 = vdwg.mxu0
    %1644 = vst [vmem:[#allocation2] sm:$0xff] %v1638
    %1645 = vst [vmem:[#allocation2 + $0x8] sm:$0xff] %v1641
    // Predicated region
    $region66: #{tpu_custom_call.1} parent=1 // pred_check
      _
    $region67: #{tpu_custom_call.1} parent=1 // pred_check_branch
      %1647 = sbr.rel (0) target = $region69
    $region68: #{tpu_custom_call.1} parent=1 // pred_region
      %s1649 = ssub.s32 256, 256
      %1650 = vsyncadd [#allocation3], %s1649
      %s1651 = sshll.u32 [#allocation2], 4
      %s1652 = int_to_ptr.vmem [resolvable:$true] %s1651
      %1657 = dma.vmem_to_hbm [thread:$0]  %s1652, 256, %s16, [#allocation3], 128, 128, 8
    $region69: #{tpu_custom_call.1} parent=1 // pred_fallthru
      _
    // Predicated region
    $region70: #{tpu_custom_call.1} parent=1 // pred_check
      _
    $region71: #{tpu_custom_call.1} parent=1 // pred_check_branch
      %1659 = sbr.rel (0) target = $region73
    $region72: #{tpu_custom_call.1} parent=1 // pred_region
      %1660 = dma.done [#allocation3], 256
    $region73: #{tpu_custom_call.1} parent=1 // pred_fallthru
      _
    %1661 = vsyncpa [#allocation3], 1

</llo_original>
